<compile_context>
chip_gen: v5e
topology: v5e:2x2
jax: 0.10.0
libtpu: 0.0.40
codegen_flags: <defaults>
</compile_context>

<pallas_src>
import functools

import jax
import jax.numpy as jnp
from jax.experimental import pallas as pl
from jax.experimental.pallas import tpu as pltpu

LATENT_SIZE = 32
CLASS_SIZE = 10
EMBEDDING_DIM = 16
OUT_FEATURES = 784            # 28 * 28
BN_EPS = 1e-5
LEAKY_SLOPE = 0.2

# Packed-vector layout (all offsets are multiples of 128 lanes).
_OFF_B1 = 0          # (1, 128)
_OFF_G2 = 128        # (1, 256)
_OFF_BT2 = 384       # (1, 256)
_OFF_G3 = 640        # (1, 512)
_OFF_BT3 = 1152      # (1, 512)
_OFF_G4 = 1664       # (1, 1024)
_OFF_BT4 = 2688      # (1, 1024)
_OFF_B5 = 3712       # (1, 784)
_VEC_RAW = 3712 + OUT_FEATURES      # 4496
_VEC_LEN = 4608                      # padded to 36 * 128 lanes


def _leaky_relu(h):
    return jnp.where(h >= 0.0, h, LEAKY_SLOPE * h)


def _batch_norm(h, gamma, beta):
    # BatchNorm1d in training mode (fresh nn.Module): batch stats, biased var.
    # NOTE: correct only while the whole batch lives in one block; if batch is
    # ever tiled over a grid this must become a two-pass (sum / sum-sq) BN.
    mean = jnp.mean(h, axis=0, keepdims=True)
    var = jnp.mean((h - mean) * (h - mean), axis=0, keepdims=True)
    return gamma * (h - mean) * jax.lax.rsqrt(var + BN_EPS) + beta


def _dense_bf16(h, w_ref):
    # Cast only the dot operand; weights are already bf16, accumulate in f32.
    return jnp.dot(h.astype(jnp.bfloat16), w_ref[...],
                   preferred_element_type=jnp.float32)


def generator_mlp_kernel(
    label_ref, latent_ref,
    w1a_ref, embw1b_ref,
    w2_ref, w3_ref, w4_ref, w5_ref,
    vec_ref,
    out_ref,
):
    """Fused Generator forward: (folded) embedding + 5-layer MLP + BN/LReLU + Tanh.

    Grid-less call: ~3 MB of bf16 weights plus one packed f32 vector and tiny
    activations are VMEM resident, all input DMAs issue in the prologue, the
    five matmuls hit the MXU, elementwise work rides VPU/EUP slack.
    """
    batch = latent_ref.shape[0]

    # Fused nn.Embedding lookup *pre-folded into W1*: onehot @ (emb @ W1b).
    lbl = label_ref[...]                                             # (B, 1) i32
    classes = jax.lax.broadcasted_iota(jnp.int32, (batch, CLASS_SIZE), 1)
    onehot = (classes == lbl).astype(jnp.bfloat16)                   # (B, 10)

    b1 = vec_ref[:, _OFF_B1:_OFF_B1 + 128]
    g2, bt2 = vec_ref[:, _OFF_G2:_OFF_G2 + 256], vec_ref[:, _OFF_BT2:_OFF_BT2 + 256]
    g3, bt3 = vec_ref[:, _OFF_G3:_OFF_G3 + 512], vec_ref[:, _OFF_BT3:_OFF_BT3 + 512]
    g4, bt4 = vec_ref[:, _OFF_G4:_OFF_G4 + 1024], vec_ref[:, _OFF_BT4:_OFF_BT4 + 1024]
    b5 = vec_ref[:, _OFF_B5:_OFF_B5 + OUT_FEATURES]

    # Linear(latent+emb -> 128), split-K (latent part + folded embedding part)
    # == concat([latent, emb(label)], 1) @ W1.  Then LeakyReLU(0.2).
    h = (jnp.dot(latent_ref[...].astype(jnp.bfloat16), w1a_ref[...],
                 preferred_element_type=jnp.float32)
         + jnp.dot(onehot, embw1b_ref[...],
                   preferred_element_type=jnp.float32)
         + b1)
    h = _leaky_relu(h)

    # Linear(128 -> 256) + BatchNorm1d + LeakyReLU   (bias dropped: BN no-op)
    h = _leaky_relu(_batch_norm(_dense_bf16(h, w2_ref), g2, bt2))
    # Linear(256 -> 512) + BatchNorm1d + LeakyReLU
    h = _leaky_relu(_batch_norm(_dense_bf16(h, w3_ref), g3, bt3))
    # Linear(512 -> 1024) + BatchNorm1d + LeakyReLU
    h = _leaky_relu(_batch_norm(_dense_bf16(h, w4_ref), g4, bt4))
    # Linear(1024 -> 784) + Tanh
    out_ref[...] = jnp.tanh(_dense_bf16(h, w5_ref) + b5)
    # TODO(synk): PyTorch training-mode BatchNorm1d also updates running
    # mean/var buffers as a side effect; that stateful update is not emitted
    # here (it does not affect the forward output).


def init_generator_params(key, latent_size=LATENT_SIZE, class_size=CLASS_SIZE,
                          embedding_dim=EMBEDDING_DIM):
    """Deterministic synthetic f32 parameters (PyTorch-like fan-in uniform)."""
    dims = [latent_size + embedding_dim, 128, 256, 512, 1024, OUT_FEATURES]
    keys = jax.random.split(key, 2 * (len(dims) - 1) + 1)
    params = {}
    # Embedding: N(0, 1), as nn.Embedding default.
    params["embedding"] = jax.random.normal(
        keys[0], (class_size, embedding_dim), dtype=jnp.float32)
    for i in range(len(dims) - 1):
        fan_in = dims[i]
        bound = 1.0 / jnp.sqrt(fan_in)
        # Stored as (in, out) so the kernel computes x @ W.
        params[f"w{i + 1}"] = jax.random.uniform(
            keys[2 * i + 1], (dims[i], dims[i + 1]),
            minval=-bound, maxval=bound, dtype=jnp.float32)
        params[f"b{i + 1}"] = jax.random.uniform(
            keys[2 * i + 2], (1, dims[i + 1]),
            minval=-bound, maxval=bound, dtype=jnp.float32)
    # BatchNorm affine params (gamma=1, beta=0), layers 2..4.
    for i, d in zip((2, 3, 4), (256, 512, 1024)):
        params[f"g{i}"] = jnp.ones((1, d), dtype=jnp.float32)
        params[f"bt{i}"] = jnp.zeros((1, d), dtype=jnp.float32)
    return params


def prepare_generator_params(params, latent_size=LATENT_SIZE):
    """Convert f32 params to the kernel layout (once, outside the hot path).

    - big weights -> bf16 (halves the dominant weight DMA; MXU is bf16-native)
    - embedding folded into the label half of W1 (constant x constant)
    - b2/b3/b4 dropped (no-ops under training-mode BatchNorm)
    - all remaining (1,N) f32 vectors packed into one lane-aligned array
    """
    kp = {}
    w1 = params["w1"]
    kp["w1a"] = w1[:latent_size, :].astype(jnp.bfloat16)          # (32, 128)
    kp["emb_w1b"] = jnp.dot(params["embedding"],
                            w1[latent_size:, :]).astype(jnp.bfloat16)  # (10,128)
    for i in (2, 3, 4, 5):
        kp[f"w{i}"] = params[f"w{i}"].astype(jnp.bfloat16)
    vec = jnp.concatenate(
        [params["b1"], params["g2"], params["bt2"], params["g3"],
         params["bt3"], params["g4"], params["bt4"], params["b5"]],
        axis=1).astype(jnp.float32)                                # (1, 4496)
    kp["vec"] = jnp.pad(vec, ((0, 0), (0, _VEC_LEN - _VEC_RAW)))   # (1, 4608)
    return kp


@functools.partial(jax.jit, static_argnames=())
def generator_forward(kparams, latent, label):
    """Equivalent of Generator.forward(input, label) -> (B, 1, 28, 28)."""
    batch = latent.shape[0]
    label2d = label.astype(jnp.int32).reshape(batch, 1)   # tiny; metadata-level
    kernel_args = (
        label2d, latent.astype(jnp.float32),
        kparams["w1a"], kparams["emb_w1b"],
        kparams["w2"], kparams["w3"], kparams["w4"], kparams["w5"],
        kparams["vec"],
    )
    weight_elems = (LATENT_SIZE * 128 + CLASS_SIZE * 128 + 128 * 256
                    + 256 * 512 + 512 * 1024 + 1024 * OUT_FEATURES)
    cost = pl.CostEstimate(
        flops=2 * batch * weight_elems,
        transcendentals=batch * (OUT_FEATURES + 256 + 512 + 1024),
        bytes_accessed=(2 * weight_elems + _VEC_LEN * 4
                        + batch * (LATENT_SIZE * 4 + 4)
                        + batch * OUT_FEATURES * 4),
    )
    out = pl.pallas_call(
        generator_mlp_kernel,
        out_shape=jax.ShapeDtypeStruct((batch, OUT_FEATURES), jnp.float32),
        in_specs=[pl.BlockSpec(memory_space=pltpu.MemorySpace.VMEM)
                  for _ in kernel_args],
        out_specs=pl.BlockSpec(memory_space=pltpu.MemorySpace.VMEM),
        # ~3 MB bf16 weights + tiny activations resident: well under every
        # generation's VMEM; 32 MiB leaves headroom if batch is raised later.
        compiler_params=pltpu.CompilerParams(vmem_limit_bytes=32 << 20),
        cost_estimate=cost,
    )(*kernel_args)
    return out.reshape(-1, 1, 28, 28)


def _reference_forward(params, kparams, latent, label):
    """Pure-JAX reference mirroring the kernel's bf16-operand matmuls but
    keeping the PyTorch-style b2/b3/b4 adds (their removal in the kernel is
    algebraically exact under training-mode BatchNorm)."""

    def dot_bf16(a, w):
        return jnp.dot(a.astype(jnp.bfloat16), w.astype(jnp.bfloat16),
                       preferred_element_type=jnp.float32)

    def leaky(h):
        return jnp.where(h >= 0.0, h, LEAKY_SLOPE * h)

    def bn(h, g, b):
        m = jnp.mean(h, axis=0, keepdims=True)
        v = jnp.mean((h - m) ** 2, axis=0, keepdims=True)
        return g * (h - m) * jax.lax.rsqrt(v + BN_EPS) + b

    # Embedding lookup folded into W1 exactly as the kernel does it.
    emb_contrib = jnp.take(kparams["emb_w1b"], label, axis=0).astype(jnp.float32)
    h = leaky(dot_bf16(latent, params["w1"][:LATENT_SIZE, :])
              + emb_contrib + params["b1"])
    h = leaky(bn(dot_bf16(h, params["w2"]) + params["b2"],
                 params["g2"], params["bt2"]))
    h = leaky(bn(dot_bf16(h, params["w3"]) + params["b3"],
                 params["g3"], params["bt3"]))
    h = leaky(bn(dot_bf16(h, params["w4"]) + params["b4"],
                 params["g4"], params["bt4"]))
    h = jnp.tanh(dot_bf16(h, params["w5"]) + params["b5"])
    return h.reshape(-1, 1, 28, 28)


if __name__ == "__main__":
    key = jax.random.PRNGKey(0)
    k_params, k_latent, k_label = jax.random.split(key, 3)

    batch = 8
    params = init_generator_params(k_params)
    kparams = prepare_generator_params(params)
    latent = jax.random.normal(k_latent, (batch, LATENT_SIZE), dtype=jnp.float32)
    label = jax.random.randint(k_label, (batch,), 0, CLASS_SIZE, dtype=jnp.int32)

    out = jax.block_until_ready(generator_forward(kparams, latent, label))
    assert out.shape == (batch, 1, 28, 28), out.shape

    ref = jax.block_until_ready(_reference_forward(params, kparams, latent, label))
    max_err = float(jnp.max(jnp.abs(out - ref)))
    assert jnp.allclose(out, ref, atol=5e-3, rtol=5e-3), max_err

    print("KERNEL_OK")
</pallas_src>

<mosaic_0001>
module attributes {stable_mosaic.version = 11 : i64} {
  func.func @generator_mlp_kernel(%arg0: memref<8x1xi32, #tpu.memory_space<vmem>>, %arg1: memref<8x32xf32, #tpu.memory_space<vmem>>, %arg2: memref<32x128xbf16, #tpu.memory_space<vmem>>, %arg3: memref<10x128xbf16, #tpu.memory_space<vmem>>, %arg4: memref<128x256xbf16, #tpu.memory_space<vmem>>, %arg5: memref<256x512xbf16, #tpu.memory_space<vmem>>, %arg6: memref<512x1024xbf16, #tpu.memory_space<vmem>>, %arg7: memref<1024x784xbf16, #tpu.memory_space<vmem>>, %arg8: memref<1x4608xf32, #tpu.memory_space<vmem>>, %arg9: memref<8x784xf32, #tpu.memory_space<vmem>>) attributes {dimension_semantics = [], scalar_prefetch = 0 : i64, scratch_operands = 0 : i64, tpu.core_type = #tpu.core_type<tc>} {
    %c0 = arith.constant 0 : index
    %c0_0 = arith.constant 0 : index
    %0 = vector.load %arg0[%c0, %c0_0] : memref<8x1xi32, #tpu.memory_space<vmem>>, vector<8x1xi32>
    %1 = tpu.iota {dimensions = array<i32: 1>} : vector<8x10xi32>
    %2 = vector.broadcast %0 : vector<8x1xi32> to vector<8x10xi32>
    %3 = arith.cmpi eq, %1, %2 : vector<8x10xi32>
    %4 = arith.extui %3 : vector<8x10xi1> to vector<8x10xi32>
    %5 = arith.sitofp %4 : vector<8x10xi32> to vector<8x10xf32>
    %6 = arith.truncf %5 : vector<8x10xf32> to vector<8x10xbf16>
    %c0_1 = arith.constant 0 : index
    %c0_2 = arith.constant 0 : index
    %7 = vector.load %arg8[%c0_1, %c0_2] : memref<1x4608xf32, #tpu.memory_space<vmem>>, vector<1x128xf32>
    %c0_3 = arith.constant 0 : index
    %c128 = arith.constant 128 : index
    %8 = vector.load %arg8[%c0_3, %c128] : memref<1x4608xf32, #tpu.memory_space<vmem>>, vector<1x256xf32>
    %c0_4 = arith.constant 0 : index
    %c384 = arith.constant 384 : index
    %9 = vector.load %arg8[%c0_4, %c384] : memref<1x4608xf32, #tpu.memory_space<vmem>>, vector<1x256xf32>
    %c0_5 = arith.constant 0 : index
    %c640 = arith.constant 640 : index
    %10 = vector.load %arg8[%c0_5, %c640] : memref<1x4608xf32, #tpu.memory_space<vmem>>, vector<1x512xf32>
    %c0_6 = arith.constant 0 : index
    %c1152 = arith.constant 1152 : index
    %11 = vector.load %arg8[%c0_6, %c1152] : memref<1x4608xf32, #tpu.memory_space<vmem>>, vector<1x512xf32>
    %c0_7 = arith.constant 0 : index
    %c1664 = arith.constant 1664 : index
    %12 = vector.load %arg8[%c0_7, %c1664] : memref<1x4608xf32, #tpu.memory_space<vmem>>, vector<1x1024xf32>
    %c0_8 = arith.constant 0 : index
    %c2688 = arith.constant 2688 : index
    %13 = vector.load %arg8[%c0_8, %c2688] : memref<1x4608xf32, #tpu.memory_space<vmem>>, vector<1x1024xf32>
    %c0_9 = arith.constant 0 : index
    %c3712 = arith.constant 3712 : index
    %14 = vector.load %arg8[%c0_9, %c3712] : memref<1x4608xf32, #tpu.memory_space<vmem>>, vector<1x784xf32>
    %c0_10 = arith.constant 0 : index
    %c0_11 = arith.constant 0 : index
    %15 = vector.load %arg1[%c0_10, %c0_11] : memref<8x32xf32, #tpu.memory_space<vmem>>, vector<8x32xf32>
    %16 = arith.truncf %15 : vector<8x32xf32> to vector<8x32xbf16>
    %c0_12 = arith.constant 0 : index
    %c0_13 = arith.constant 0 : index
    %17 = vector.load %arg2[%c0_12, %c0_13] : memref<32x128xbf16, #tpu.memory_space<vmem>>, vector<32x128xbf16>
    %cst = arith.constant dense<0.000000e+00> : vector<8x128xf32>
    %18 = tpu.matmul %16, %17, %cst {dimension_numbers = #tpu.dot_dimension_numbers<[1], [0], [0], [1], [0, 0, 1, 1], [], []>} : vector<8x32xbf16>, vector<32x128xbf16>, vector<8x128xf32> -> vector<8x128xf32>
    %c0_14 = arith.constant 0 : index
    %c0_15 = arith.constant 0 : index
    %19 = vector.load %arg3[%c0_14, %c0_15] : memref<10x128xbf16, #tpu.memory_space<vmem>>, vector<10x128xbf16>
    %cst_16 = arith.constant dense<0.000000e+00> : vector<8x128xf32>
    %20 = tpu.matmul %6, %19, %cst_16 {dimension_numbers = #tpu.dot_dimension_numbers<[1], [0], [0], [1], [0, 0, 1, 1], [], []>} : vector<8x10xbf16>, vector<10x128xbf16>, vector<8x128xf32> -> vector<8x128xf32>
    %21 = arith.addf %18, %20 : vector<8x128xf32>
    %22 = vector.broadcast %7 : vector<1x128xf32> to vector<8x128xf32>
    %23 = arith.addf %21, %22 : vector<8x128xf32>
    %cst_17 = arith.constant 0.000000e+00 : f32
    %24 = vector.broadcast %cst_17 : f32 to vector<8x128xf32>
    %25 = arith.cmpf oge, %23, %24 : vector<8x128xf32>
    %cst_18 = arith.constant 2.000000e-01 : f32
    %26 = vector.broadcast %cst_18 : f32 to vector<8x128xf32>
    %27 = arith.mulf %26, %23 : vector<8x128xf32>
    %28 = arith.select %25, %23, %27 : vector<8x128xi1>, vector<8x128xf32>
    %29 = arith.truncf %28 : vector<8x128xf32> to vector<8x128xbf16>
    %c0_19 = arith.constant 0 : index
    %c0_20 = arith.constant 0 : index
    %30 = vector.load %arg4[%c0_19, %c0_20] : memref<128x256xbf16, #tpu.memory_space<vmem>>, vector<128x256xbf16>
    %cst_21 = arith.constant dense<0.000000e+00> : vector<8x256xf32>
    %31 = tpu.matmul %29, %30, %cst_21 {dimension_numbers = #tpu.dot_dimension_numbers<[1], [0], [0], [1], [0, 0, 1, 1], [], []>} : vector<8x128xbf16>, vector<128x256xbf16>, vector<8x256xf32> -> vector<8x256xf32>
    %cst_22 = arith.constant dense<0.000000e+00> : vector<256xf32>
    %32 = vector.multi_reduction <add>, %31, %cst_22 [0] : vector<8x256xf32> to vector<256xf32>
    %33 = vector.shape_cast %32 : vector<256xf32> to vector<1x256xf32>
    %cst_23 = arith.constant 8.000000e+00 : f32
    %34 = vector.broadcast %cst_23 : f32 to vector<1x256xf32>
    %35 = arith.divf %33, %34 : vector<1x256xf32>
    %36 = vector.broadcast %35 : vector<1x256xf32> to vector<8x256xf32>
    %37 = arith.subf %31, %36 : vector<8x256xf32>
    %38 = vector.broadcast %35 : vector<1x256xf32> to vector<8x256xf32>
    %39 = arith.subf %31, %38 : vector<8x256xf32>
    %40 = arith.mulf %37, %39 : vector<8x256xf32>
    %cst_24 = arith.constant dense<0.000000e+00> : vector<256xf32>
    %41 = vector.multi_reduction <add>, %40, %cst_24 [0] : vector<8x256xf32> to vector<256xf32>
    %42 = vector.shape_cast %41 : vector<256xf32> to vector<1x256xf32>
    %cst_25 = arith.constant 8.000000e+00 : f32
    %43 = vector.broadcast %cst_25 : f32 to vector<1x256xf32>
    %44 = arith.divf %42, %43 : vector<1x256xf32>
    %45 = vector.broadcast %35 : vector<1x256xf32> to vector<8x256xf32>
    %46 = arith.subf %31, %45 : vector<8x256xf32>
    %47 = vector.broadcast %8 : vector<1x256xf32> to vector<8x256xf32>
    %48 = arith.mulf %47, %46 : vector<8x256xf32>
    %cst_26 = arith.constant 9.99999974E-6 : f32
    %49 = vector.broadcast %cst_26 : f32 to vector<1x256xf32>
    %50 = arith.addf %44, %49 : vector<1x256xf32>
    %51 = math.rsqrt %50 : vector<1x256xf32>
    %52 = vector.broadcast %51 : vector<1x256xf32> to vector<8x256xf32>
    %53 = arith.mulf %48, %52 : vector<8x256xf32>
    %54 = vector.broadcast %9 : vector<1x256xf32> to vector<8x256xf32>
    %55 = arith.addf %53, %54 : vector<8x256xf32>
    %cst_27 = arith.constant 0.000000e+00 : f32
    %56 = vector.broadcast %cst_27 : f32 to vector<8x256xf32>
    %57 = arith.cmpf oge, %55, %56 : vector<8x256xf32>
    %cst_28 = arith.constant 2.000000e-01 : f32
    %58 = vector.broadcast %cst_28 : f32 to vector<8x256xf32>
    %59 = arith.mulf %58, %55 : vector<8x256xf32>
    %60 = arith.select %57, %55, %59 : vector<8x256xi1>, vector<8x256xf32>
    %61 = arith.truncf %60 : vector<8x256xf32> to vector<8x256xbf16>
    %c0_29 = arith.constant 0 : index
    %c0_30 = arith.constant 0 : index
    %62 = vector.load %arg5[%c0_29, %c0_30] : memref<256x512xbf16, #tpu.memory_space<vmem>>, vector<256x512xbf16>
    %cst_31 = arith.constant dense<0.000000e+00> : vector<8x512xf32>
    %63 = tpu.matmul %61, %62, %cst_31 {dimension_numbers = #tpu.dot_dimension_numbers<[1], [0], [0], [1], [0, 0, 1, 1], [], []>} : vector<8x256xbf16>, vector<256x512xbf16>, vector<8x512xf32> -> vector<8x512xf32>
    %cst_32 = arith.constant dense<0.000000e+00> : vector<512xf32>
    %64 = vector.multi_reduction <add>, %63, %cst_32 [0] : vector<8x512xf32> to vector<512xf32>
    %65 = vector.shape_cast %64 : vector<512xf32> to vector<1x512xf32>
    %cst_33 = arith.constant 8.000000e+00 : f32
    %66 = vector.broadcast %cst_33 : f32 to vector<1x512xf32>
    %67 = arith.divf %65, %66 : vector<1x512xf32>
    %68 = vector.broadcast %67 : vector<1x512xf32> to vector<8x512xf32>
    %69 = arith.subf %63, %68 : vector<8x512xf32>
    %70 = vector.broadcast %67 : vector<1x512xf32> to vector<8x512xf32>
    %71 = arith.subf %63, %70 : vector<8x512xf32>
    %72 = arith.mulf %69, %71 : vector<8x512xf32>
    %cst_34 = arith.constant dense<0.000000e+00> : vector<512xf32>
    %73 = vector.multi_reduction <add>, %72, %cst_34 [0] : vector<8x512xf32> to vector<512xf32>
    %74 = vector.shape_cast %73 : vector<512xf32> to vector<1x512xf32>
    %cst_35 = arith.constant 8.000000e+00 : f32
    %75 = vector.broadcast %cst_35 : f32 to vector<1x512xf32>
    %76 = arith.divf %74, %75 : vector<1x512xf32>
    %77 = vector.broadcast %67 : vector<1x512xf32> to vector<8x512xf32>
    %78 = arith.subf %63, %77 : vector<8x512xf32>
    %79 = vector.broadcast %10 : vector<1x512xf32> to vector<8x512xf32>
    %80 = arith.mulf %79, %78 : vector<8x512xf32>
    %cst_36 = arith.constant 9.99999974E-6 : f32
    %81 = vector.broadcast %cst_36 : f32 to vector<1x512xf32>
    %82 = arith.addf %76, %81 : vector<1x512xf32>
    %83 = math.rsqrt %82 : vector<1x512xf32>
    %84 = vector.broadcast %83 : vector<1x512xf32> to vector<8x512xf32>
    %85 = arith.mulf %80, %84 : vector<8x512xf32>
    %86 = vector.broadcast %11 : vector<1x512xf32> to vector<8x512xf32>
    %87 = arith.addf %85, %86 : vector<8x512xf32>
    %cst_37 = arith.constant 0.000000e+00 : f32
    %88 = vector.broadcast %cst_37 : f32 to vector<8x512xf32>
    %89 = arith.cmpf oge, %87, %88 : vector<8x512xf32>
    %cst_38 = arith.constant 2.000000e-01 : f32
    %90 = vector.broadcast %cst_38 : f32 to vector<8x512xf32>
    %91 = arith.mulf %90, %87 : vector<8x512xf32>
    %92 = arith.select %89, %87, %91 : vector<8x512xi1>, vector<8x512xf32>
    %93 = arith.truncf %92 : vector<8x512xf32> to vector<8x512xbf16>
    %c0_39 = arith.constant 0 : index
    %c0_40 = arith.constant 0 : index
    %94 = vector.load %arg6[%c0_39, %c0_40] : memref<512x1024xbf16, #tpu.memory_space<vmem>>, vector<512x1024xbf16>
    %cst_41 = arith.constant dense<0.000000e+00> : vector<8x1024xf32>
    %95 = tpu.matmul %93, %94, %cst_41 {dimension_numbers = #tpu.dot_dimension_numbers<[1], [0], [0], [1], [0, 0, 1, 1], [], []>} : vector<8x512xbf16>, vector<512x1024xbf16>, vector<8x1024xf32> -> vector<8x1024xf32>
    %cst_42 = arith.constant dense<0.000000e+00> : vector<1024xf32>
    %96 = vector.multi_reduction <add>, %95, %cst_42 [0] : vector<8x1024xf32> to vector<1024xf32>
    %97 = vector.shape_cast %96 : vector<1024xf32> to vector<1x1024xf32>
    %cst_43 = arith.constant 8.000000e+00 : f32
    %98 = vector.broadcast %cst_43 : f32 to vector<1x1024xf32>
    %99 = arith.divf %97, %98 : vector<1x1024xf32>
    %100 = vector.broadcast %99 : vector<1x1024xf32> to vector<8x1024xf32>
    %101 = arith.subf %95, %100 : vector<8x1024xf32>
    %102 = vector.broadcast %99 : vector<1x1024xf32> to vector<8x1024xf32>
    %103 = arith.subf %95, %102 : vector<8x1024xf32>
    %104 = arith.mulf %101, %103 : vector<8x1024xf32>
    %cst_44 = arith.constant dense<0.000000e+00> : vector<1024xf32>
    %105 = vector.multi_reduction <add>, %104, %cst_44 [0] : vector<8x1024xf32> to vector<1024xf32>
    %106 = vector.shape_cast %105 : vector<1024xf32> to vector<1x1024xf32>
    %cst_45 = arith.constant 8.000000e+00 : f32
    %107 = vector.broadcast %cst_45 : f32 to vector<1x1024xf32>
    %108 = arith.divf %106, %107 : vector<1x1024xf32>
    %109 = vector.broadcast %99 : vector<1x1024xf32> to vector<8x1024xf32>
    %110 = arith.subf %95, %109 : vector<8x1024xf32>
    %111 = vector.broadcast %12 : vector<1x1024xf32> to vector<8x1024xf32>
    %112 = arith.mulf %111, %110 : vector<8x1024xf32>
    %cst_46 = arith.constant 9.99999974E-6 : f32
    %113 = vector.broadcast %cst_46 : f32 to vector<1x1024xf32>
    %114 = arith.addf %108, %113 : vector<1x1024xf32>
    %115 = math.rsqrt %114 : vector<1x1024xf32>
    %116 = vector.broadcast %115 : vector<1x1024xf32> to vector<8x1024xf32>
    %117 = arith.mulf %112, %116 : vector<8x1024xf32>
    %118 = vector.broadcast %13 : vector<1x1024xf32> to vector<8x1024xf32>
    %119 = arith.addf %117, %118 : vector<8x1024xf32>
    %cst_47 = arith.constant 0.000000e+00 : f32
    %120 = vector.broadcast %cst_47 : f32 to vector<8x1024xf32>
    %121 = arith.cmpf oge, %119, %120 : vector<8x1024xf32>
    %cst_48 = arith.constant 2.000000e-01 : f32
    %122 = vector.broadcast %cst_48 : f32 to vector<8x1024xf32>
    %123 = arith.mulf %122, %119 : vector<8x1024xf32>
    %124 = arith.select %121, %119, %123 : vector<8x1024xi1>, vector<8x1024xf32>
    %125 = arith.truncf %124 : vector<8x1024xf32> to vector<8x1024xbf16>
    %c0_49 = arith.constant 0 : index
    %c0_50 = arith.constant 0 : index
    %126 = vector.load %arg7[%c0_49, %c0_50] : memref<1024x784xbf16, #tpu.memory_space<vmem>>, vector<1024x784xbf16>
    %cst_51 = arith.constant dense<0.000000e+00> : vector<8x784xf32>
    %127 = tpu.matmul %125, %126, %cst_51 {dimension_numbers = #tpu.dot_dimension_numbers<[1], [0], [0], [1], [0, 0, 1, 1], [], []>} : vector<8x1024xbf16>, vector<1024x784xbf16>, vector<8x784xf32> -> vector<8x784xf32>
    %128 = vector.broadcast %14 : vector<1x784xf32> to vector<8x784xf32>
    %129 = arith.addf %127, %128 : vector<8x784xf32>
    %130 = math.tanh %129 : vector<8x784xf32>
    %c0_52 = arith.constant 0 : index
    %c0_53 = arith.constant 0 : index
    %131 = vector.load %arg9[%c0_52, %c0_53] : memref<8x784xf32, #tpu.memory_space<vmem>>, vector<8x784xf32>
    tpu.vector_store %arg9[%c0_52, %c0_53], %130 {strides = array<i32>} : memref<8x784xf32, #tpu.memory_space<vmem>>, vector<8x784xf32>,
    return
  }
}

</mosaic_0001>

<llo_original>
// kernel: generator_forward.1
$region0: #{generator_forward.1}
  #allocation0 [shape = 'u32[]', space=smem, size = 0x4, offset = 0x4, fixed_abs, tag = 'smem constant byte address 0x4 - core index']
  #allocation1 [shape = 'u32[72,128]{1,0:T(1,128)}', space=vmem, size = 0x9000, scoped, tag = 'internal scratch']
  %s0 = inlined_call_operand.vmem [shape: s32[8,1], index: 0, kind: input, shape index: {}]
  %s1 = inlined_call_operand.vmem [shape: f32[8,32], index: 1, kind: input, shape index: {}]
  %s2 = inlined_call_operand.vmem [shape: bf16[32,128], index: 2, kind: input, shape index: {}]
  %s3 = inlined_call_operand.vmem [shape: bf16[10,128], index: 3, kind: input, shape index: {}]
  %s4 = inlined_call_operand.vmem [shape: bf16[128,256], index: 4, kind: input, shape index: {}]
  %s5 = inlined_call_operand.vmem [shape: bf16[256,512], index: 5, kind: input, shape index: {}]
  %s6 = inlined_call_operand.vmem [shape: bf16[512,1024], index: 6, kind: input, shape index: {}]
  %s7 = inlined_call_operand.vmem [shape: bf16[1024,784], index: 7, kind: input, shape index: {}]
  %s8 = inlined_call_operand.vmem [shape: f32[1,4608], index: 8, kind: input, shape index: {}]
  %s9 = inlined_call_operand.vmem [shape: f32[8,784], index: 9, kind: output, shape index: {}]
  %s10 = sld [smem:[#allocation0]]
  $region46: #{generator_forward.1} parent=0
    _
  %s12 = ssub.s32 1, %s10
  %s13 = scalar_select 0, %s12, %s10
  // Predicated region
  $region2: #{generator_forward.1} parent=0 // pred_check
    _
  $region3: #{generator_forward.1} parent=0 // pred_check_branch
    %15 = sbr.rel (0) target = $region5
  $region4: #{generator_forward.1} parent=0 // pred_region
    _
  $region5: #{generator_forward.1} parent=0 // pred_fallthru
    _
  // Predicated region
  $region6: #{generator_forward.1} parent=0 // pred_check
    _
  $region7: #{generator_forward.1} parent=0 // pred_check_branch
    %17 = sbr.rel (0) target = $region9
  $region8: #{generator_forward.1} parent=0 // pred_region
    _
  $region9: #{generator_forward.1} parent=0 // pred_fallthru
    _
  // Predicated region
  $region10: #{generator_forward.1} parent=0 // pred_check
    _
  $region11: #{generator_forward.1} parent=0 // pred_check_branch
    %19 = sbr.rel (0) target = $region13
  $region12: #{generator_forward.1} parent=0 // pred_region
    _
  $region13: #{generator_forward.1} parent=0 // pred_fallthru
    _
  // Predicated region
  $region14: #{generator_forward.1} parent=0 // pred_check
    _
  $region15: #{generator_forward.1} parent=0 // pred_check_branch
    %21 = sbr.rel (0) target = $region17
  $region16: #{generator_forward.1} parent=0 // pred_region
    _
  $region17: #{generator_forward.1} parent=0 // pred_fallthru
    _
  // Predicated region
  $region18: #{generator_forward.1} parent=0 // pred_check
    _
  $region19: #{generator_forward.1} parent=0 // pred_check_branch
    %23 = sbr.rel (0) target = $region21
  $region20: #{generator_forward.1} parent=0 // pred_region
    _
  $region21: #{generator_forward.1} parent=0 // pred_fallthru
    _
  // Predicated region
  $region22: #{generator_forward.1} parent=0 // pred_check
    _
  $region23: #{generator_forward.1} parent=0 // pred_check_branch
    %25 = sbr.rel (0) target = $region25
  $region24: #{generator_forward.1} parent=0 // pred_region
    _
  $region25: #{generator_forward.1} parent=0 // pred_fallthru
    _
  // Predicated region
  $region26: #{generator_forward.1} parent=0 // pred_check
    _
  $region27: #{generator_forward.1} parent=0 // pred_check_branch
    %27 = sbr.rel (0) target = $region29
  $region28: #{generator_forward.1} parent=0 // pred_region
    _
  $region29: #{generator_forward.1} parent=0 // pred_fallthru
    _
  // Predicated region
  $region30: #{generator_forward.1} parent=0 // pred_check
    _
  $region31: #{generator_forward.1} parent=0 // pred_check_branch
    %29 = sbr.rel (0) target = $region33
  $region32: #{generator_forward.1} parent=0 // pred_region
    _
  $region33: #{generator_forward.1} parent=0 // pred_fallthru
    _
  // Predicated region
  $region34: #{generator_forward.1} parent=0 // pred_check
    _
  $region35: #{generator_forward.1} parent=0 // pred_check_branch
    %31 = sbr.rel (0) target = $region37
  $region36: #{generator_forward.1} parent=0 // pred_region
    _
  $region37: #{generator_forward.1} parent=0 // pred_fallthru
    _
  %v33 = vld [vmem:[%s0] sm:$0xff]
  %v34 = vlaneseq
  %v35 = vand.u32 %v34, 127
  %36 = vset.pattern.permute.xlu0 0
  %37 = vperm.xlu0 %36, %v33
  %v38 = vpop.permute.xlu0 %37
  %vm39 = vcmp.eq.s32.totalorder %v35, %v38
  %v40 = vsel %vm39, 1, 0
  %v41 = vcvt.s32.f32 %v40
  %v42 = vpack.c.bf16 %v41, %v41
  %v43 = vld [vmem:[%s8] sm:$0x1]
  %v44 = vld [vmem:[%s8 + $0x1] sm:$0x3]
  %v45 = vld [vmem:[%s8 + $0x3] sm:$0x3]
  %v46 = vld [vmem:[%s8 + $0x5] sm:$0xf]
  %v47 = vld [vmem:[%s8 + $0x9] sm:$0xf]
  %v48 = vld [vmem:[%s8 + $0xd] sm:$0xff]
  %v49 = vld [vmem:[%s8 + $0x15] sm:$0xff]
  %v50 = vld [vmem:[%s8 + $0x1d] sm:$0x7f]
  %v51 = vld [vmem:[%s1] sm:$0xff]
  %v52 = vpack.c.bf16 %v51, %v51
  %v53 = vld [vmem:[%s2] sm:$0xf]
  %v54 = vld [vmem:[%s2 + $0x4] sm:$0xf]
  %v55 = vld [vmem:[%s2 + $0x8] sm:$0xf]
  %v56 = vld [vmem:[%s2 + $0xc] sm:$0xf]
  %v57 = vld [vmem:[%s3] sm:$0xf]
  %v58 = vld [vmem:[%s3 + $0x4] sm:$0x1]
  %v61 = vunpack.c.l.b16 %v57
  %v62 = vunpack.c.l.b16 %v58
  %v63 = vpack.c.b16 %v62, %v61
  %vm64 = vcmask 80896
  %v66 = vsel %vm64, %v42, 0
  %vm68 = vcmask 1044480
  %v70 = vsel %vm68, %v63, 0
  %72 = vmatpush.bf16.msra.mxu0 0
  %73 = vmatpush.bf16.msra.mxu0 0
  %74 = vmatpush.bf16.msra.mxu0 0
  %75 = vmatpush.bf16.msra.mxu0 0
  %76 = vmatpush.bf16.msra.mxu0 0
  %77 = vmatpush.bf16.msra.mxu0 0
  %78 = vmatpush.bf16.msra.mxu0 0
  %79 = vmatpush.bf16.msra.mxu0 %v70
  %80 = vmatmul.bf16.gmra.mxu0 %v66
  %v81 = vpop.f32.mrf.mxu0
  %v82 = vadd.f32 0.0, %v81
  %v83 = vpop.f32.mrf.mxu0
  %84 = vdwg.mxu0
  %v89 = vunpack.c.l.b16 %v53
  %v90 = vunpack.c.l.b16 %v54
  %v91 = vunpack.c.l.b16 %v55
  %v92 = vunpack.c.l.b16 %v56
  %v93 = vpack.c.b16 %v90, %v89
  %v94 = vpack.c.b16 %v92, %v91
  %vm97 = vcmask 261120
  %v99 = vsel %vm97, %v52, 0
  %101 = vmatpush.bf16.msra.mxu0 0
  %102 = vmatpush.bf16.msra.mxu0 0
  %103 = vmatpush.bf16.msra.mxu0 0
  %104 = vmatpush.bf16.msra.mxu0 0
  %105 = vmatpush.bf16.msra.mxu0 0
  %106 = vmatpush.bf16.msra.mxu0 0
  %107 = vmatpush.bf16.msra.mxu0 %v94
  %108 = vmatpush.bf16.msra.mxu0 %v93
  %109 = vmatmul.bf16.gmra.mxu0 %v99
  %v110 = vpop.f32.mrf.mxu0
  %v111 = vadd.f32 %v82, %v110
  %v112 = vpop.f32.mrf.mxu0
  %113 = vdwg.mxu0
  %v115 = vperm.slane %v43, 0
  %v117 = vadd.f32 %v111, %v115
  %vm118 = vcmp.ge.f32.partialorder %v117, 0.0
  %v119 = vmul.f32 %v117, 0.2
  %v120 = vsel %vm118, %v117, %v119
  %v121 = vpack.c.bf16 %v120, %v120
  %v122 = vld [vmem:[%s4] sm:$0xff]
  %v123 = vld [vmem:[%s4 + $0x8] sm:$0xff]
  %v124 = vld [vmem:[%s4 + $0x10] sm:$0xff]
  %v125 = vld [vmem:[%s4 + $0x18] sm:$0xff]
  %v126 = vld [vmem:[%s4 + $0x20] sm:$0xff]
  %v127 = vld [vmem:[%s4 + $0x28] sm:$0xff]
  %v128 = vld [vmem:[%s4 + $0x30] sm:$0xff]
  %v129 = vld [vmem:[%s4 + $0x38] sm:$0xff]
  %v130 = vld [vmem:[%s4 + $0x40] sm:$0xff]
  %v131 = vld [vmem:[%s4 + $0x48] sm:$0xff]
  %v132 = vld [vmem:[%s4 + $0x50] sm:$0xff]
  %v133 = vld [vmem:[%s4 + $0x58] sm:$0xff]
  %v134 = vld [vmem:[%s4 + $0x60] sm:$0xff]
  %v135 = vld [vmem:[%s4 + $0x68] sm:$0xff]
  %v136 = vld [vmem:[%s4 + $0x70] sm:$0xff]
  %v137 = vld [vmem:[%s4 + $0x78] sm:$0xff]
  %v154 = vunpack.c.l.b16 %v122
  %v155 = vunpack.c.h.b16 %v122
  %v156 = vunpack.c.l.b16 %v123
  %v157 = vunpack.c.h.b16 %v123
  %v158 = vunpack.c.l.b16 %v124
  %v159 = vunpack.c.h.b16 %v124
  %v160 = vunpack.c.l.b16 %v125
  %v161 = vunpack.c.h.b16 %v125
  %v162 = vunpack.c.l.b16 %v126
  %v163 = vunpack.c.h.b16 %v126
  %v164 = vunpack.c.l.b16 %v127
  %v165 = vunpack.c.h.b16 %v127
  %v166 = vunpack.c.l.b16 %v128
  %v167 = vunpack.c.h.b16 %v128
  %v168 = vunpack.c.l.b16 %v129
  %v169 = vunpack.c.h.b16 %v129
  %v170 = vunpack.c.l.b16 %v130
  %v171 = vunpack.c.h.b16 %v130
  %v172 = vunpack.c.l.b16 %v131
  %v173 = vunpack.c.h.b16 %v131
  %v174 = vunpack.c.l.b16 %v132
  %v175 = vunpack.c.h.b16 %v132
  %v176 = vunpack.c.l.b16 %v133
  %v177 = vunpack.c.h.b16 %v133
  %v178 = vunpack.c.l.b16 %v134
  %v179 = vunpack.c.h.b16 %v134
  %v180 = vunpack.c.l.b16 %v135
  %v181 = vunpack.c.h.b16 %v135
  %v182 = vunpack.c.l.b16 %v136
  %v183 = vunpack.c.h.b16 %v136
  %v184 = vunpack.c.l.b16 %v137
  %v185 = vunpack.c.h.b16 %v137
  %v186 = vpack.c.b16 %v156, %v154
  %v187 = vpack.c.b16 %v157, %v155
  %v188 = vpack.c.b16 %v160, %v158
  %v189 = vpack.c.b16 %v161, %v159
  %v190 = vpack.c.b16 %v164, %v162
  %v191 = vpack.c.b16 %v165, %v163
  %v192 = vpack.c.b16 %v168, %v166
  %v193 = vpack.c.b16 %v169, %v167
  %v194 = vpack.c.b16 %v172, %v170
  %v195 = vpack.c.b16 %v173, %v171
  %v196 = vpack.c.b16 %v176, %v174
  %v197 = vpack.c.b16 %v177, %v175
  %v198 = vpack.c.b16 %v180, %v178
  %v199 = vpack.c.b16 %v181, %v179
  %v200 = vpack.c.b16 %v184, %v182
  %v201 = vpack.c.b16 %v185, %v183
  %218 = vmatpush.bf16.msra.mxu0 %v200
  %219 = vmatpush.bf16.msra.mxu0 %v198
  %220 = vmatpush.bf16.msra.mxu0 %v196
  %221 = vmatpush.bf16.msra.mxu0 %v194
  %222 = vmatpush.bf16.msra.mxu0 %v192
  %223 = vmatpush.bf16.msra.mxu0 %v190
  %224 = vmatpush.bf16.msra.mxu0 %v188
  %225 = vmatpush.bf16.msra.mxu0 %v186
  %226 = vmatmul.bf16.gmra.mxu0 %v121
  %v227 = vpop.f32.mrf.mxu0
  %v228 = vadd.f32 0.0, %v227
  %v229 = vpop.f32.mrf.mxu0
  %230 = vdwg.mxu0
  %231 = vmatpush.bf16.msra.mxu0 %v201
  %232 = vmatpush.bf16.msra.mxu0 %v199
  %233 = vmatpush.bf16.msra.mxu0 %v197
  %234 = vmatpush.bf16.msra.mxu0 %v195
  %235 = vmatpush.bf16.msra.mxu0 %v193
  %236 = vmatpush.bf16.msra.mxu0 %v191
  %237 = vmatpush.bf16.msra.mxu0 %v189
  %238 = vmatpush.bf16.msra.mxu0 %v187
  %239 = vmatmul.bf16.gmra.mxu0 %v121
  %v240 = vpop.f32.mrf.mxu0
  %v241 = vadd.f32 0.0, %v240
  %v242 = vpop.f32.mrf.mxu0
  %243 = vdwg.mxu0
  %v244 = vrot.slane %v228, 4
  %v245 = vadd.f32 %v228, %v244
  %v246 = vrot.slane %v245, 2
  %v247 = vadd.f32 %v245, %v246
  %v248 = vrot.slane %v247, 1
  %v249 = vadd.f32 %v247, %v248
  %v250 = vrot.slane %v241, 4
  %v251 = vadd.f32 %v241, %v250
  %v252 = vrot.slane %v251, 2
  %v253 = vadd.f32 %v251, %v252
  %v254 = vrot.slane %v253, 1
  %v255 = vadd.f32 %v253, %v254
  %v256 = vrcp.pop 8.0
  %v257 = vmul.f32 8.0, %v256
  %v258 = vsub.f32 1.0, %v257
  %v259 = vmul.f32 %v256, %v258
  %v260 = vadd.f32 %v256, %v259
  %vm261 = vweird.f32 %v256
  %v262 = vsel %vm261, %v256, %v260
  %v263 = vmul.f32 %v249, %v262
  %v264 = vmul.f32 %v255, %v262
  %v265 = vsub.f32 %v228, %v263
  %v266 = vsub.f32 %v241, %v264
  %v267 = vmul.f32 %v265, %v265
  %v268 = vmul.f32 %v266, %v266
  %v269 = vrot.slane %v267, 4
  %v270 = vadd.f32 %v267, %v269
  %v271 = vrot.slane %v270, 2
  %v272 = vadd.f32 %v270, %v271
  %v273 = vrot.slane %v272, 1
  %v274 = vadd.f32 %v272, %v273
  %v275 = vrot.slane %v268, 4
  %v276 = vadd.f32 %v268, %v275
  %v277 = vrot.slane %v276, 2
  %v278 = vadd.f32 %v276, %v277
  %v279 = vrot.slane %v278, 1
  %v280 = vadd.f32 %v278, %v279
  %v281 = vmul.f32 %v274, %v262
  %v282 = vmul.f32 %v280, %v262
  %v284 = vperm.slane %v44, 0
  %v285 = vperm.slane %v44, 1
  %v288 = vmul.f32 %v284, %v265
  %v289 = vmul.f32 %v285, %v266
  %v290 = vadd.f32 %v281, 1e-05
  %v291 = vadd.f32 %v282, 1e-05
  %v292 = vrsqrt.pop %v290
  %v293 = vmul.f32 %v292, %v290
  %v294 = vmul.f32 %v293, %v292
  %v295 = vmul.f32 0.5, %v294
  %v296 = vsub.f32 1.5, %v295
  %v297 = vmul.f32 %v292, %v296
  %vm298 = vweird.f32 %v290
  %vm299 = vweird.f32 %v292
  %vm300 = vmor %vm298, %vm299
  %v301 = vsel %vm300, %v292, %v297
  %v302 = vrsqrt.pop %v291
  %v303 = vmul.f32 %v302, %v291
  %v304 = vmul.f32 %v303, %v302
  %v305 = vmul.f32 0.5, %v304
  %v306 = vsub.f32 1.5, %v305
  %v307 = vmul.f32 %v302, %v306
  %vm308 = vweird.f32 %v291
  %vm309 = vweird.f32 %v302
  %vm310 = vmor %vm308, %vm309
  %v311 = vsel %vm310, %v302, %v307
  %v312 = vmul.f32 %v288, %v301
  %v313 = vmul.f32 %v289, %v311
  %v315 = vperm.slane %v45, 0
  %v316 = vperm.slane %v45, 1
  %v319 = vadd.f32 %v312, %v315
  %v320 = vadd.f32 %v313, %v316
  %vm321 = vcmp.ge.f32.partialorder %v319, 0.0
  %vm322 = vcmp.ge.f32.partialorder %v320, 0.0
  %v323 = vmul.f32 %v319, 0.2
  %v324 = vmul.f32 %v320, 0.2
  %v325 = vsel %vm321, %v319, %v323
  %v326 = vsel %vm322, %v320, %v324
  %v327 = vpack.c.bf16 %v325, %v325
  %v328 = vpack.c.bf16 %v326, %v326
  %v329 = vld [vmem:[%s5] sm:$0xff]
  %v330 = vld [vmem:[%s5 + $0x8] sm:$0xff]
  %v331 = vld [vmem:[%s5 + $0x10] sm:$0xff]
  %v332 = vld [vmem:[%s5 + $0x18] sm:$0xff]
  %v333 = vld [vmem:[%s5 + $0x20] sm:$0xff]
  %v334 = vld [vmem:[%s5 + $0x28] sm:$0xff]
  %v335 = vld [vmem:[%s5 + $0x30] sm:$0xff]
  %v336 = vld [vmem:[%s5 + $0x38] sm:$0xff]
  %v337 = vld [vmem:[%s5 + $0x40] sm:$0xff]
  %v338 = vld [vmem:[%s5 + $0x48] sm:$0xff]
  %v339 = vld [vmem:[%s5 + $0x50] sm:$0xff]
  %v340 = vld [vmem:[%s5 + $0x58] sm:$0xff]
  %v341 = vld [vmem:[%s5 + $0x60] sm:$0xff]
  %v342 = vld [vmem:[%s5 + $0x68] sm:$0xff]
  %v343 = vld [vmem:[%s5 + $0x70] sm:$0xff]
  %v344 = vld [vmem:[%s5 + $0x78] sm:$0xff]
  %v345 = vld [vmem:[%s5 + $0x80] sm:$0xff]
  %v346 = vld [vmem:[%s5 + $0x88] sm:$0xff]
  %v347 = vld [vmem:[%s5 + $0x90] sm:$0xff]
  %v348 = vld [vmem:[%s5 + $0x98] sm:$0xff]
  %v349 = vld [vmem:[%s5 + $0xa0] sm:$0xff]
  %v350 = vld [vmem:[%s5 + $0xa8] sm:$0xff]
  %v351 = vld [vmem:[%s5 + $0xb0] sm:$0xff]
  %v352 = vld [vmem:[%s5 + $0xb8] sm:$0xff]
  %v353 = vld [vmem:[%s5 + $0xc0] sm:$0xff]
  %v354 = vld [vmem:[%s5 + $0xc8] sm:$0xff]
  %v355 = vld [vmem:[%s5 + $0xd0] sm:$0xff]
  %v356 = vld [vmem:[%s5 + $0xd8] sm:$0xff]
  %v357 = vld [vmem:[%s5 + $0xe0] sm:$0xff]
  %v358 = vld [vmem:[%s5 + $0xe8] sm:$0xff]
  %v359 = vld [vmem:[%s5 + $0xf0] sm:$0xff]
  %v360 = vld [vmem:[%s5 + $0xf8] sm:$0xff]
  %v361 = vld [vmem:[%s5 + $0x100] sm:$0xff]
  %v362 = vld [vmem:[%s5 + $0x108] sm:$0xff]
  %v363 = vld [vmem:[%s5 + $0x110] sm:$0xff]
  %v364 = vld [vmem:[%s5 + $0x118] sm:$0xff]
  %v365 = vld [vmem:[%s5 + $0x120] sm:$0xff]
  %v366 = vld [vmem:[%s5 + $0x128] sm:$0xff]
  %v367 = vld [vmem:[%s5 + $0x130] sm:$0xff]
  %v368 = vld [vmem:[%s5 + $0x138] sm:$0xff]
  %v369 = vld [vmem:[%s5 + $0x140] sm:$0xff]
  %v370 = vld [vmem:[%s5 + $0x148] sm:$0xff]
  %v371 = vld [vmem:[%s5 + $0x150] sm:$0xff]
  %v372 = vld [vmem:[%s5 + $0x158] sm:$0xff]
  %v373 = vld [vmem:[%s5 + $0x160] sm:$0xff]
  %v374 = vld [vmem:[%s5 + $0x168] sm:$0xff]
  %v375 = vld [vmem:[%s5 + $0x170] sm:$0xff]
  %v376 = vld [vmem:[%s5 + $0x178] sm:$0xff]
  %v377 = vld [vmem:[%s5 + $0x180] sm:$0xff]
  %v378 = vld [vmem:[%s5 + $0x188] sm:$0xff]
  %v379 = vld [vmem:[%s5 + $0x190] sm:$0xff]
  %v380 = vld [vmem:[%s5 + $0x198] sm:$0xff]
  %v381 = vld [vmem:[%s5 + $0x1a0] sm:$0xff]
  %v382 = vld [vmem:[%s5 + $0x1a8] sm:$0xff]
  %v383 = vld [vmem:[%s5 + $0x1b0] sm:$0xff]
  %v384 = vld [vmem:[%s5 + $0x1b8] sm:$0xff]
  %v385 = vld [vmem:[%s5 + $0x1c0] sm:$0xff]
  %v386 = vld [vmem:[%s5 + $0x1c8] sm:$0xff]
  %v387 = vld [vmem:[%s5 + $0x1d0] sm:$0xff]
  %v388 = vld [vmem:[%s5 + $0x1d8] sm:$0xff]
  %v389 = vld [vmem:[%s5 + $0x1e0] sm:$0xff]
  %v390 = vld [vmem:[%s5 + $0x1e8] sm:$0xff]
  %v391 = vld [vmem:[%s5 + $0x1f0] sm:$0xff]
  %v392 = vld [vmem:[%s5 + $0x1f8] sm:$0xff]
  %v457 = vunpack.c.l.b16 %v329
  %v458 = vunpack.c.h.b16 %v329
  %v459 = vunpack.c.l.b16 %v330
  %v460 = vunpack.c.h.b16 %v330
  %v461 = vunpack.c.l.b16 %v331
  %v462 = vunpack.c.h.b16 %v331
  %v463 = vunpack.c.l.b16 %v332
  %v464 = vunpack.c.h.b16 %v332
  %v465 = vunpack.c.l.b16 %v333
  %v466 = vunpack.c.h.b16 %v333
  %v467 = vunpack.c.l.b16 %v334
  %v468 = vunpack.c.h.b16 %v334
  %v469 = vunpack.c.l.b16 %v335
  %v470 = vunpack.c.h.b16 %v335
  %v471 = vunpack.c.l.b16 %v336
  %v472 = vunpack.c.h.b16 %v336
  %v473 = vunpack.c.l.b16 %v337
  %v474 = vunpack.c.h.b16 %v337
  %v475 = vunpack.c.l.b16 %v338
  %v476 = vunpack.c.h.b16 %v338
  %v477 = vunpack.c.l.b16 %v339
  %v478 = vunpack.c.h.b16 %v339
  %v479 = vunpack.c.l.b16 %v340
  %v480 = vunpack.c.h.b16 %v340
  %v481 = vunpack.c.l.b16 %v341
  %v482 = vunpack.c.h.b16 %v341
  %v483 = vunpack.c.l.b16 %v342
  %v484 = vunpack.c.h.b16 %v342
  %v485 = vunpack.c.l.b16 %v343
  %v486 = vunpack.c.h.b16 %v343
  %v487 = vunpack.c.l.b16 %v344
  %v488 = vunpack.c.h.b16 %v344
  %v489 = vunpack.c.l.b16 %v345
  %v490 = vunpack.c.h.b16 %v345
  %v491 = vunpack.c.l.b16 %v346
  %v492 = vunpack.c.h.b16 %v346
  %v493 = vunpack.c.l.b16 %v347
  %v494 = vunpack.c.h.b16 %v347
  %v495 = vunpack.c.l.b16 %v348
  %v496 = vunpack.c.h.b16 %v348
  %v497 = vunpack.c.l.b16 %v349
  %v498 = vunpack.c.h.b16 %v349
  %v499 = vunpack.c.l.b16 %v350
  %v500 = vunpack.c.h.b16 %v350
  %v501 = vunpack.c.l.b16 %v351
  %v502 = vunpack.c.h.b16 %v351
  %v503 = vunpack.c.l.b16 %v352
  %v504 = vunpack.c.h.b16 %v352
  %v505 = vunpack.c.l.b16 %v353
  %v506 = vunpack.c.h.b16 %v353
  %v507 = vunpack.c.l.b16 %v354
  %v508 = vunpack.c.h.b16 %v354
  %v509 = vunpack.c.l.b16 %v355
  %v510 = vunpack.c.h.b16 %v355
  %v511 = vunpack.c.l.b16 %v356
  %v512 = vunpack.c.h.b16 %v356
  %v513 = vunpack.c.l.b16 %v357
  %v514 = vunpack.c.h.b16 %v357
  %v515 = vunpack.c.l.b16 %v358
  %v516 = vunpack.c.h.b16 %v358
  %v517 = vunpack.c.l.b16 %v359
  %v518 = vunpack.c.h.b16 %v359
  %v519 = vunpack.c.l.b16 %v360
  %v520 = vunpack.c.h.b16 %v360
  %v521 = vunpack.c.l.b16 %v361
  %v522 = vunpack.c.h.b16 %v361
  %v523 = vunpack.c.l.b16 %v362
  %v524 = vunpack.c.h.b16 %v362
  %v525 = vunpack.c.l.b16 %v363
  %v526 = vunpack.c.h.b16 %v363
  %v527 = vunpack.c.l.b16 %v364
  %v528 = vunpack.c.h.b16 %v364
  %v529 = vunpack.c.l.b16 %v365
  %v530 = vunpack.c.h.b16 %v365
  %v531 = vunpack.c.l.b16 %v366
  %v532 = vunpack.c.h.b16 %v366
  %v533 = vunpack.c.l.b16 %v367
  %v534 = vunpack.c.h.b16 %v367
  %v535 = vunpack.c.l.b16 %v368
  %v536 = vunpack.c.h.b16 %v368
  %v537 = vunpack.c.l.b16 %v369
  %v538 = vunpack.c.h.b16 %v369
  %v539 = vunpack.c.l.b16 %v370
  %v540 = vunpack.c.h.b16 %v370
  %v541 = vunpack.c.l.b16 %v371
  %v542 = vunpack.c.h.b16 %v371
  %v543 = vunpack.c.l.b16 %v372
  %v544 = vunpack.c.h.b16 %v372
  %v545 = vunpack.c.l.b16 %v373
  %v546 = vunpack.c.h.b16 %v373
  %v547 = vunpack.c.l.b16 %v374
  %v548 = vunpack.c.h.b16 %v374
  %v549 = vunpack.c.l.b16 %v375
  %v550 = vunpack.c.h.b16 %v375
  %v551 = vunpack.c.l.b16 %v376
  %v552 = vunpack.c.h.b16 %v376
  %v553 = vunpack.c.l.b16 %v377
  %v554 = vunpack.c.h.b16 %v377
  %v555 = vunpack.c.l.b16 %v378
  %v556 = vunpack.c.h.b16 %v378
  %v557 = vunpack.c.l.b16 %v379
  %v558 = vunpack.c.h.b16 %v379
  %v559 = vunpack.c.l.b16 %v380
  %v560 = vunpack.c.h.b16 %v380
  %v561 = vunpack.c.l.b16 %v381
  %v562 = vunpack.c.h.b16 %v381
  %v563 = vunpack.c.l.b16 %v382
  %v564 = vunpack.c.h.b16 %v382
  %v565 = vunpack.c.l.b16 %v383
  %v566 = vunpack.c.h.b16 %v383
  %v567 = vunpack.c.l.b16 %v384
  %v568 = vunpack.c.h.b16 %v384
  %v569 = vunpack.c.l.b16 %v385
  %v570 = vunpack.c.h.b16 %v385
  %v571 = vunpack.c.l.b16 %v386
  %v572 = vunpack.c.h.b16 %v386
  %v573 = vunpack.c.l.b16 %v387
  %v574 = vunpack.c.h.b16 %v387
  %v575 = vunpack.c.l.b16 %v388
  %v576 = vunpack.c.h.b16 %v388
  %v577 = vunpack.c.l.b16 %v389
  %v578 = vunpack.c.h.b16 %v389
  %v579 = vunpack.c.l.b16 %v390
  %v580 = vunpack.c.h.b16 %v390
  %v581 = vunpack.c.l.b16 %v391
  %v582 = vunpack.c.h.b16 %v391
  %v583 = vunpack.c.l.b16 %v392
  %v584 = vunpack.c.h.b16 %v392
  %v585 = vpack.c.b16 %v461, %v457
  %v586 = vpack.c.b16 %v462, %v458
  %v587 = vpack.c.b16 %v463, %v459
  %v588 = vpack.c.b16 %v464, %v460
  %v589 = vpack.c.b16 %v469, %v465
  %v590 = vpack.c.b16 %v470, %v466
  %v591 = vpack.c.b16 %v471, %v467
  %v592 = vpack.c.b16 %v472, %v468
  %v593 = vpack.c.b16 %v477, %v473
  %v594 = vpack.c.b16 %v478, %v474
  %v595 = vpack.c.b16 %v479, %v475
  %v596 = vpack.c.b16 %v480, %v476
  %v597 = vpack.c.b16 %v485, %v481
  %v598 = vpack.c.b16 %v486, %v482
  %v599 = vpack.c.b16 %v487, %v483
  %v600 = vpack.c.b16 %v488, %v484
  %v601 = vpack.c.b16 %v493, %v489
  %v602 = vpack.c.b16 %v494, %v490
  %v603 = vpack.c.b16 %v495, %v491
  %v604 = vpack.c.b16 %v496, %v492
  %v605 = vpack.c.b16 %v501, %v497
  %v606 = vpack.c.b16 %v502, %v498
  %v607 = vpack.c.b16 %v503, %v499
  %v608 = vpack.c.b16 %v504, %v500
  %v609 = vpack.c.b16 %v509, %v505
  %v610 = vpack.c.b16 %v510, %v506
  %v611 = vpack.c.b16 %v511, %v507
  %v612 = vpack.c.b16 %v512, %v508
  %v613 = vpack.c.b16 %v517, %v513
  %v614 = vpack.c.b16 %v518, %v514
  %v615 = vpack.c.b16 %v519, %v515
  %v616 = vpack.c.b16 %v520, %v516
  %v617 = vpack.c.b16 %v525, %v521
  %v618 = vpack.c.b16 %v526, %v522
  %v619 = vpack.c.b16 %v527, %v523
  %v620 = vpack.c.b16 %v528, %v524
  %v621 = vpack.c.b16 %v533, %v529
  %v622 = vpack.c.b16 %v534, %v530
  %v623 = vpack.c.b16 %v535, %v531
  %v624 = vpack.c.b16 %v536, %v532
  %v625 = vpack.c.b16 %v541, %v537
  %v626 = vpack.c.b16 %v542, %v538
  %v627 = vpack.c.b16 %v543, %v539
  %v628 = vpack.c.b16 %v544, %v540
  %v629 = vpack.c.b16 %v549, %v545
  %v630 = vpack.c.b16 %v550, %v546
  %v631 = vpack.c.b16 %v551, %v547
  %v632 = vpack.c.b16 %v552, %v548
  %v633 = vpack.c.b16 %v557, %v553
  %v634 = vpack.c.b16 %v558, %v554
  %v635 = vpack.c.b16 %v559, %v555
  %v636 = vpack.c.b16 %v560, %v556
  %v637 = vpack.c.b16 %v565, %v561
  %v638 = vpack.c.b16 %v566, %v562
  %v639 = vpack.c.b16 %v567, %v563
  %v640 = vpack.c.b16 %v568, %v564
  %v641 = vpack.c.b16 %v573, %v569
  %v642 = vpack.c.b16 %v574, %v570
  %v643 = vpack.c.b16 %v575, %v571
  %v644 = vpack.c.b16 %v576, %v572
  %v645 = vpack.c.b16 %v581, %v577
  %v646 = vpack.c.b16 %v582, %v578
  %v647 = vpack.c.b16 %v583, %v579
  %v648 = vpack.c.b16 %v584, %v580
  %713 = vmatpush.bf16.msra.mxu0 %v613
  %714 = vmatpush.bf16.msra.mxu0 %v609
  %715 = vmatpush.bf16.msra.mxu0 %v605
  %716 = vmatpush.bf16.msra.mxu0 %v601
  %717 = vmatpush.bf16.msra.mxu0 %v597
  %718 = vmatpush.bf16.msra.mxu0 %v593
  %719 = vmatpush.bf16.msra.mxu0 %v589
  %720 = vmatpush.bf16.msra.mxu0 %v585
  %721 = vmatmul.bf16.gmra.mxu0 %v327
  %v722 = vpop.f32.mrf.mxu0
  %v723 = vadd.f32 0.0, %v722
  %v724 = vpop.f32.mrf.mxu0
  %725 = vdwg.mxu0
  %726 = vmatpush.bf16.msra.mxu0 %v645
  %727 = vmatpush.bf16.msra.mxu0 %v641
  %728 = vmatpush.bf16.msra.mxu0 %v637
  %729 = vmatpush.bf16.msra.mxu0 %v633
  %730 = vmatpush.bf16.msra.mxu0 %v629
  %731 = vmatpush.bf16.msra.mxu0 %v625
  %732 = vmatpush.bf16.msra.mxu0 %v621
  %733 = vmatpush.bf16.msra.mxu0 %v617
  %734 = vmatmul.bf16.gmra.mxu0 %v328
  %v735 = vpop.f32.mrf.mxu0
  %v736 = vadd.f32 %v723, %v735
  %v737 = vpop.f32.mrf.mxu0
  %738 = vdwg.mxu0
  %739 = vmatpush.bf16.msra.mxu0 %v614
  %740 = vmatpush.bf16.msra.mxu0 %v610
  %741 = vmatpush.bf16.msra.mxu0 %v606
  %742 = vmatpush.bf16.msra.mxu0 %v602
  %743 = vmatpush.bf16.msra.mxu0 %v598
  %744 = vmatpush.bf16.msra.mxu0 %v594
  %745 = vmatpush.bf16.msra.mxu0 %v590
  %746 = vmatpush.bf16.msra.mxu0 %v586
  %747 = vmatmul.bf16.gmra.mxu0 %v327
  %v748 = vpop.f32.mrf.mxu0
  %v749 = vadd.f32 0.0, %v748
  %v750 = vpop.f32.mrf.mxu0
  %751 = vdwg.mxu0
  %752 = vmatpush.bf16.msra.mxu0 %v646
  %753 = vmatpush.bf16.msra.mxu0 %v642
  %754 = vmatpush.bf16.msra.mxu0 %v638
  %755 = vmatpush.bf16.msra.mxu0 %v634
  %756 = vmatpush.bf16.msra.mxu0 %v630
  %757 = vmatpush.bf16.msra.mxu0 %v626
  %758 = vmatpush.bf16.msra.mxu0 %v622
  %759 = vmatpush.bf16.msra.mxu0 %v618
  %760 = vmatmul.bf16.gmra.mxu0 %v328
  %v761 = vpop.f32.mrf.mxu0
  %v762 = vadd.f32 %v749, %v761
  %v763 = vpop.f32.mrf.mxu0
  %764 = vdwg.mxu0
  %765 = vmatpush.bf16.msra.mxu0 %v615
  %766 = vmatpush.bf16.msra.mxu0 %v611
  %767 = vmatpush.bf16.msra.mxu0 %v607
  %768 = vmatpush.bf16.msra.mxu0 %v603
  %769 = vmatpush.bf16.msra.mxu0 %v599
  %770 = vmatpush.bf16.msra.mxu0 %v595
  %771 = vmatpush.bf16.msra.mxu0 %v591
  %772 = vmatpush.bf16.msra.mxu0 %v587
  %773 = vmatmul.bf16.gmra.mxu0 %v327
  %v774 = vpop.f32.mrf.mxu0
  %v775 = vadd.f32 0.0, %v774
  %v776 = vpop.f32.mrf.mxu0
  %777 = vdwg.mxu0
  %778 = vmatpush.bf16.msra.mxu0 %v647
  %779 = vmatpush.bf16.msra.mxu0 %v643
  %780 = vmatpush.bf16.msra.mxu0 %v639
  %781 = vmatpush.bf16.msra.mxu0 %v635
  %782 = vmatpush.bf16.msra.mxu0 %v631
  %783 = vmatpush.bf16.msra.mxu0 %v627
  %784 = vmatpush.bf16.msra.mxu0 %v623
  %785 = vmatpush.bf16.msra.mxu0 %v619
  %786 = vmatmul.bf16.gmra.mxu0 %v328
  %v787 = vpop.f32.mrf.mxu0
  %v788 = vadd.f32 %v775, %v787
  %v789 = vpop.f32.mrf.mxu0
  %790 = vdwg.mxu0
  %791 = vmatpush.bf16.msra.mxu0 %v616
  %792 = vmatpush.bf16.msra.mxu0 %v612
  %793 = vmatpush.bf16.msra.mxu0 %v608
  %794 = vmatpush.bf16.msra.mxu0 %v604
  %795 = vmatpush.bf16.msra.mxu0 %v600
  %796 = vmatpush.bf16.msra.mxu0 %v596
  %797 = vmatpush.bf16.msra.mxu0 %v592
  %798 = vmatpush.bf16.msra.mxu0 %v588
  %799 = vmatmul.bf16.gmra.mxu0 %v327
  %v800 = vpop.f32.mrf.mxu0
  %v801 = vadd.f32 0.0, %v800
  %v802 = vpop.f32.mrf.mxu0
  %803 = vdwg.mxu0
  %804 = vmatpush.bf16.msra.mxu0 %v648
  %805 = vmatpush.bf16.msra.mxu0 %v644
  %806 = vmatpush.bf16.msra.mxu0 %v640
  %807 = vmatpush.bf16.msra.mxu0 %v636
  %808 = vmatpush.bf16.msra.mxu0 %v632
  %809 = vmatpush.bf16.msra.mxu0 %v628
  %810 = vmatpush.bf16.msra.mxu0 %v624
  %811 = vmatpush.bf16.msra.mxu0 %v620
  %812 = vmatmul.bf16.gmra.mxu0 %v328
  %v813 = vpop.f32.mrf.mxu0
  %v814 = vadd.f32 %v801, %v813
  %v815 = vpop.f32.mrf.mxu0
  %816 = vdwg.mxu0
  %v817 = vrot.slane %v736, 4
  %v818 = vadd.f32 %v736, %v817
  %v819 = vrot.slane %v818, 2
  %v820 = vadd.f32 %v818, %v819
  %v821 = vrot.slane %v820, 1
  %v822 = vadd.f32 %v820, %v821
  %v823 = vrot.slane %v762, 4
  %v824 = vadd.f32 %v762, %v823
  %v825 = vrot.slane %v824, 2
  %v826 = vadd.f32 %v824, %v825
  %v827 = vrot.slane %v826, 1
  %v828 = vadd.f32 %v826, %v827
  %v829 = vrot.slane %v788, 4
  %v830 = vadd.f32 %v788, %v829
  %v831 = vrot.slane %v830, 2
  %v832 = vadd.f32 %v830, %v831
  %v833 = vrot.slane %v832, 1
  %v834 = vadd.f32 %v832, %v833
  %v835 = vrot.slane %v814, 4
  %v836 = vadd.f32 %v814, %v835
  %v837 = vrot.slane %v836, 2
  %v838 = vadd.f32 %v836, %v837
  %v839 = vrot.slane %v838, 1
  %v840 = vadd.f32 %v838, %v839
  %v841 = vmul.f32 %v822, %v262
  %v842 = vmul.f32 %v828, %v262
  %v843 = vmul.f32 %v834, %v262
  %v844 = vmul.f32 %v840, %v262
  %v845 = vsub.f32 %v736, %v841
  %v846 = vsub.f32 %v762, %v842
  %v847 = vsub.f32 %v788, %v843
  %v848 = vsub.f32 %v814, %v844
  %v849 = vmul.f32 %v845, %v845
  %v850 = vmul.f32 %v846, %v846
  %v851 = vmul.f32 %v847, %v847
  %v852 = vmul.f32 %v848, %v848
  %v853 = vrot.slane %v849, 4
  %v854 = vadd.f32 %v849, %v853
  %v855 = vrot.slane %v854, 2
  %v856 = vadd.f32 %v854, %v855
  %v857 = vrot.slane %v856, 1
  %v858 = vadd.f32 %v856, %v857
  %v859 = vrot.slane %v850, 4
  %v860 = vadd.f32 %v850, %v859
  %v861 = vrot.slane %v860, 2
  %v862 = vadd.f32 %v860, %v861
  %v863 = vrot.slane %v862, 1
  %v864 = vadd.f32 %v862, %v863
  %v865 = vrot.slane %v851, 4
  %v866 = vadd.f32 %v851, %v865
  %v867 = vrot.slane %v866, 2
  %v868 = vadd.f32 %v866, %v867
  %v869 = vrot.slane %v868, 1
  %v870 = vadd.f32 %v868, %v869
  %v871 = vrot.slane %v852, 4
  %v872 = vadd.f32 %v852, %v871
  %v873 = vrot.slane %v872, 2
  %v874 = vadd.f32 %v872, %v873
  %v875 = vrot.slane %v874, 1
  %v876 = vadd.f32 %v874, %v875
  %v877 = vmul.f32 %v858, %v262
  %v878 = vmul.f32 %v864, %v262
  %v879 = vmul.f32 %v870, %v262
  %v880 = vmul.f32 %v876, %v262
  %v882 = vperm.slane %v46, 0
  %v883 = vperm.slane %v46, 1
  %v884 = vperm.slane %v46, 2
  %v885 = vperm.slane %v46, 3
  %v890 = vmul.f32 %v882, %v845
  %v891 = vmul.f32 %v883, %v846
  %v892 = vmul.f32 %v884, %v847
  %v893 = vmul.f32 %v885, %v848
  %v894 = vadd.f32 %v877, 1e-05
  %v895 = vadd.f32 %v878, 1e-05
  %v896 = vadd.f32 %v879, 1e-05
  %v897 = vadd.f32 %v880, 1e-05
  %v898 = vrsqrt.pop %v894
  %v899 = vmul.f32 %v898, %v894
  %v900 = vmul.f32 %v899, %v898
  %v901 = vmul.f32 0.5, %v900
  %v902 = vsub.f32 1.5, %v901
  %v903 = vmul.f32 %v898, %v902
  %vm904 = vweird.f32 %v894
  %vm905 = vweird.f32 %v898
  %vm906 = vmor %vm904, %vm905
  %v907 = vsel %vm906, %v898, %v903
  %v908 = vrsqrt.pop %v895
  %v909 = vmul.f32 %v908, %v895
  %v910 = vmul.f32 %v909, %v908
  %v911 = vmul.f32 0.5, %v910
  %v912 = vsub.f32 1.5, %v911
  %v913 = vmul.f32 %v908, %v912
  %vm914 = vweird.f32 %v895
  %vm915 = vweird.f32 %v908
  %vm916 = vmor %vm914, %vm915
  %v917 = vsel %vm916, %v908, %v913
  %v918 = vrsqrt.pop %v896
  %v919 = vmul.f32 %v918, %v896
  %v920 = vmul.f32 %v919, %v918
  %v921 = vmul.f32 0.5, %v920
  %v922 = vsub.f32 1.5, %v921
  %v923 = vmul.f32 %v918, %v922
  %vm924 = vweird.f32 %v896
  %vm925 = vweird.f32 %v918
  %vm926 = vmor %vm924, %vm925
  %v927 = vsel %vm926, %v918, %v923
  %v928 = vrsqrt.pop %v897
  %v929 = vmul.f32 %v928, %v897
  %v930 = vmul.f32 %v929, %v928
  %v931 = vmul.f32 0.5, %v930
  %v932 = vsub.f32 1.5, %v931
  %v933 = vmul.f32 %v928, %v932
  %vm934 = vweird.f32 %v897
  %vm935 = vweird.f32 %v928
  %vm936 = vmor %vm934, %vm935
  %v937 = vsel %vm936, %v928, %v933
  %v938 = vmul.f32 %v890, %v907
  %v939 = vmul.f32 %v891, %v917
  %v940 = vmul.f32 %v892, %v927
  %v941 = vmul.f32 %v893, %v937
  %v943 = vperm.slane %v47, 0
  %v944 = vperm.slane %v47, 1
  %v945 = vperm.slane %v47, 2
  %v946 = vperm.slane %v47, 3
  %v951 = vadd.f32 %v938, %v943
  %v952 = vadd.f32 %v939, %v944
  %v953 = vadd.f32 %v940, %v945
  %v954 = vadd.f32 %v941, %v946
  %vm955 = vcmp.ge.f32.partialorder %v951, 0.0
  %vm956 = vcmp.ge.f32.partialorder %v952, 0.0
  %vm957 = vcmp.ge.f32.partialorder %v953, 0.0
  %vm958 = vcmp.ge.f32.partialorder %v954, 0.0
  %v959 = vmul.f32 %v951, 0.2
  %v960 = vmul.f32 %v952, 0.2
  %v961 = vmul.f32 %v953, 0.2
  %v962 = vmul.f32 %v954, 0.2
  %v963 = vsel %vm955, %v951, %v959
  %v964 = vsel %vm956, %v952, %v960
  %v965 = vsel %vm957, %v953, %v961
  %v966 = vsel %vm958, %v954, %v962
  %v967 = vpack.c.bf16 %v963, %v963
  %v968 = vpack.c.bf16 %v964, %v964
  %v969 = vpack.c.bf16 %v965, %v965
  %v970 = vpack.c.bf16 %v966, %v966
  %v971 = vld [vmem:[%s6] sm:$0xff]
  %v972 = vld [vmem:[%s6 + $0x8] sm:$0xff]
  %v973 = vld [vmem:[%s6 + $0x10] sm:$0xff]
  %v974 = vld [vmem:[%s6 + $0x18] sm:$0xff]
  %v975 = vld [vmem:[%s6 + $0x20] sm:$0xff]
  %v976 = vld [vmem:[%s6 + $0x28] sm:$0xff]
  %v977 = vld [vmem:[%s6 + $0x30] sm:$0xff]
  %v978 = vld [vmem:[%s6 + $0x38] sm:$0xff]
  %v979 = vld [vmem:[%s6 + $0x40] sm:$0xff]
  %v980 = vld [vmem:[%s6 + $0x48] sm:$0xff]
  %v981 = vld [vmem:[%s6 + $0x50] sm:$0xff]
  %v982 = vld [vmem:[%s6 + $0x58] sm:$0xff]
  %v983 = vld [vmem:[%s6 + $0x60] sm:$0xff]
  %v984 = vld [vmem:[%s6 + $0x68] sm:$0xff]
  %v985 = vld [vmem:[%s6 + $0x70] sm:$0xff]
  %v986 = vld [vmem:[%s6 + $0x78] sm:$0xff]
  %v987 = vld [vmem:[%s6 + $0x80] sm:$0xff]
  %v988 = vld [vmem:[%s6 + $0x88] sm:$0xff]
  %v989 = vld [vmem:[%s6 + $0x90] sm:$0xff]
  %v990 = vld [vmem:[%s6 + $0x98] sm:$0xff]
  %v991 = vld [vmem:[%s6 + $0xa0] sm:$0xff]
  %v992 = vld [vmem:[%s6 + $0xa8] sm:$0xff]
  %v993 = vld [vmem:[%s6 + $0xb0] sm:$0xff]
  %v994 = vld [vmem:[%s6 + $0xb8] sm:$0xff]
  %v995 = vld [vmem:[%s6 + $0xc0] sm:$0xff]
  %v996 = vld [vmem:[%s6 + $0xc8] sm:$0xff]
  %v997 = vld [vmem:[%s6 + $0xd0] sm:$0xff]
  %v998 = vld [vmem:[%s6 + $0xd8] sm:$0xff]
  %v999 = vld [vmem:[%s6 + $0xe0] sm:$0xff]
  %v1000 = vld [vmem:[%s6 + $0xe8] sm:$0xff]
  %v1001 = vld [vmem:[%s6 + $0xf0] sm:$0xff]
  %v1002 = vld [vmem:[%s6 + $0xf8] sm:$0xff]
  %v1003 = vld [vmem:[%s6 + $0x100] sm:$0xff]
  %v1004 = vld [vmem:[%s6 + $0x108] sm:$0xff]
  %v1005 = vld [vmem:[%s6 + $0x110] sm:$0xff]
  %v1006 = vld [vmem:[%s6 + $0x118] sm:$0xff]
  %v1007 = vld [vmem:[%s6 + $0x120] sm:$0xff]
  %v1008 = vld [vmem:[%s6 + $0x128] sm:$0xff]
  %v1009 = vld [vmem:[%s6 + $0x130] sm:$0xff]
  %v1010 = vld [vmem:[%s6 + $0x138] sm:$0xff]
  %v1011 = vld [vmem:[%s6 + $0x140] sm:$0xff]
  %v1012 = vld [vmem:[%s6 + $0x148] sm:$0xff]
  %v1013 = vld [vmem:[%s6 + $0x150] sm:$0xff]
  %v1014 = vld [vmem:[%s6 + $0x158] sm:$0xff]
  %v1015 = vld [vmem:[%s6 + $0x160] sm:$0xff]
  %v1016 = vld [vmem:[%s6 + $0x168] sm:$0xff]
  %v1017 = vld [vmem:[%s6 + $0x170] sm:$0xff]
  %v1018 = vld [vmem:[%s6 + $0x178] sm:$0xff]
  %v1019 = vld [vmem:[%s6 + $0x180] sm:$0xff]
  %v1020 = vld [vmem:[%s6 + $0x188] sm:$0xff]
  %v1021 = vld [vmem:[%s6 + $0x190] sm:$0xff]
  %v1022 = vld [vmem:[%s6 + $0x198] sm:$0xff]
  %v1023 = vld [vmem:[%s6 + $0x1a0] sm:$0xff]
  %v1024 = vld [vmem:[%s6 + $0x1a8] sm:$0xff]
  %v1025 = vld [vmem:[%s6 + $0x1b0] sm:$0xff]
  %v1026 = vld [vmem:[%s6 + $0x1b8] sm:$0xff]
  %v1027 = vld [vmem:[%s6 + $0x1c0] sm:$0xff]
  %v1028 = vld [vmem:[%s6 + $0x1c8] sm:$0xff]
  %v1029 = vld [vmem:[%s6 + $0x1d0] sm:$0xff]
  %v1030 = vld [vmem:[%s6 + $0x1d8] sm:$0xff]
  %v1031 = vld [vmem:[%s6 + $0x1e0] sm:$0xff]
  %v1032 = vld [vmem:[%s6 + $0x1e8] sm:$0xff]
  %v1033 = vld [vmem:[%s6 + $0x1f0] sm:$0xff]
  %v1034 = vld [vmem:[%s6 + $0x1f8] sm:$0xff]
  %v1035 = vld [vmem:[%s6 + $0x200] sm:$0xff]
  %v1036 = vld [vmem:[%s6 + $0x208] sm:$0xff]
  %v1037 = vld [vmem:[%s6 + $0x210] sm:$0xff]
  %v1038 = vld [vmem:[%s6 + $0x218] sm:$0xff]
  %v1039 = vld [vmem:[%s6 + $0x220] sm:$0xff]
  %v1040 = vld [vmem:[%s6 + $0x228] sm:$0xff]
  %v1041 = vld [vmem:[%s6 + $0x230] sm:$0xff]
  %v1042 = vld [vmem:[%s6 + $0x238] sm:$0xff]
  %v1043 = vld [vmem:[%s6 + $0x240] sm:$0xff]
  %v1044 = vld [vmem:[%s6 + $0x248] sm:$0xff]
  %v1045 = vld [vmem:[%s6 + $0x250] sm:$0xff]
  %v1046 = vld [vmem:[%s6 + $0x258] sm:$0xff]
  %v1047 = vld [vmem:[%s6 + $0x260] sm:$0xff]
  %v1048 = vld [vmem:[%s6 + $0x268] sm:$0xff]
  %v1049 = vld [vmem:[%s6 + $0x270] sm:$0xff]
  %v1050 = vld [vmem:[%s6 + $0x278] sm:$0xff]
  %v1051 = vld [vmem:[%s6 + $0x280] sm:$0xff]
  %v1052 = vld [vmem:[%s6 + $0x288] sm:$0xff]
  %v1053 = vld [vmem:[%s6 + $0x290] sm:$0xff]
  %v1054 = vld [vmem:[%s6 + $0x298] sm:$0xff]
  %v1055 = vld [vmem:[%s6 + $0x2a0] sm:$0xff]
  %v1056 = vld [vmem:[%s6 + $0x2a8] sm:$0xff]
  %v1057 = vld [vmem:[%s6 + $0x2b0] sm:$0xff]
  %v1058 = vld [vmem:[%s6 + $0x2b8] sm:$0xff]
  %v1059 = vld [vmem:[%s6 + $0x2c0] sm:$0xff]
  %v1060 = vld [vmem:[%s6 + $0x2c8] sm:$0xff]
  %v1061 = vld [vmem:[%s6 + $0x2d0] sm:$0xff]
  %v1062 = vld [vmem:[%s6 + $0x2d8] sm:$0xff]
  %v1063 = vld [vmem:[%s6 + $0x2e0] sm:$0xff]
  %v1064 = vld [vmem:[%s6 + $0x2e8] sm:$0xff]
  %v1065 = vld [vmem:[%s6 + $0x2f0] sm:$0xff]
  %v1066 = vld [vmem:[%s6 + $0x2f8] sm:$0xff]
  %v1067 = vld [vmem:[%s6 + $0x300] sm:$0xff]
  %v1068 = vld [vmem:[%s6 + $0x308] sm:$0xff]
  %v1069 = vld [vmem:[%s6 + $0x310] sm:$0xff]
  %v1070 = vld [vmem:[%s6 + $0x318] sm:$0xff]
  %v1071 = vld [vmem:[%s6 + $0x320] sm:$0xff]
  %v1072 = vld [vmem:[%s6 + $0x328] sm:$0xff]
  %v1073 = vld [vmem:[%s6 + $0x330] sm:$0xff]
  %v1074 = vld [vmem:[%s6 + $0x338] sm:$0xff]
  %v1075 = vld [vmem:[%s6 + $0x340] sm:$0xff]
  %v1076 = vld [vmem:[%s6 + $0x348] sm:$0xff]
  %v1077 = vld [vmem:[%s6 + $0x350] sm:$0xff]
  %v1078 = vld [vmem:[%s6 + $0x358] sm:$0xff]
  %v1079 = vld [vmem:[%s6 + $0x360] sm:$0xff]
  %v1080 = vld [vmem:[%s6 + $0x368] sm:$0xff]
  %v1081 = vld [vmem:[%s6 + $0x370] sm:$0xff]
  %v1082 = vld [vmem:[%s6 + $0x378] sm:$0xff]
  %v1083 = vld [vmem:[%s6 + $0x380] sm:$0xff]
  %v1084 = vld [vmem:[%s6 + $0x388] sm:$0xff]
  %v1085 = vld [vmem:[%s6 + $0x390] sm:$0xff]
  %v1086 = vld [vmem:[%s6 + $0x398] sm:$0xff]
  %v1087 = vld [vmem:[%s6 + $0x3a0] sm:$0xff]
  %v1088 = vld [vmem:[%s6 + $0x3a8] sm:$0xff]
  %v1089 = vld [vmem:[%s6 + $0x3b0] sm:$0xff]
  %v1090 = vld [vmem:[%s6 + $0x3b8] sm:$0xff]
  %v1091 = vld [vmem:[%s6 + $0x3c0] sm:$0xff]
  %v1092 = vld [vmem:[%s6 + $0x3c8] sm:$0xff]
  %v1093 = vld [vmem:[%s6 + $0x3d0] sm:$0xff]
  %v1094 = vld [vmem:[%s6 + $0x3d8] sm:$0xff]
  %v1095 = vld [vmem:[%s6 + $0x3e0] sm:$0xff]
  %v1096 = vld [vmem:[%s6 + $0x3e8] sm:$0xff]
  %v1097 = vld [vmem:[%s6 + $0x3f0] sm:$0xff]
  %v1098 = vld [vmem:[%s6 + $0x3f8] sm:$0xff]
  %v1099 = vld [vmem:[%s6 + $0x400] sm:$0xff]
  %v1100 = vld [vmem:[%s6 + $0x408] sm:$0xff]
  %v1101 = vld [vmem:[%s6 + $0x410] sm:$0xff]
  %v1102 = vld [vmem:[%s6 + $0x418] sm:$0xff]
  %v1103 = vld [vmem:[%s6 + $0x420] sm:$0xff]
  %v1104 = vld [vmem:[%s6 + $0x428] sm:$0xff]
  %v1105 = vld [vmem:[%s6 + $0x430] sm:$0xff]
  %v1106 = vld [vmem:[%s6 + $0x438] sm:$0xff]
  %v1107 = vld [vmem:[%s6 + $0x440] sm:$0xff]
  %v1108 = vld [vmem:[%s6 + $0x448] sm:$0xff]
  %v1109 = vld [vmem:[%s6 + $0x450] sm:$0xff]
  %v1110 = vld [vmem:[%s6 + $0x458] sm:$0xff]
  %v1111 = vld [vmem:[%s6 + $0x460] sm:$0xff]
  %v1112 = vld [vmem:[%s6 + $0x468] sm:$0xff]
  %v1113 = vld [vmem:[%s6 + $0x470] sm:$0xff]
  %v1114 = vld [vmem:[%s6 + $0x478] sm:$0xff]
  %v1115 = vld [vmem:[%s6 + $0x480] sm:$0xff]
  %v1116 = vld [vmem:[%s6 + $0x488] sm:$0xff]
  %v1117 = vld [vmem:[%s6 + $0x490] sm:$0xff]
  %v1118 = vld [vmem:[%s6 + $0x498] sm:$0xff]
  %v1119 = vld [vmem:[%s6 + $0x4a0] sm:$0xff]
  %v1120 = vld [vmem:[%s6 + $0x4a8] sm:$0xff]
  %v1121 = vld [vmem:[%s6 + $0x4b0] sm:$0xff]
  %v1122 = vld [vmem:[%s6 + $0x4b8] sm:$0xff]
  %v1123 = vld [vmem:[%s6 + $0x4c0] sm:$0xff]
  %v1124 = vld [vmem:[%s6 + $0x4c8] sm:$0xff]
  %v1125 = vld [vmem:[%s6 + $0x4d0] sm:$0xff]
  %v1126 = vld [vmem:[%s6 + $0x4d8] sm:$0xff]
  %v1127 = vld [vmem:[%s6 + $0x4e0] sm:$0xff]
  %v1128 = vld [vmem:[%s6 + $0x4e8] sm:$0xff]
  %v1129 = vld [vmem:[%s6 + $0x4f0] sm:$0xff]
  %v1130 = vld [vmem:[%s6 + $0x4f8] sm:$0xff]
  %v1131 = vld [vmem:[%s6 + $0x500] sm:$0xff]
  %v1132 = vld [vmem:[%s6 + $0x508] sm:$0xff]
  %v1133 = vld [vmem:[%s6 + $0x510] sm:$0xff]
  %v1134 = vld [vmem:[%s6 + $0x518] sm:$0xff]
  %v1135 = vld [vmem:[%s6 + $0x520] sm:$0xff]
  %v1136 = vld [vmem:[%s6 + $0x528] sm:$0xff]
  %v1137 = vld [vmem:[%s6 + $0x530] sm:$0xff]
  %v1138 = vld [vmem:[%s6 + $0x538] sm:$0xff]
  %v1139 = vld [vmem:[%s6 + $0x540] sm:$0xff]
  %v1140 = vld [vmem:[%s6 + $0x548] sm:$0xff]
  %v1141 = vld [vmem:[%s6 + $0x550] sm:$0xff]
  %v1142 = vld [vmem:[%s6 + $0x558] sm:$0xff]
  %v1143 = vld [vmem:[%s6 + $0x560] sm:$0xff]
  %v1144 = vld [vmem:[%s6 + $0x568] sm:$0xff]
  %v1145 = vld [vmem:[%s6 + $0x570] sm:$0xff]
  %v1146 = vld [vmem:[%s6 + $0x578] sm:$0xff]
  %v1147 = vld [vmem:[%s6 + $0x580] sm:$0xff]
  %v1148 = vld [vmem:[%s6 + $0x588] sm:$0xff]
  %v1149 = vld [vmem:[%s6 + $0x590] sm:$0xff]
  %v1150 = vld [vmem:[%s6 + $0x598] sm:$0xff]
  %v1151 = vld [vmem:[%s6 + $0x5a0] sm:$0xff]
  %v1152 = vld [vmem:[%s6 + $0x5a8] sm:$0xff]
  %v1153 = vld [vmem:[%s6 + $0x5b0] sm:$0xff]
  %v1154 = vld [vmem:[%s6 + $0x5b8] sm:$0xff]
  %v1155 = vld [vmem:[%s6 + $0x5c0] sm:$0xff]
  %v1156 = vld [vmem:[%s6 + $0x5c8] sm:$0xff]
  %v1157 = vld [vmem:[%s6 + $0x5d0] sm:$0xff]
  %v1158 = vld [vmem:[%s6 + $0x5d8] sm:$0xff]
  %v1159 = vld [vmem:[%s6 + $0x5e0] sm:$0xff]
  %v1160 = vld [vmem:[%s6 + $0x5e8] sm:$0xff]
  %v1161 = vld [vmem:[%s6 + $0x5f0] sm:$0xff]
  %v1162 = vld [vmem:[%s6 + $0x5f8] sm:$0xff]
  %v1163 = vld [vmem:[%s6 + $0x600] sm:$0xff]
  %v1164 = vld [vmem:[%s6 + $0x608] sm:$0xff]
  %v1165 = vld [vmem:[%s6 + $0x610] sm:$0xff]
  %v1166 = vld [vmem:[%s6 + $0x618] sm:$0xff]
  %v1167 = vld [vmem:[%s6 + $0x620] sm:$0xff]
  %v1168 = vld [vmem:[%s6 + $0x628] sm:$0xff]
  %v1169 = vld [vmem:[%s6 + $0x630] sm:$0xff]
  %v1170 = vld [vmem:[%s6 + $0x638] sm:$0xff]
  %v1171 = vld [vmem:[%s6 + $0x640] sm:$0xff]
  %v1172 = vld [vmem:[%s6 + $0x648] sm:$0xff]
  %v1173 = vld [vmem:[%s6 + $0x650] sm:$0xff]
  %v1174 = vld [vmem:[%s6 + $0x658] sm:$0xff]
  %v1175 = vld [vmem:[%s6 + $0x660] sm:$0xff]
  %v1176 = vld [vmem:[%s6 + $0x668] sm:$0xff]
  %v1177 = vld [vmem:[%s6 + $0x670] sm:$0xff]
  %v1178 = vld [vmem:[%s6 + $0x678] sm:$0xff]
  %v1179 = vld [vmem:[%s6 + $0x680] sm:$0xff]
  %v1180 = vld [vmem:[%s6 + $0x688] sm:$0xff]
  %v1181 = vld [vmem:[%s6 + $0x690] sm:$0xff]
  %v1182 = vld [vmem:[%s6 + $0x698] sm:$0xff]
  %v1183 = vld [vmem:[%s6 + $0x6a0] sm:$0xff]
  %v1184 = vld [vmem:[%s6 + $0x6a8] sm:$0xff]
  %v1185 = vld [vmem:[%s6 + $0x6b0] sm:$0xff]
  %v1186 = vld [vmem:[%s6 + $0x6b8] sm:$0xff]
  %v1187 = vld [vmem:[%s6 + $0x6c0] sm:$0xff]
  %v1188 = vld [vmem:[%s6 + $0x6c8] sm:$0xff]
  %v1189 = vld [vmem:[%s6 + $0x6d0] sm:$0xff]
  %v1190 = vld [vmem:[%s6 + $0x6d8] sm:$0xff]
  %v1191 = vld [vmem:[%s6 + $0x6e0] sm:$0xff]
  %v1192 = vld [vmem:[%s6 + $0x6e8] sm:$0xff]
  %v1193 = vld [vmem:[%s6 + $0x6f0] sm:$0xff]
  %v1194 = vld [vmem:[%s6 + $0x6f8] sm:$0xff]
  %v1195 = vld [vmem:[%s6 + $0x700] sm:$0xff]
  %v1196 = vld [vmem:[%s6 + $0x708] sm:$0xff]
  %v1197 = vld [vmem:[%s6 + $0x710] sm:$0xff]
  %v1198 = vld [vmem:[%s6 + $0x718] sm:$0xff]
  %v1199 = vld [vmem:[%s6 + $0x720] sm:$0xff]
  %v1200 = vld [vmem:[%s6 + $0x728] sm:$0xff]
  %v1201 = vld [vmem:[%s6 + $0x730] sm:$0xff]
  %v1202 = vld [vmem:[%s6 + $0x738] sm:$0xff]
  %v1203 = vld [vmem:[%s6 + $0x740] sm:$0xff]
  %v1204 = vld [vmem:[%s6 + $0x748] sm:$0xff]
  %v1205 = vld [vmem:[%s6 + $0x750] sm:$0xff]
  %v1206 = vld [vmem:[%s6 + $0x758] sm:$0xff]
  %v1207 = vld [vmem:[%s6 + $0x760] sm:$0xff]
  %v1208 = vld [vmem:[%s6 + $0x768] sm:$0xff]
  %v1209 = vld [vmem:[%s6 + $0x770] sm:$0xff]
  %v1210 = vld [vmem:[%s6 + $0x778] sm:$0xff]
  %v1211 = vld [vmem:[%s6 + $0x780] sm:$0xff]
  %v1212 = vld [vmem:[%s6 + $0x788] sm:$0xff]
  %v1213 = vld [vmem:[%s6 + $0x790] sm:$0xff]
  %v1214 = vld [vmem:[%s6 + $0x798] sm:$0xff]
  %v1215 = vld [vmem:[%s6 + $0x7a0] sm:$0xff]
  %v1216 = vld [vmem:[%s6 + $0x7a8] sm:$0xff]
  %v1217 = vld [vmem:[%s6 + $0x7b0] sm:$0xff]
  %v1218 = vld [vmem:[%s6 + $0x7b8] sm:$0xff]
  %v1219 = vld [vmem:[%s6 + $0x7c0] sm:$0xff]
  %v1220 = vld [vmem:[%s6 + $0x7c8] sm:$0xff]
  %v1221 = vld [vmem:[%s6 + $0x7d0] sm:$0xff]
  %v1222 = vld [vmem:[%s6 + $0x7d8] sm:$0xff]
  %v1223 = vld [vmem:[%s6 + $0x7e0] sm:$0xff]
  %v1224 = vld [vmem:[%s6 + $0x7e8] sm:$0xff]
  %v1225 = vld [vmem:[%s6 + $0x7f0] sm:$0xff]
  %v1226 = vld [vmem:[%s6 + $0x7f8] sm:$0xff]
  %v1483 = vunpack.c.l.b16 %v971
  %v1484 = vunpack.c.h.b16 %v971
  %v1485 = vunpack.c.l.b16 %v972
  %v1486 = vunpack.c.h.b16 %v972
  %v1487 = vunpack.c.l.b16 %v973
  %v1488 = vunpack.c.h.b16 %v973
  %v1489 = vunpack.c.l.b16 %v974
  %v1490 = vunpack.c.h.b16 %v974
  %v1491 = vunpack.c.l.b16 %v975
  %v1492 = vunpack.c.h.b16 %v975
  %v1493 = vunpack.c.l.b16 %v976
  %v1494 = vunpack.c.h.b16 %v976
  %v1495 = vunpack.c.l.b16 %v977
  %v1496 = vunpack.c.h.b16 %v977
  %v1497 = vunpack.c.l.b16 %v978
  %v1498 = vunpack.c.h.b16 %v978
  %v1499 = vunpack.c.l.b16 %v979
  %v1500 = vunpack.c.h.b16 %v979
  %v1501 = vunpack.c.l.b16 %v980
  %v1502 = vunpack.c.h.b16 %v980
  %v1503 = vunpack.c.l.b16 %v981
  %v1504 = vunpack.c.h.b16 %v981
  %v1505 = vunpack.c.l.b16 %v982
  %v1506 = vunpack.c.h.b16 %v982
  %v1507 = vunpack.c.l.b16 %v983
  %v1508 = vunpack.c.h.b16 %v983
  %v1509 = vunpack.c.l.b16 %v984
  %v1510 = vunpack.c.h.b16 %v984
  %v1511 = vunpack.c.l.b16 %v985
  %v1512 = vunpack.c.h.b16 %v985
  %v1513 = vunpack.c.l.b16 %v986
  %v1514 = vunpack.c.h.b16 %v986
  %v1515 = vunpack.c.l.b16 %v987
  %v1516 = vunpack.c.h.b16 %v987
  %v1517 = vunpack.c.l.b16 %v988
  %v1518 = vunpack.c.h.b16 %v988
  %v1519 = vunpack.c.l.b16 %v989
  %v1520 = vunpack.c.h.b16 %v989
  %v1521 = vunpack.c.l.b16 %v990
  %v1522 = vunpack.c.h.b16 %v990
  %v1523 = vunpack.c.l.b16 %v991
  %v1524 = vunpack.c.h.b16 %v991
  %v1525 = vunpack.c.l.b16 %v992
  %v1526 = vunpack.c.h.b16 %v992
  %v1527 = vunpack.c.l.b16 %v993
  %v1528 = vunpack.c.h.b16 %v993
  %v1529 = vunpack.c.l.b16 %v994
  %v1530 = vunpack.c.h.b16 %v994
  %v1531 = vunpack.c.l.b16 %v995
  %v1532 = vunpack.c.h.b16 %v995
  %v1533 = vunpack.c.l.b16 %v996
  %v1534 = vunpack.c.h.b16 %v996
  %v1535 = vunpack.c.l.b16 %v997
  %v1536 = vunpack.c.h.b16 %v997
  %v1537 = vunpack.c.l.b16 %v998
  %v1538 = vunpack.c.h.b16 %v998
  %v1539 = vunpack.c.l.b16 %v999
  %v1540 = vunpack.c.h.b16 %v999
  %v1541 = vunpack.c.l.b16 %v1000
  %v1542 = vunpack.c.h.b16 %v1000
  %v1543 = vunpack.c.l.b16 %v1001
  %v1544 = vunpack.c.h.b16 %v1001
  %v1545 = vunpack.c.l.b16 %v1002
  %v1546 = vunpack.c.h.b16 %v1002
  %v1547 = vunpack.c.l.b16 %v1003
  %v1548 = vunpack.c.h.b16 %v1003
  %v1549 = vunpack.c.l.b16 %v1004
  %v1550 = vunpack.c.h.b16 %v1004
  %v1551 = vunpack.c.l.b16 %v1005
  %v1552 = vunpack.c.h.b16 %v1005
  %v1553 = vunpack.c.l.b16 %v1006
  %v1554 = vunpack.c.h.b16 %v1006
  %v1555 = vunpack.c.l.b16 %v1007
  %v1556 = vunpack.c.h.b16 %v1007
  %v1557 = vunpack.c.l.b16 %v1008
  %v1558 = vunpack.c.h.b16 %v1008
  %v1559 = vunpack.c.l.b16 %v1009
  %v1560 = vunpack.c.h.b16 %v1009
  %v1561 = vunpack.c.l.b16 %v1010
  %v1562 = vunpack.c.h.b16 %v1010
  %v1563 = vunpack.c.l.b16 %v1011
  %v1564 = vunpack.c.h.b16 %v1011
  %v1565 = vunpack.c.l.b16 %v1012
  %v1566 = vunpack.c.h.b16 %v1012
  %v1567 = vunpack.c.l.b16 %v1013
  %v1568 = vunpack.c.h.b16 %v1013
  %v1569 = vunpack.c.l.b16 %v1014
  %v1570 = vunpack.c.h.b16 %v1014
  %v1571 = vunpack.c.l.b16 %v1015
  %v1572 = vunpack.c.h.b16 %v1015
  %v1573 = vunpack.c.l.b16 %v1016
  %v1574 = vunpack.c.h.b16 %v1016
  %v1575 = vunpack.c.l.b16 %v1017
  %v1576 = vunpack.c.h.b16 %v1017
  %v1577 = vunpack.c.l.b16 %v1018
  %v1578 = vunpack.c.h.b16 %v1018
  %v1579 = vunpack.c.l.b16 %v1019
  %v1580 = vunpack.c.h.b16 %v1019
  %v1581 = vunpack.c.l.b16 %v1020
  %v1582 = vunpack.c.h.b16 %v1020
  %v1583 = vunpack.c.l.b16 %v1021
  %v1584 = vunpack.c.h.b16 %v1021
  %v1585 = vunpack.c.l.b16 %v1022
  %v1586 = vunpack.c.h.b16 %v1022
  %v1587 = vunpack.c.l.b16 %v1023
  %v1588 = vunpack.c.h.b16 %v1023
  %v1589 = vunpack.c.l.b16 %v1024
  %v1590 = vunpack.c.h.b16 %v1024
  %v1591 = vunpack.c.l.b16 %v1025
  %v1592 = vunpack.c.h.b16 %v1025
  %v1593 = vunpack.c.l.b16 %v1026
  %v1594 = vunpack.c.h.b16 %v1026
  %v1595 = vunpack.c.l.b16 %v1027
  %v1596 = vunpack.c.h.b16 %v1027
  %v1597 = vunpack.c.l.b16 %v1028
  %v1598 = vunpack.c.h.b16 %v1028
  %v1599 = vunpack.c.l.b16 %v1029
  %v1600 = vunpack.c.h.b16 %v1029
  %v1601 = vunpack.c.l.b16 %v1030
  %v1602 = vunpack.c.h.b16 %v1030
  %v1603 = vunpack.c.l.b16 %v1031
  %v1604 = vunpack.c.h.b16 %v1031
  %v1605 = vunpack.c.l.b16 %v1032
  %v1606 = vunpack.c.h.b16 %v1032
  %v1607 = vunpack.c.l.b16 %v1033
  %v1608 = vunpack.c.h.b16 %v1033
  %v1609 = vunpack.c.l.b16 %v1034
  %v1610 = vunpack.c.h.b16 %v1034
  %v1611 = vunpack.c.l.b16 %v1035
  %v1612 = vunpack.c.h.b16 %v1035
  %v1613 = vunpack.c.l.b16 %v1036
  %v1614 = vunpack.c.h.b16 %v1036
  %v1615 = vunpack.c.l.b16 %v1037
  %v1616 = vunpack.c.h.b16 %v1037
  %v1617 = vunpack.c.l.b16 %v1038
  %v1618 = vunpack.c.h.b16 %v1038
  %v1619 = vunpack.c.l.b16 %v1039
  %v1620 = vunpack.c.h.b16 %v1039
  %v1621 = vunpack.c.l.b16 %v1040
  %v1622 = vunpack.c.h.b16 %v1040
  %v1623 = vunpack.c.l.b16 %v1041
  %v1624 = vunpack.c.h.b16 %v1041
  %v1625 = vunpack.c.l.b16 %v1042
  %v1626 = vunpack.c.h.b16 %v1042
  %v1627 = vunpack.c.l.b16 %v1043
  %v1628 = vunpack.c.h.b16 %v1043
  %v1629 = vunpack.c.l.b16 %v1044
  %v1630 = vunpack.c.h.b16 %v1044
  %v1631 = vunpack.c.l.b16 %v1045
  %v1632 = vunpack.c.h.b16 %v1045
  %v1633 = vunpack.c.l.b16 %v1046
  %v1634 = vunpack.c.h.b16 %v1046
  %v1635 = vunpack.c.l.b16 %v1047
  %v1636 = vunpack.c.h.b16 %v1047
  %v1637 = vunpack.c.l.b16 %v1048
  %v1638 = vunpack.c.h.b16 %v1048
  %v1639 = vunpack.c.l.b16 %v1049
  %v1640 = vunpack.c.h.b16 %v1049
  %v1641 = vunpack.c.l.b16 %v1050
  %v1642 = vunpack.c.h.b16 %v1050
  %v1643 = vunpack.c.l.b16 %v1051
  %v1644 = vunpack.c.h.b16 %v1051
  %v1645 = vunpack.c.l.b16 %v1052
  %v1646 = vunpack.c.h.b16 %v1052
  %v1647 = vunpack.c.l.b16 %v1053
  %v1648 = vunpack.c.h.b16 %v1053
  %v1649 = vunpack.c.l.b16 %v1054
  %v1650 = vunpack.c.h.b16 %v1054
  %v1651 = vunpack.c.l.b16 %v1055
  %v1652 = vunpack.c.h.b16 %v1055
  %v1653 = vunpack.c.l.b16 %v1056
  %v1654 = vunpack.c.h.b16 %v1056
  %v1655 = vunpack.c.l.b16 %v1057
  %v1656 = vunpack.c.h.b16 %v1057
  %v1657 = vunpack.c.l.b16 %v1058
  %v1658 = vunpack.c.h.b16 %v1058
  %v1659 = vunpack.c.l.b16 %v1059
  %v1660 = vunpack.c.h.b16 %v1059
  %v1661 = vunpack.c.l.b16 %v1060
  %v1662 = vunpack.c.h.b16 %v1060
  %v1663 = vunpack.c.l.b16 %v1061
  %v1664 = vunpack.c.h.b16 %v1061
  %v1665 = vunpack.c.l.b16 %v1062
  %v1666 = vunpack.c.h.b16 %v1062
  %v1667 = vunpack.c.l.b16 %v1063
  %v1668 = vunpack.c.h.b16 %v1063
  %v1669 = vunpack.c.l.b16 %v1064
  %v1670 = vunpack.c.h.b16 %v1064
  %v1671 = vunpack.c.l.b16 %v1065
  %v1672 = vunpack.c.h.b16 %v1065
  %v1673 = vunpack.c.l.b16 %v1066
  %v1674 = vunpack.c.h.b16 %v1066
  %v1675 = vunpack.c.l.b16 %v1067
  %v1676 = vunpack.c.h.b16 %v1067
  %v1677 = vunpack.c.l.b16 %v1068
  %v1678 = vunpack.c.h.b16 %v1068
  %v1679 = vunpack.c.l.b16 %v1069
  %v1680 = vunpack.c.h.b16 %v1069
  %v1681 = vunpack.c.l.b16 %v1070
  %v1682 = vunpack.c.h.b16 %v1070
  %v1683 = vunpack.c.l.b16 %v1071
  %v1684 = vunpack.c.h.b16 %v1071
  %v1685 = vunpack.c.l.b16 %v1072
  %v1686 = vunpack.c.h.b16 %v1072
  %v1687 = vunpack.c.l.b16 %v1073
  %v1688 = vunpack.c.h.b16 %v1073
  %v1689 = vunpack.c.l.b16 %v1074
  %v1690 = vunpack.c.h.b16 %v1074
  %v1691 = vunpack.c.l.b16 %v1075
  %v1692 = vunpack.c.h.b16 %v1075
  %v1693 = vunpack.c.l.b16 %v1076
  %v1694 = vunpack.c.h.b16 %v1076
  %v1695 = vunpack.c.l.b16 %v1077
  %v1696 = vunpack.c.h.b16 %v1077
  %v1697 = vunpack.c.l.b16 %v1078
  %v1698 = vunpack.c.h.b16 %v1078
  %v1699 = vunpack.c.l.b16 %v1079
  %v1700 = vunpack.c.h.b16 %v1079
  %v1701 = vunpack.c.l.b16 %v1080
  %v1702 = vunpack.c.h.b16 %v1080
  %v1703 = vunpack.c.l.b16 %v1081
  %v1704 = vunpack.c.h.b16 %v1081
  %v1705 = vunpack.c.l.b16 %v1082
  %v1706 = vunpack.c.h.b16 %v1082
  %v1707 = vunpack.c.l.b16 %v1083
  %v1708 = vunpack.c.h.b16 %v1083
  %v1709 = vunpack.c.l.b16 %v1084
  %v1710 = vunpack.c.h.b16 %v1084
  %v1711 = vunpack.c.l.b16 %v1085
  %v1712 = vunpack.c.h.b16 %v1085
  %v1713 = vunpack.c.l.b16 %v1086
  %v1714 = vunpack.c.h.b16 %v1086
  %v1715 = vunpack.c.l.b16 %v1087
  %v1716 = vunpack.c.h.b16 %v1087
  %v1717 = vunpack.c.l.b16 %v1088
  %v1718 = vunpack.c.h.b16 %v1088
  %v1719 = vunpack.c.l.b16 %v1089
  %v1720 = vunpack.c.h.b16 %v1089
  %v1721 = vunpack.c.l.b16 %v1090
  %v1722 = vunpack.c.h.b16 %v1090
  %v1723 = vunpack.c.l.b16 %v1091
  %v1724 = vunpack.c.h.b16 %v1091
  %v1725 = vunpack.c.l.b16 %v1092
  %v1726 = vunpack.c.h.b16 %v1092
  %v1727 = vunpack.c.l.b16 %v1093
  %v1728 = vunpack.c.h.b16 %v1093
  %v1729 = vunpack.c.l.b16 %v1094
  %v1730 = vunpack.c.h.b16 %v1094
  %v1731 = vunpack.c.l.b16 %v1095
  %v1732 = vunpack.c.h.b16 %v1095
  %v1733 = vunpack.c.l.b16 %v1096
  %v1734 = vunpack.c.h.b16 %v1096
  %v1735 = vunpack.c.l.b16 %v1097
  %v1736 = vunpack.c.h.b16 %v1097
  %v1737 = vunpack.c.l.b16 %v1098
  %v1738 = vunpack.c.h.b16 %v1098
  %v1739 = vunpack.c.l.b16 %v1099
  %v1740 = vunpack.c.h.b16 %v1099
  %v1741 = vunpack.c.l.b16 %v1100
  %v1742 = vunpack.c.h.b16 %v1100
  %v1743 = vunpack.c.l.b16 %v1101
  %v1744 = vunpack.c.h.b16 %v1101
  %v1745 = vunpack.c.l.b16 %v1102
  %v1746 = vunpack.c.h.b16 %v1102
  %v1747 = vunpack.c.l.b16 %v1103
  %v1748 = vunpack.c.h.b16 %v1103
  %v1749 = vunpack.c.l.b16 %v1104
  %v1750 = vunpack.c.h.b16 %v1104
  %v1751 = vunpack.c.l.b16 %v1105
  %v1752 = vunpack.c.h.b16 %v1105
  %v1753 = vunpack.c.l.b16 %v1106
  %v1754 = vunpack.c.h.b16 %v1106
  %v1755 = vunpack.c.l.b16 %v1107
  %v1756 = vunpack.c.h.b16 %v1107
  %v1757 = vunpack.c.l.b16 %v1108
  %v1758 = vunpack.c.h.b16 %v1108
  %v1759 = vunpack.c.l.b16 %v1109
  %v1760 = vunpack.c.h.b16 %v1109
  %v1761 = vunpack.c.l.b16 %v1110
  %v1762 = vunpack.c.h.b16 %v1110
  %v1763 = vunpack.c.l.b16 %v1111
  %v1764 = vunpack.c.h.b16 %v1111
  %v1765 = vunpack.c.l.b16 %v1112
  %v1766 = vunpack.c.h.b16 %v1112
  %v1767 = vunpack.c.l.b16 %v1113
  %v1768 = vunpack.c.h.b16 %v1113
  %v1769 = vunpack.c.l.b16 %v1114
  %v1770 = vunpack.c.h.b16 %v1114
  %v1771 = vunpack.c.l.b16 %v1115
  %v1772 = vunpack.c.h.b16 %v1115
  %v1773 = vunpack.c.l.b16 %v1116
  %v1774 = vunpack.c.h.b16 %v1116
  %v1775 = vunpack.c.l.b16 %v1117
  %v1776 = vunpack.c.h.b16 %v1117
  %v1777 = vunpack.c.l.b16 %v1118
  %v1778 = vunpack.c.h.b16 %v1118
  %v1779 = vunpack.c.l.b16 %v1119
  %v1780 = vunpack.c.h.b16 %v1119
  %v1781 = vunpack.c.l.b16 %v1120
  %v1782 = vunpack.c.h.b16 %v1120
  %v1783 = vunpack.c.l.b16 %v1121
  %v1784 = vunpack.c.h.b16 %v1121
  %v1785 = vunpack.c.l.b16 %v1122
  %v1786 = vunpack.c.h.b16 %v1122
  %v1787 = vunpack.c.l.b16 %v1123
  %v1788 = vunpack.c.h.b16 %v1123
  %v1789 = vunpack.c.l.b16 %v1124
  %v1790 = vunpack.c.h.b16 %v1124
  %v1791 = vunpack.c.l.b16 %v1125
  %v1792 = vunpack.c.h.b16 %v1125
  %v1793 = vunpack.c.l.b16 %v1126
  %v1794 = vunpack.c.h.b16 %v1126
  %v1795 = vunpack.c.l.b16 %v1127
  %v1796 = vunpack.c.h.b16 %v1127
  %v1797 = vunpack.c.l.b16 %v1128
  %v1798 = vunpack.c.h.b16 %v1128
  %v1799 = vunpack.c.l.b16 %v1129
  %v1800 = vunpack.c.h.b16 %v1129
  %v1801 = vunpack.c.l.b16 %v1130
  %v1802 = vunpack.c.h.b16 %v1130
  %v1803 = vunpack.c.l.b16 %v1131
  %v1804 = vunpack.c.h.b16 %v1131
  %v1805 = vunpack.c.l.b16 %v1132
  %v1806 = vunpack.c.h.b16 %v1132
  %v1807 = vunpack.c.l.b16 %v1133
  %v1808 = vunpack.c.h.b16 %v1133
  %v1809 = vunpack.c.l.b16 %v1134
  %v1810 = vunpack.c.h.b16 %v1134
  %v1811 = vunpack.c.l.b16 %v1135
  %v1812 = vunpack.c.h.b16 %v1135
  %v1813 = vunpack.c.l.b16 %v1136
  %v1814 = vunpack.c.h.b16 %v1136
  %v1815 = vunpack.c.l.b16 %v1137
  %v1816 = vunpack.c.h.b16 %v1137
  %v1817 = vunpack.c.l.b16 %v1138
  %v1818 = vunpack.c.h.b16 %v1138
  %v1819 = vunpack.c.l.b16 %v1139
  %v1820 = vunpack.c.h.b16 %v1139
  %v1821 = vunpack.c.l.b16 %v1140
  %v1822 = vunpack.c.h.b16 %v1140
  %v1823 = vunpack.c.l.b16 %v1141
  %v1824 = vunpack.c.h.b16 %v1141
  %v1825 = vunpack.c.l.b16 %v1142
  %v1826 = vunpack.c.h.b16 %v1142
  %v1827 = vunpack.c.l.b16 %v1143
  %v1828 = vunpack.c.h.b16 %v1143
  %v1829 = vunpack.c.l.b16 %v1144
  %v1830 = vunpack.c.h.b16 %v1144
  %v1831 = vunpack.c.l.b16 %v1145
  %v1832 = vunpack.c.h.b16 %v1145
  %v1833 = vunpack.c.l.b16 %v1146
  %v1834 = vunpack.c.h.b16 %v1146
  %v1835 = vunpack.c.l.b16 %v1147
  %v1836 = vunpack.c.h.b16 %v1147
  %v1837 = vunpack.c.l.b16 %v1148
  %v1838 = vunpack.c.h.b16 %v1148
  %v1839 = vunpack.c.l.b16 %v1149
  %v1840 = vunpack.c.h.b16 %v1149
  %v1841 = vunpack.c.l.b16 %v1150
  %v1842 = vunpack.c.h.b16 %v1150
  %v1843 = vunpack.c.l.b16 %v1151
  %v1844 = vunpack.c.h.b16 %v1151
  %v1845 = vunpack.c.l.b16 %v1152
  %v1846 = vunpack.c.h.b16 %v1152
  %v1847 = vunpack.c.l.b16 %v1153
  %v1848 = vunpack.c.h.b16 %v1153
  %v1849 = vunpack.c.l.b16 %v1154
  %v1850 = vunpack.c.h.b16 %v1154
  %v1851 = vunpack.c.l.b16 %v1155
  %v1852 = vunpack.c.h.b16 %v1155
  %v1853 = vunpack.c.l.b16 %v1156
  %v1854 = vunpack.c.h.b16 %v1156
  %v1855 = vunpack.c.l.b16 %v1157
  %v1856 = vunpack.c.h.b16 %v1157
  %v1857 = vunpack.c.l.b16 %v1158
  %v1858 = vunpack.c.h.b16 %v1158
  %v1859 = vunpack.c.l.b16 %v1159
  %v1860 = vunpack.c.h.b16 %v1159
  %v1861 = vunpack.c.l.b16 %v1160
  %v1862 = vunpack.c.h.b16 %v1160
  %v1863 = vunpack.c.l.b16 %v1161
  %v1864 = vunpack.c.h.b16 %v1161
  %v1865 = vunpack.c.l.b16 %v1162
  %v1866 = vunpack.c.h.b16 %v1162
  %v1867 = vunpack.c.l.b16 %v1163
  %v1868 = vunpack.c.h.b16 %v1163
  %v1869 = vunpack.c.l.b16 %v1164
  %v1870 = vunpack.c.h.b16 %v1164
  %v1871 = vunpack.c.l.b16 %v1165
  %v1872 = vunpack.c.h.b16 %v1165
  %v1873 = vunpack.c.l.b16 %v1166
  %v1874 = vunpack.c.h.b16 %v1166
  %v1875 = vunpack.c.l.b16 %v1167
  %v1876 = vunpack.c.h.b16 %v1167
  %v1877 = vunpack.c.l.b16 %v1168
  %v1878 = vunpack.c.h.b16 %v1168
  %v1879 = vunpack.c.l.b16 %v1169
  %v1880 = vunpack.c.h.b16 %v1169
  %v1881 = vunpack.c.l.b16 %v1170
  %v1882 = vunpack.c.h.b16 %v1170
  %v1883 = vunpack.c.l.b16 %v1171
  %v1884 = vunpack.c.h.b16 %v1171
  %v1885 = vunpack.c.l.b16 %v1172
  %v1886 = vunpack.c.h.b16 %v1172
  %v1887 = vunpack.c.l.b16 %v1173
  %v1888 = vunpack.c.h.b16 %v1173
  %v1889 = vunpack.c.l.b16 %v1174
  %v1890 = vunpack.c.h.b16 %v1174
  %v1891 = vunpack.c.l.b16 %v1175
  %v1892 = vunpack.c.h.b16 %v1175
  %v1893 = vunpack.c.l.b16 %v1176
  %v1894 = vunpack.c.h.b16 %v1176
  %v1895 = vunpack.c.l.b16 %v1177
  %v1896 = vunpack.c.h.b16 %v1177
  %v1897 = vunpack.c.l.b16 %v1178
  %v1898 = vunpack.c.h.b16 %v1178
  %v1899 = vunpack.c.l.b16 %v1179
  %v1900 = vunpack.c.h.b16 %v1179
  %v1901 = vunpack.c.l.b16 %v1180
  %v1902 = vunpack.c.h.b16 %v1180
  %v1903 = vunpack.c.l.b16 %v1181
  %v1904 = vunpack.c.h.b16 %v1181
  %v1905 = vunpack.c.l.b16 %v1182
  %v1906 = vunpack.c.h.b16 %v1182
  %v1907 = vunpack.c.l.b16 %v1183
  %v1908 = vunpack.c.h.b16 %v1183
  %v1909 = vunpack.c.l.b16 %v1184
  %v1910 = vunpack.c.h.b16 %v1184
  %v1911 = vunpack.c.l.b16 %v1185
  %v1912 = vunpack.c.h.b16 %v1185
  %v1913 = vunpack.c.l.b16 %v1186
  %v1914 = vunpack.c.h.b16 %v1186
  %v1915 = vunpack.c.l.b16 %v1187
  %v1916 = vunpack.c.h.b16 %v1187
  %v1917 = vunpack.c.l.b16 %v1188
  %v1918 = vunpack.c.h.b16 %v1188
  %v1919 = vunpack.c.l.b16 %v1189
  %v1920 = vunpack.c.h.b16 %v1189
  %v1921 = vunpack.c.l.b16 %v1190
  %v1922 = vunpack.c.h.b16 %v1190
  %v1923 = vunpack.c.l.b16 %v1191
  %v1924 = vunpack.c.h.b16 %v1191
  %v1925 = vunpack.c.l.b16 %v1192
  %v1926 = vunpack.c.h.b16 %v1192
  %v1927 = vunpack.c.l.b16 %v1193
  %v1928 = vunpack.c.h.b16 %v1193
  %v1929 = vunpack.c.l.b16 %v1194
  %v1930 = vunpack.c.h.b16 %v1194
  %v1931 = vunpack.c.l.b16 %v1195
  %v1932 = vunpack.c.h.b16 %v1195
  %v1933 = vunpack.c.l.b16 %v1196
  %v1934 = vunpack.c.h.b16 %v1196
  %v1935 = vunpack.c.l.b16 %v1197
  %v1936 = vunpack.c.h.b16 %v1197
  %v1937 = vunpack.c.l.b16 %v1198
  %v1938 = vunpack.c.h.b16 %v1198
  %v1939 = vunpack.c.l.b16 %v1199
  %v1940 = vunpack.c.h.b16 %v1199
  %v1941 = vunpack.c.l.b16 %v1200
  %v1942 = vunpack.c.h.b16 %v1200
  %v1943 = vunpack.c.l.b16 %v1201
  %v1944 = vunpack.c.h.b16 %v1201
  %v1945 = vunpack.c.l.b16 %v1202
  %v1946 = vunpack.c.h.b16 %v1202
  %v1947 = vunpack.c.l.b16 %v1203
  %v1948 = vunpack.c.h.b16 %v1203
  %v1949 = vunpack.c.l.b16 %v1204
  %v1950 = vunpack.c.h.b16 %v1204
  %v1951 = vunpack.c.l.b16 %v1205
  %v1952 = vunpack.c.h.b16 %v1205
  %v1953 = vunpack.c.l.b16 %v1206
  %v1954 = vunpack.c.h.b16 %v1206
  %v1955 = vunpack.c.l.b16 %v1207
  %v1956 = vunpack.c.h.b16 %v1207
  %v1957 = vunpack.c.l.b16 %v1208
  %v1958 = vunpack.c.h.b16 %v1208
  %v1959 = vunpack.c.l.b16 %v1209
  %v1960 = vunpack.c.h.b16 %v1209
  %v1961 = vunpack.c.l.b16 %v1210
  %v1962 = vunpack.c.h.b16 %v1210
  %v1963 = vunpack.c.l.b16 %v1211
  %v1964 = vunpack.c.h.b16 %v1211
  %v1965 = vunpack.c.l.b16 %v1212
  %v1966 = vunpack.c.h.b16 %v1212
  %v1967 = vunpack.c.l.b16 %v1213
  %v1968 = vunpack.c.h.b16 %v1213
  %v1969 = vunpack.c.l.b16 %v1214
  %v1970 = vunpack.c.h.b16 %v1214
  %v1971 = vunpack.c.l.b16 %v1215
  %v1972 = vunpack.c.h.b16 %v1215
  %v1973 = vunpack.c.l.b16 %v1216
  %v1974 = vunpack.c.h.b16 %v1216
  %v1975 = vunpack.c.l.b16 %v1217
  %v1976 = vunpack.c.h.b16 %v1217
  %v1977 = vunpack.c.l.b16 %v1218
  %v1978 = vunpack.c.h.b16 %v1218
  %v1979 = vunpack.c.l.b16 %v1219
  %v1980 = vunpack.c.h.b16 %v1219
  %v1981 = vunpack.c.l.b16 %v1220
  %v1982 = vunpack.c.h.b16 %v1220
  %v1983 = vunpack.c.l.b16 %v1221
  %v1984 = vunpack.c.h.b16 %v1221
  %v1985 = vunpack.c.l.b16 %v1222
  %v1986 = vunpack.c.h.b16 %v1222
  %v1987 = vunpack.c.l.b16 %v1223
  %v1988 = vunpack.c.h.b16 %v1223
  %v1989 = vunpack.c.l.b16 %v1224
  %v1990 = vunpack.c.h.b16 %v1224
  %v1991 = vunpack.c.l.b16 %v1225
  %v1992 = vunpack.c.h.b16 %v1225
  %v1993 = vunpack.c.l.b16 %v1226
  %v1994 = vunpack.c.h.b16 %v1226
  %v1995 = vpack.c.b16 %v1491, %v1483
  %v1996 = vpack.c.b16 %v1492, %v1484
  %v1997 = vpack.c.b16 %v1493, %v1485
  %v1998 = vpack.c.b16 %v1494, %v1486
  %v1999 = vpack.c.b16 %v1495, %v1487
  %v2000 = vpack.c.b16 %v1496, %v1488
  %v2001 = vpack.c.b16 %v1497, %v1489
  %v2002 = vpack.c.b16 %v1498, %v1490
  %v2003 = vpack.c.b16 %v1507, %v1499
  %v2004 = vpack.c.b16 %v1508, %v1500
  %v2005 = vpack.c.b16 %v1509, %v1501
  %v2006 = vpack.c.b16 %v1510, %v1502
  %v2007 = vpack.c.b16 %v1511, %v1503
  %v2008 = vpack.c.b16 %v1512, %v1504
  %v2009 = vpack.c.b16 %v1513, %v1505
  %v2010 = vpack.c.b16 %v1514, %v1506
  %v2011 = vpack.c.b16 %v1523, %v1515
  %v2012 = vpack.c.b16 %v1524, %v1516
  %v2013 = vpack.c.b16 %v1525, %v1517
  %v2014 = vpack.c.b16 %v1526, %v1518
  %v2015 = vpack.c.b16 %v1527, %v1519
  %v2016 = vpack.c.b16 %v1528, %v1520
  %v2017 = vpack.c.b16 %v1529, %v1521
  %v2018 = vpack.c.b16 %v1530, %v1522
  %v2019 = vpack.c.b16 %v1539, %v1531
  %v2020 = vpack.c.b16 %v1540, %v1532
  %v2021 = vpack.c.b16 %v1541, %v1533
  %v2022 = vpack.c.b16 %v1542, %v1534
  %v2023 = vpack.c.b16 %v1543, %v1535
  %v2024 = vpack.c.b16 %v1544, %v1536
  %v2025 = vpack.c.b16 %v1545, %v1537
  %v2026 = vpack.c.b16 %v1546, %v1538
  %v2027 = vpack.c.b16 %v1555, %v1547
  %v2028 = vpack.c.b16 %v1556, %v1548
  %v2029 = vpack.c.b16 %v1557, %v1549
  %v2030 = vpack.c.b16 %v1558, %v1550
  %v2031 = vpack.c.b16 %v1559, %v1551
  %v2032 = vpack.c.b16 %v1560, %v1552
  %v2033 = vpack.c.b16 %v1561, %v1553
  %v2034 = vpack.c.b16 %v1562, %v1554
  %v2035 = vpack.c.b16 %v1571, %v1563
  %v2036 = vpack.c.b16 %v1572, %v1564
  %v2037 = vpack.c.b16 %v1573, %v1565
  %v2038 = vpack.c.b16 %v1574, %v1566
  %v2039 = vpack.c.b16 %v1575, %v1567
  %v2040 = vpack.c.b16 %v1576, %v1568
  %v2041 = vpack.c.b16 %v1577, %v1569
  %v2042 = vpack.c.b16 %v1578, %v1570
  %v2043 = vpack.c.b16 %v1587, %v1579
  %v2044 = vpack.c.b16 %v1588, %v1580
  %v2045 = vpack.c.b16 %v1589, %v1581
  %v2046 = vpack.c.b16 %v1590, %v1582
  %v2047 = vpack.c.b16 %v1591, %v1583
  %v2048 = vpack.c.b16 %v1592, %v1584
  %v2049 = vpack.c.b16 %v1593, %v1585
  %v2050 = vpack.c.b16 %v1594, %v1586
  %v2051 = vpack.c.b16 %v1603, %v1595
  %v2052 = vpack.c.b16 %v1604, %v1596
  %v2053 = vpack.c.b16 %v1605, %v1597
  %v2054 = vpack.c.b16 %v1606, %v1598
  %v2055 = vpack.c.b16 %v1607, %v1599
  %v2056 = vpack.c.b16 %v1608, %v1600
  %v2057 = vpack.c.b16 %v1609, %v1601
  %v2058 = vpack.c.b16 %v1610, %v1602
  %v2059 = vpack.c.b16 %v1619, %v1611
  %v2060 = vpack.c.b16 %v1620, %v1612
  %v2061 = vpack.c.b16 %v1621, %v1613
  %v2062 = vpack.c.b16 %v1622, %v1614
  %v2063 = vpack.c.b16 %v1623, %v1615
  %v2064 = vpack.c.b16 %v1624, %v1616
  %v2065 = vpack.c.b16 %v1625, %v1617
  %v2066 = vpack.c.b16 %v1626, %v1618
  %v2067 = vpack.c.b16 %v1635, %v1627
  %v2068 = vpack.c.b16 %v1636, %v1628
  %v2069 = vpack.c.b16 %v1637, %v1629
  %v2070 = vpack.c.b16 %v1638, %v1630
  %v2071 = vpack.c.b16 %v1639, %v1631
  %v2072 = vpack.c.b16 %v1640, %v1632
  %v2073 = vpack.c.b16 %v1641, %v1633
  %v2074 = vpack.c.b16 %v1642, %v1634
  %v2075 = vpack.c.b16 %v1651, %v1643
  %v2076 = vpack.c.b16 %v1652, %v1644
  %v2077 = vpack.c.b16 %v1653, %v1645
  %v2078 = vpack.c.b16 %v1654, %v1646
  %v2079 = vpack.c.b16 %v1655, %v1647
  %v2080 = vpack.c.b16 %v1656, %v1648
  %v2081 = vpack.c.b16 %v1657, %v1649
  %v2082 = vpack.c.b16 %v1658, %v1650
  %v2083 = vpack.c.b16 %v1667, %v1659
  %v2084 = vpack.c.b16 %v1668, %v1660
  %v2085 = vpack.c.b16 %v1669, %v1661
  %v2086 = vpack.c.b16 %v1670, %v1662
  %v2087 = vpack.c.b16 %v1671, %v1663
  %v2088 = vpack.c.b16 %v1672, %v1664
  %v2089 = vpack.c.b16 %v1673, %v1665
  %v2090 = vpack.c.b16 %v1674, %v1666
  %v2091 = vpack.c.b16 %v1683, %v1675
  %v2092 = vpack.c.b16 %v1684, %v1676
  %v2093 = vpack.c.b16 %v1685, %v1677
  %v2094 = vpack.c.b16 %v1686, %v1678
  %v2095 = vpack.c.b16 %v1687, %v1679
  %v2096 = vpack.c.b16 %v1688, %v1680
  %v2097 = vpack.c.b16 %v1689, %v1681
  %v2098 = vpack.c.b16 %v1690, %v1682
  %v2099 = vpack.c.b16 %v1699, %v1691
  %v2100 = vpack.c.b16 %v1700, %v1692
  %v2101 = vpack.c.b16 %v1701, %v1693
  %v2102 = vpack.c.b16 %v1702, %v1694
  %v2103 = vpack.c.b16 %v1703, %v1695
  %v2104 = vpack.c.b16 %v1704, %v1696
  %v2105 = vpack.c.b16 %v1705, %v1697
  %v2106 = vpack.c.b16 %v1706, %v1698
  %v2107 = vpack.c.b16 %v1715, %v1707
  %v2108 = vpack.c.b16 %v1716, %v1708
  %v2109 = vpack.c.b16 %v1717, %v1709
  %v2110 = vpack.c.b16 %v1718, %v1710
  %v2111 = vpack.c.b16 %v1719, %v1711
  %v2112 = vpack.c.b16 %v1720, %v1712
  %v2113 = vpack.c.b16 %v1721, %v1713
  %v2114 = vpack.c.b16 %v1722, %v1714
  %v2115 = vpack.c.b16 %v1731, %v1723
  %v2116 = vpack.c.b16 %v1732, %v1724
  %v2117 = vpack.c.b16 %v1733, %v1725
  %v2118 = vpack.c.b16 %v1734, %v1726
  %v2119 = vpack.c.b16 %v1735, %v1727
  %v2120 = vpack.c.b16 %v1736, %v1728
  %v2121 = vpack.c.b16 %v1737, %v1729
  %v2122 = vpack.c.b16 %v1738, %v1730
  %v2123 = vpack.c.b16 %v1747, %v1739
  %v2124 = vpack.c.b16 %v1748, %v1740
  %v2125 = vpack.c.b16 %v1749, %v1741
  %v2126 = vpack.c.b16 %v1750, %v1742
  %v2127 = vpack.c.b16 %v1751, %v1743
  %v2128 = vpack.c.b16 %v1752, %v1744
  %v2129 = vpack.c.b16 %v1753, %v1745
  %v2130 = vpack.c.b16 %v1754, %v1746
  %v2131 = vpack.c.b16 %v1763, %v1755
  %v2132 = vpack.c.b16 %v1764, %v1756
  %v2133 = vpack.c.b16 %v1765, %v1757
  %v2134 = vpack.c.b16 %v1766, %v1758
  %v2135 = vpack.c.b16 %v1767, %v1759
  %v2136 = vpack.c.b16 %v1768, %v1760
  %v2137 = vpack.c.b16 %v1769, %v1761
  %v2138 = vpack.c.b16 %v1770, %v1762
  %v2139 = vpack.c.b16 %v1779, %v1771
  %v2140 = vpack.c.b16 %v1780, %v1772
  %v2141 = vpack.c.b16 %v1781, %v1773
  %v2142 = vpack.c.b16 %v1782, %v1774
  %v2143 = vpack.c.b16 %v1783, %v1775
  %v2144 = vpack.c.b16 %v1784, %v1776
  %v2145 = vpack.c.b16 %v1785, %v1777
  %v2146 = vpack.c.b16 %v1786, %v1778
  %v2147 = vpack.c.b16 %v1795, %v1787
  %v2148 = vpack.c.b16 %v1796, %v1788
  %v2149 = vpack.c.b16 %v1797, %v1789
  %v2150 = vpack.c.b16 %v1798, %v1790
  %v2151 = vpack.c.b16 %v1799, %v1791
  %v2152 = vpack.c.b16 %v1800, %v1792
  %v2153 = vpack.c.b16 %v1801, %v1793
  %v2154 = vpack.c.b16 %v1802, %v1794
  %v2155 = vpack.c.b16 %v1811, %v1803
  %v2156 = vpack.c.b16 %v1812, %v1804
  %v2157 = vpack.c.b16 %v1813, %v1805
  %v2158 = vpack.c.b16 %v1814, %v1806
  %v2159 = vpack.c.b16 %v1815, %v1807
  %v2160 = vpack.c.b16 %v1816, %v1808
  %v2161 = vpack.c.b16 %v1817, %v1809
  %v2162 = vpack.c.b16 %v1818, %v1810
  %v2163 = vpack.c.b16 %v1827, %v1819
  %v2164 = vpack.c.b16 %v1828, %v1820
  %v2165 = vpack.c.b16 %v1829, %v1821
  %v2166 = vpack.c.b16 %v1830, %v1822
  %v2167 = vpack.c.b16 %v1831, %v1823
  %v2168 = vpack.c.b16 %v1832, %v1824
  %v2169 = vpack.c.b16 %v1833, %v1825
  %v2170 = vpack.c.b16 %v1834, %v1826
  %v2171 = vpack.c.b16 %v1843, %v1835
  %v2172 = vpack.c.b16 %v1844, %v1836
  %v2173 = vpack.c.b16 %v1845, %v1837
  %v2174 = vpack.c.b16 %v1846, %v1838
  %v2175 = vpack.c.b16 %v1847, %v1839
  %v2176 = vpack.c.b16 %v1848, %v1840
  %v2177 = vpack.c.b16 %v1849, %v1841
  %v2178 = vpack.c.b16 %v1850, %v1842
  %v2179 = vpack.c.b16 %v1859, %v1851
  %v2180 = vpack.c.b16 %v1860, %v1852
  %v2181 = vpack.c.b16 %v1861, %v1853
  %v2182 = vpack.c.b16 %v1862, %v1854
  %v2183 = vpack.c.b16 %v1863, %v1855
  %v2184 = vpack.c.b16 %v1864, %v1856
  %v2185 = vpack.c.b16 %v1865, %v1857
  %v2186 = vpack.c.b16 %v1866, %v1858
  %v2187 = vpack.c.b16 %v1875, %v1867
  %v2188 = vpack.c.b16 %v1876, %v1868
  %v2189 = vpack.c.b16 %v1877, %v1869
  %v2190 = vpack.c.b16 %v1878, %v1870
  %v2191 = vpack.c.b16 %v1879, %v1871
  %v2192 = vpack.c.b16 %v1880, %v1872
  %v2193 = vpack.c.b16 %v1881, %v1873
  %v2194 = vpack.c.b16 %v1882, %v1874
  %v2195 = vpack.c.b16 %v1891, %v1883
  %v2196 = vpack.c.b16 %v1892, %v1884
  %v2197 = vpack.c.b16 %v1893, %v1885
  %v2198 = vpack.c.b16 %v1894, %v1886
  %v2199 = vpack.c.b16 %v1895, %v1887
  %v2200 = vpack.c.b16 %v1896, %v1888
  %v2201 = vpack.c.b16 %v1897, %v1889
  %v2202 = vpack.c.b16 %v1898, %v1890
  %v2203 = vpack.c.b16 %v1907, %v1899
  %v2204 = vpack.c.b16 %v1908, %v1900
  %v2205 = vpack.c.b16 %v1909, %v1901
  %v2206 = vpack.c.b16 %v1910, %v1902
  %v2207 = vpack.c.b16 %v1911, %v1903
  %v2208 = vpack.c.b16 %v1912, %v1904
  %v2209 = vpack.c.b16 %v1913, %v1905
  %v2210 = vpack.c.b16 %v1914, %v1906
  %v2211 = vpack.c.b16 %v1923, %v1915
  %v2212 = vpack.c.b16 %v1924, %v1916
  %v2213 = vpack.c.b16 %v1925, %v1917
  %v2214 = vpack.c.b16 %v1926, %v1918
  %v2215 = vpack.c.b16 %v1927, %v1919
  %v2216 = vpack.c.b16 %v1928, %v1920
  %v2217 = vpack.c.b16 %v1929, %v1921
  %v2218 = vpack.c.b16 %v1930, %v1922
  %v2219 = vpack.c.b16 %v1939, %v1931
  %v2220 = vpack.c.b16 %v1940, %v1932
  %v2221 = vpack.c.b16 %v1941, %v1933
  %v2222 = vpack.c.b16 %v1942, %v1934
  %v2223 = vpack.c.b16 %v1943, %v1935
  %v2224 = vpack.c.b16 %v1944, %v1936
  %v2225 = vpack.c.b16 %v1945, %v1937
  %v2226 = vpack.c.b16 %v1946, %v1938
  %v2227 = vpack.c.b16 %v1955, %v1947
  %v2228 = vpack.c.b16 %v1956, %v1948
  %v2229 = vpack.c.b16 %v1957, %v1949
  %v2230 = vpack.c.b16 %v1958, %v1950
  %v2231 = vpack.c.b16 %v1959, %v1951
  %v2232 = vpack.c.b16 %v1960, %v1952
  %v2233 = vpack.c.b16 %v1961, %v1953
  %v2234 = vpack.c.b16 %v1962, %v1954
  %v2235 = vpack.c.b16 %v1971, %v1963
  %v2236 = vpack.c.b16 %v1972, %v1964
  %v2237 = vpack.c.b16 %v1973, %v1965
  %v2238 = vpack.c.b16 %v1974, %v1966
  %v2239 = vpack.c.b16 %v1975, %v1967
  %v2240 = vpack.c.b16 %v1976, %v1968
  %v2241 = vpack.c.b16 %v1977, %v1969
  %v2242 = vpack.c.b16 %v1978, %v1970
  %v2243 = vpack.c.b16 %v1987, %v1979
  %v2244 = vpack.c.b16 %v1988, %v1980
  %v2245 = vpack.c.b16 %v1989, %v1981
  %v2246 = vpack.c.b16 %v1990, %v1982
  %v2247 = vpack.c.b16 %v1991, %v1983
  %v2248 = vpack.c.b16 %v1992, %v1984
  %v2249 = vpack.c.b16 %v1993, %v1985
  %v2250 = vpack.c.b16 %v1994, %v1986
  %2507 = vmatpush.bf16.msra.mxu0 %v2051
  %2508 = vmatpush.bf16.msra.mxu0 %v2043
  %2509 = vmatpush.bf16.msra.mxu0 %v2035
  %2510 = vmatpush.bf16.msra.mxu0 %v2027
  %2511 = vmatpush.bf16.msra.mxu0 %v2019
  %2512 = vmatpush.bf16.msra.mxu0 %v2011
  %2513 = vmatpush.bf16.msra.mxu0 %v2003
  %2514 = vmatpush.bf16.msra.mxu0 %v1995
  %2515 = vmatmul.bf16.gmra.mxu0 %v967
  %v2516 = vpop.f32.mrf.mxu0
  %v2517 = vadd.f32 0.0, %v2516
  %v2518 = vpop.f32.mrf.mxu0
  %2519 = vdwg.mxu0
  %2520 = vmatpush.bf16.msra.mxu0 %v2115
  %2521 = vmatpush.bf16.msra.mxu0 %v2107
  %2522 = vmatpush.bf16.msra.mxu0 %v2099
  %2523 = vmatpush.bf16.msra.mxu0 %v2091
  %2524 = vmatpush.bf16.msra.mxu0 %v2083
  %2525 = vmatpush.bf16.msra.mxu0 %v2075
  %2526 = vmatpush.bf16.msra.mxu0 %v2067
  %2527 = vmatpush.bf16.msra.mxu0 %v2059
  %2528 = vmatmul.bf16.gmra.mxu0 %v968
  %v2529 = vpop.f32.mrf.mxu0
  %v2530 = vadd.f32 %v2517, %v2529
  %v2531 = vpop.f32.mrf.mxu0
  %2532 = vdwg.mxu0
  %2533 = vmatpush.bf16.msra.mxu0 %v2179
  %2534 = vmatpush.bf16.msra.mxu0 %v2171
  %2535 = vmatpush.bf16.msra.mxu0 %v2163
  %2536 = vmatpush.bf16.msra.mxu0 %v2155
  %2537 = vmatpush.bf16.msra.mxu0 %v2147
  %2538 = vmatpush.bf16.msra.mxu0 %v2139
  %2539 = vmatpush.bf16.msra.mxu0 %v2131
  %2540 = vmatpush.bf16.msra.mxu0 %v2123
  %2541 = vmatmul.bf16.gmra.mxu0 %v969
  %v2542 = vpop.f32.mrf.mxu0
  %v2543 = vadd.f32 %v2530, %v2542
  %v2544 = vpop.f32.mrf.mxu0
  %2545 = vdwg.mxu0
  %2546 = vmatpush.bf16.msra.mxu0 %v2243
  %2547 = vmatpush.bf16.msra.mxu0 %v2235
  %2548 = vmatpush.bf16.msra.mxu0 %v2227
  %2549 = vmatpush.bf16.msra.mxu0 %v2219
  %2550 = vmatpush.bf16.msra.mxu0 %v2211
  %2551 = vmatpush.bf16.msra.mxu0 %v2203
  %2552 = vmatpush.bf16.msra.mxu0 %v2195
  %2553 = vmatpush.bf16.msra.mxu0 %v2187
  %2554 = vmatmul.bf16.gmra.mxu0 %v970
  %v2555 = vpop.f32.mrf.mxu0
  %v2556 = vadd.f32 %v2543, %v2555
  %v2557 = vpop.f32.mrf.mxu0
  %2558 = vdwg.mxu0
  %2559 = vmatpush.bf16.msra.mxu0 %v2052
  %2560 = vmatpush.bf16.msra.mxu0 %v2044
  %2561 = vmatpush.bf16.msra.mxu0 %v2036
  %2562 = vmatpush.bf16.msra.mxu0 %v2028
  %2563 = vmatpush.bf16.msra.mxu0 %v2020
  %2564 = vmatpush.bf16.msra.mxu0 %v2012
  %2565 = vmatpush.bf16.msra.mxu0 %v2004
  %2566 = vmatpush.bf16.msra.mxu0 %v1996
  %2567 = vmatmul.bf16.gmra.mxu0 %v967
  %v2568 = vpop.f32.mrf.mxu0
  %v2569 = vadd.f32 0.0, %v2568
  %v2570 = vpop.f32.mrf.mxu0
  %2571 = vdwg.mxu0
  %2572 = vmatpush.bf16.msra.mxu0 %v2116
  %2573 = vmatpush.bf16.msra.mxu0 %v2108
  %2574 = vmatpush.bf16.msra.mxu0 %v2100
  %2575 = vmatpush.bf16.msra.mxu0 %v2092
  %2576 = vmatpush.bf16.msra.mxu0 %v2084
  %2577 = vmatpush.bf16.msra.mxu0 %v2076
  %2578 = vmatpush.bf16.msra.mxu0 %v2068
  %2579 = vmatpush.bf16.msra.mxu0 %v2060
  %2580 = vmatmul.bf16.gmra.mxu0 %v968
  %v2581 = vpop.f32.mrf.mxu0
  %v2582 = vadd.f32 %v2569, %v2581
  %v2583 = vpop.f32.mrf.mxu0
  %2584 = vdwg.mxu0
  %2585 = vmatpush.bf16.msra.mxu0 %v2180
  %2586 = vmatpush.bf16.msra.mxu0 %v2172
  %2587 = vmatpush.bf16.msra.mxu0 %v2164
  %2588 = vmatpush.bf16.msra.mxu0 %v2156
  %2589 = vmatpush.bf16.msra.mxu0 %v2148
  %2590 = vmatpush.bf16.msra.mxu0 %v2140
  %2591 = vmatpush.bf16.msra.mxu0 %v2132
  %2592 = vmatpush.bf16.msra.mxu0 %v2124
  %2593 = vmatmul.bf16.gmra.mxu0 %v969
  %v2594 = vpop.f32.mrf.mxu0
  %v2595 = vadd.f32 %v2582, %v2594
  %v2596 = vpop.f32.mrf.mxu0
  %2597 = vdwg.mxu0
  %2598 = vmatpush.bf16.msra.mxu0 %v2244
  %2599 = vmatpush.bf16.msra.mxu0 %v2236
  %2600 = vmatpush.bf16.msra.mxu0 %v2228
  %2601 = vmatpush.bf16.msra.mxu0 %v2220
  %2602 = vmatpush.bf16.msra.mxu0 %v2212
  %2603 = vmatpush.bf16.msra.mxu0 %v2204
  %2604 = vmatpush.bf16.msra.mxu0 %v2196
  %2605 = vmatpush.bf16.msra.mxu0 %v2188
  %2606 = vmatmul.bf16.gmra.mxu0 %v970
  %v2607 = vpop.f32.mrf.mxu0
  %v2608 = vadd.f32 %v2595, %v2607
  %v2609 = vpop.f32.mrf.mxu0
  %2610 = vdwg.mxu0
  %2611 = vmatpush.bf16.msra.mxu0 %v2053
  %2612 = vmatpush.bf16.msra.mxu0 %v2045
  %2613 = vmatpush.bf16.msra.mxu0 %v2037
  %2614 = vmatpush.bf16.msra.mxu0 %v2029
  %2615 = vmatpush.bf16.msra.mxu0 %v2021
  %2616 = vmatpush.bf16.msra.mxu0 %v2013
  %2617 = vmatpush.bf16.msra.mxu0 %v2005
  %2618 = vmatpush.bf16.msra.mxu0 %v1997
  %2619 = vmatmul.bf16.gmra.mxu0 %v967
  %v2620 = vpop.f32.mrf.mxu0
  %v2621 = vadd.f32 0.0, %v2620
  %v2622 = vpop.f32.mrf.mxu0
  %2623 = vdwg.mxu0
  %2624 = vmatpush.bf16.msra.mxu0 %v2117
  %2625 = vmatpush.bf16.msra.mxu0 %v2109
  %2626 = vmatpush.bf16.msra.mxu0 %v2101
  %2627 = vmatpush.bf16.msra.mxu0 %v2093
  %2628 = vmatpush.bf16.msra.mxu0 %v2085
  %2629 = vmatpush.bf16.msra.mxu0 %v2077
  %2630 = vmatpush.bf16.msra.mxu0 %v2069
  %2631 = vmatpush.bf16.msra.mxu0 %v2061
  %2632 = vmatmul.bf16.gmra.mxu0 %v968
  %v2633 = vpop.f32.mrf.mxu0
  %v2634 = vadd.f32 %v2621, %v2633
  %v2635 = vpop.f32.mrf.mxu0
  %2636 = vdwg.mxu0
  %2637 = vmatpush.bf16.msra.mxu0 %v2181
  %2638 = vmatpush.bf16.msra.mxu0 %v2173
  %2639 = vmatpush.bf16.msra.mxu0 %v2165
  %2640 = vmatpush.bf16.msra.mxu0 %v2157
  %2641 = vmatpush.bf16.msra.mxu0 %v2149
  %2642 = vmatpush.bf16.msra.mxu0 %v2141
  %2643 = vmatpush.bf16.msra.mxu0 %v2133
  %2644 = vmatpush.bf16.msra.mxu0 %v2125
  %2645 = vmatmul.bf16.gmra.mxu0 %v969
  %v2646 = vpop.f32.mrf.mxu0
  %v2647 = vadd.f32 %v2634, %v2646
  %v2648 = vpop.f32.mrf.mxu0
  %2649 = vdwg.mxu0
  %2650 = vmatpush.bf16.msra.mxu0 %v2245
  %2651 = vmatpush.bf16.msra.mxu0 %v2237
  %2652 = vmatpush.bf16.msra.mxu0 %v2229
  %2653 = vmatpush.bf16.msra.mxu0 %v2221
  %2654 = vmatpush.bf16.msra.mxu0 %v2213
  %2655 = vmatpush.bf16.msra.mxu0 %v2205
  %2656 = vmatpush.bf16.msra.mxu0 %v2197
  %2657 = vmatpush.bf16.msra.mxu0 %v2189
  %2658 = vmatmul.bf16.gmra.mxu0 %v970
  %v2659 = vpop.f32.mrf.mxu0
  %v2660 = vadd.f32 %v2647, %v2659
  %v2661 = vpop.f32.mrf.mxu0
  %2662 = vdwg.mxu0
  %2663 = vmatpush.bf16.msra.mxu0 %v2054
  %2664 = vmatpush.bf16.msra.mxu0 %v2046
  %2665 = vmatpush.bf16.msra.mxu0 %v2038
  %2666 = vmatpush.bf16.msra.mxu0 %v2030
  %2667 = vmatpush.bf16.msra.mxu0 %v2022
  %2668 = vmatpush.bf16.msra.mxu0 %v2014
  %2669 = vmatpush.bf16.msra.mxu0 %v2006
  %2670 = vmatpush.bf16.msra.mxu0 %v1998
  %2671 = vmatmul.bf16.gmra.mxu0 %v967
  %v2672 = vpop.f32.mrf.mxu0
  %v2673 = vadd.f32 0.0, %v2672
  %v2674 = vpop.f32.mrf.mxu0
  %2675 = vdwg.mxu0
  %2676 = vmatpush.bf16.msra.mxu0 %v2118
  %2677 = vmatpush.bf16.msra.mxu0 %v2110
  %2678 = vmatpush.bf16.msra.mxu0 %v2102
  %2679 = vmatpush.bf16.msra.mxu0 %v2094
  %2680 = vmatpush.bf16.msra.mxu0 %v2086
  %2681 = vmatpush.bf16.msra.mxu0 %v2078
  %2682 = vmatpush.bf16.msra.mxu0 %v2070
  %2683 = vmatpush.bf16.msra.mxu0 %v2062
  %2684 = vmatmul.bf16.gmra.mxu0 %v968
  %v2685 = vpop.f32.mrf.mxu0
  %v2686 = vadd.f32 %v2673, %v2685
  %v2687 = vpop.f32.mrf.mxu0
  %2688 = vdwg.mxu0
  %2689 = vmatpush.bf16.msra.mxu0 %v2182
  %2690 = vmatpush.bf16.msra.mxu0 %v2174
  %2691 = vmatpush.bf16.msra.mxu0 %v2166
  %2692 = vmatpush.bf16.msra.mxu0 %v2158
  %2693 = vmatpush.bf16.msra.mxu0 %v2150
  %2694 = vmatpush.bf16.msra.mxu0 %v2142
  %2695 = vmatpush.bf16.msra.mxu0 %v2134
  %2696 = vmatpush.bf16.msra.mxu0 %v2126
  %2697 = vmatmul.bf16.gmra.mxu0 %v969
  %v2698 = vpop.f32.mrf.mxu0
  %v2699 = vadd.f32 %v2686, %v2698
  %v2700 = vpop.f32.mrf.mxu0
  %2701 = vdwg.mxu0
  %2702 = vmatpush.bf16.msra.mxu0 %v2246
  %2703 = vmatpush.bf16.msra.mxu0 %v2238
  %2704 = vmatpush.bf16.msra.mxu0 %v2230
  %2705 = vmatpush.bf16.msra.mxu0 %v2222
  %2706 = vmatpush.bf16.msra.mxu0 %v2214
  %2707 = vmatpush.bf16.msra.mxu0 %v2206
  %2708 = vmatpush.bf16.msra.mxu0 %v2198
  %2709 = vmatpush.bf16.msra.mxu0 %v2190
  %2710 = vmatmul.bf16.gmra.mxu0 %v970
  %v2711 = vpop.f32.mrf.mxu0
  %v2712 = vadd.f32 %v2699, %v2711
  %v2713 = vpop.f32.mrf.mxu0
  %2714 = vdwg.mxu0
  %2715 = vmatpush.bf16.msra.mxu0 %v2055
  %2716 = vmatpush.bf16.msra.mxu0 %v2047
  %2717 = vmatpush.bf16.msra.mxu0 %v2039
  %2718 = vmatpush.bf16.msra.mxu0 %v2031
  %2719 = vmatpush.bf16.msra.mxu0 %v2023
  %2720 = vmatpush.bf16.msra.mxu0 %v2015
  %2721 = vmatpush.bf16.msra.mxu0 %v2007
  %2722 = vmatpush.bf16.msra.mxu0 %v1999
  %2723 = vmatmul.bf16.gmra.mxu0 %v967
  %v2724 = vpop.f32.mrf.mxu0
  %v2725 = vadd.f32 0.0, %v2724
  %v2726 = vpop.f32.mrf.mxu0
  %2727 = vdwg.mxu0
  %2728 = vmatpush.bf16.msra.mxu0 %v2119
  %2729 = vmatpush.bf16.msra.mxu0 %v2111
  %2730 = vmatpush.bf16.msra.mxu0 %v2103
  %2731 = vmatpush.bf16.msra.mxu0 %v2095
  %2732 = vmatpush.bf16.msra.mxu0 %v2087
  %2733 = vmatpush.bf16.msra.mxu0 %v2079
  %2734 = vmatpush.bf16.msra.mxu0 %v2071
  %2735 = vmatpush.bf16.msra.mxu0 %v2063
  %2736 = vmatmul.bf16.gmra.mxu0 %v968
  %v2737 = vpop.f32.mrf.mxu0
  %v2738 = vadd.f32 %v2725, %v2737
  %v2739 = vpop.f32.mrf.mxu0
  %2740 = vdwg.mxu0
  %2741 = vmatpush.bf16.msra.mxu0 %v2183
  %2742 = vmatpush.bf16.msra.mxu0 %v2175
  %2743 = vmatpush.bf16.msra.mxu0 %v2167
  %2744 = vmatpush.bf16.msra.mxu0 %v2159
  %2745 = vmatpush.bf16.msra.mxu0 %v2151
  %2746 = vmatpush.bf16.msra.mxu0 %v2143
  %2747 = vmatpush.bf16.msra.mxu0 %v2135
  %2748 = vmatpush.bf16.msra.mxu0 %v2127
  %2749 = vmatmul.bf16.gmra.mxu0 %v969
  %v2750 = vpop.f32.mrf.mxu0
  %v2751 = vadd.f32 %v2738, %v2750
  %v2752 = vpop.f32.mrf.mxu0
  %2753 = vdwg.mxu0
  %2754 = vmatpush.bf16.msra.mxu0 %v2247
  %2755 = vmatpush.bf16.msra.mxu0 %v2239
  %2756 = vmatpush.bf16.msra.mxu0 %v2231
  %2757 = vmatpush.bf16.msra.mxu0 %v2223
  %2758 = vmatpush.bf16.msra.mxu0 %v2215
  %2759 = vmatpush.bf16.msra.mxu0 %v2207
  %2760 = vmatpush.bf16.msra.mxu0 %v2199
  %2761 = vmatpush.bf16.msra.mxu0 %v2191
  %2762 = vmatmul.bf16.gmra.mxu0 %v970
  %v2763 = vpop.f32.mrf.mxu0
  %v2764 = vadd.f32 %v2751, %v2763
  %v2765 = vpop.f32.mrf.mxu0
  %2766 = vdwg.mxu0
  %2767 = vmatpush.bf16.msra.mxu0 %v2056
  %2768 = vmatpush.bf16.msra.mxu0 %v2048
  %2769 = vmatpush.bf16.msra.mxu0 %v2040
  %2770 = vmatpush.bf16.msra.mxu0 %v2032
  %2771 = vmatpush.bf16.msra.mxu0 %v2024
  %2772 = vmatpush.bf16.msra.mxu0 %v2016
  %2773 = vmatpush.bf16.msra.mxu0 %v2008
  %2774 = vmatpush.bf16.msra.mxu0 %v2000
  %2775 = vmatmul.bf16.gmra.mxu0 %v967
  %v2776 = vpop.f32.mrf.mxu0
  %v2777 = vadd.f32 0.0, %v2776
  %v2778 = vpop.f32.mrf.mxu0
  %2779 = vdwg.mxu0
  %2780 = vmatpush.bf16.msra.mxu0 %v2120
  %2781 = vmatpush.bf16.msra.mxu0 %v2112
  %2782 = vmatpush.bf16.msra.mxu0 %v2104
  %2783 = vmatpush.bf16.msra.mxu0 %v2096
  %2784 = vmatpush.bf16.msra.mxu0 %v2088
  %2785 = vmatpush.bf16.msra.mxu0 %v2080
  %2786 = vmatpush.bf16.msra.mxu0 %v2072
  %2787 = vmatpush.bf16.msra.mxu0 %v2064
  %2788 = vmatmul.bf16.gmra.mxu0 %v968
  %v2789 = vpop.f32.mrf.mxu0
  %v2790 = vadd.f32 %v2777, %v2789
  %v2791 = vpop.f32.mrf.mxu0
  %2792 = vdwg.mxu0
  %2793 = vmatpush.bf16.msra.mxu0 %v2184
  %2794 = vmatpush.bf16.msra.mxu0 %v2176
  %2795 = vmatpush.bf16.msra.mxu0 %v2168
  %2796 = vmatpush.bf16.msra.mxu0 %v2160
  %2797 = vmatpush.bf16.msra.mxu0 %v2152
  %2798 = vmatpush.bf16.msra.mxu0 %v2144
  %2799 = vmatpush.bf16.msra.mxu0 %v2136
  %2800 = vmatpush.bf16.msra.mxu0 %v2128
  %2801 = vmatmul.bf16.gmra.mxu0 %v969
  %v2802 = vpop.f32.mrf.mxu0
  %v2803 = vadd.f32 %v2790, %v2802
  %v2804 = vpop.f32.mrf.mxu0
  %2805 = vdwg.mxu0
  %2806 = vmatpush.bf16.msra.mxu0 %v2248
  %2807 = vmatpush.bf16.msra.mxu0 %v2240
  %2808 = vmatpush.bf16.msra.mxu0 %v2232
  %2809 = vmatpush.bf16.msra.mxu0 %v2224
  %2810 = vmatpush.bf16.msra.mxu0 %v2216
  %2811 = vmatpush.bf16.msra.mxu0 %v2208
  %2812 = vmatpush.bf16.msra.mxu0 %v2200
  %2813 = vmatpush.bf16.msra.mxu0 %v2192
  %2814 = vmatmul.bf16.gmra.mxu0 %v970
  %v2815 = vpop.f32.mrf.mxu0
  %v2816 = vadd.f32 %v2803, %v2815
  %v2817 = vpop.f32.mrf.mxu0
  %2818 = vdwg.mxu0
  %2819 = vmatpush.bf16.msra.mxu0 %v2057
  %2820 = vmatpush.bf16.msra.mxu0 %v2049
  %2821 = vmatpush.bf16.msra.mxu0 %v2041
  %2822 = vmatpush.bf16.msra.mxu0 %v2033
  %2823 = vmatpush.bf16.msra.mxu0 %v2025
  %2824 = vmatpush.bf16.msra.mxu0 %v2017
  %2825 = vmatpush.bf16.msra.mxu0 %v2009
  %2826 = vmatpush.bf16.msra.mxu0 %v2001
  %2827 = vmatmul.bf16.gmra.mxu0 %v967
  %v2828 = vpop.f32.mrf.mxu0
  %v2829 = vadd.f32 0.0, %v2828
  %v2830 = vpop.f32.mrf.mxu0
  %2831 = vdwg.mxu0
  %2832 = vmatpush.bf16.msra.mxu0 %v2121
  %2833 = vmatpush.bf16.msra.mxu0 %v2113
  %2834 = vmatpush.bf16.msra.mxu0 %v2105
  %2835 = vmatpush.bf16.msra.mxu0 %v2097
  %2836 = vmatpush.bf16.msra.mxu0 %v2089
  %2837 = vmatpush.bf16.msra.mxu0 %v2081
  %2838 = vmatpush.bf16.msra.mxu0 %v2073
  %2839 = vmatpush.bf16.msra.mxu0 %v2065
  %2840 = vmatmul.bf16.gmra.mxu0 %v968
  %v2841 = vpop.f32.mrf.mxu0
  %v2842 = vadd.f32 %v2829, %v2841
  %v2843 = vpop.f32.mrf.mxu0
  %2844 = vdwg.mxu0
  %2845 = vmatpush.bf16.msra.mxu0 %v2185
  %2846 = vmatpush.bf16.msra.mxu0 %v2177
  %2847 = vmatpush.bf16.msra.mxu0 %v2169
  %2848 = vmatpush.bf16.msra.mxu0 %v2161
  %2849 = vmatpush.bf16.msra.mxu0 %v2153
  %2850 = vmatpush.bf16.msra.mxu0 %v2145
  %2851 = vmatpush.bf16.msra.mxu0 %v2137
  %2852 = vmatpush.bf16.msra.mxu0 %v2129
  %2853 = vmatmul.bf16.gmra.mxu0 %v969
  %v2854 = vpop.f32.mrf.mxu0
  %v2855 = vadd.f32 %v2842, %v2854
  %v2856 = vpop.f32.mrf.mxu0
  %2857 = vdwg.mxu0
  %2858 = vmatpush.bf16.msra.mxu0 %v2249
  %2859 = vmatpush.bf16.msra.mxu0 %v2241
  %2860 = vmatpush.bf16.msra.mxu0 %v2233
  %2861 = vmatpush.bf16.msra.mxu0 %v2225
  %2862 = vmatpush.bf16.msra.mxu0 %v2217
  %2863 = vmatpush.bf16.msra.mxu0 %v2209
  %2864 = vmatpush.bf16.msra.mxu0 %v2201
  %2865 = vmatpush.bf16.msra.mxu0 %v2193
  %2866 = vmatmul.bf16.gmra.mxu0 %v970
  %v2867 = vpop.f32.mrf.mxu0
  %v2868 = vadd.f32 %v2855, %v2867
  %v2869 = vpop.f32.mrf.mxu0
  %2870 = vdwg.mxu0
  %2871 = vmatpush.bf16.msra.mxu0 %v2058
  %2872 = vmatpush.bf16.msra.mxu0 %v2050
  %2873 = vmatpush.bf16.msra.mxu0 %v2042
  %2874 = vmatpush.bf16.msra.mxu0 %v2034
  %2875 = vmatpush.bf16.msra.mxu0 %v2026
  %2876 = vmatpush.bf16.msra.mxu0 %v2018
  %2877 = vmatpush.bf16.msra.mxu0 %v2010
  %2878 = vmatpush.bf16.msra.mxu0 %v2002
  %2879 = vmatmul.bf16.gmra.mxu0 %v967
  %v2880 = vpop.f32.mrf.mxu0
  %v2881 = vadd.f32 0.0, %v2880
  %v2882 = vpop.f32.mrf.mxu0
  %2883 = vdwg.mxu0
  %2884 = vmatpush.bf16.msra.mxu0 %v2122
  %2885 = vmatpush.bf16.msra.mxu0 %v2114
  %2886 = vmatpush.bf16.msra.mxu0 %v2106
  %2887 = vmatpush.bf16.msra.mxu0 %v2098
  %2888 = vmatpush.bf16.msra.mxu0 %v2090
  %2889 = vmatpush.bf16.msra.mxu0 %v2082
  %2890 = vmatpush.bf16.msra.mxu0 %v2074
  %2891 = vmatpush.bf16.msra.mxu0 %v2066
  %2892 = vmatmul.bf16.gmra.mxu0 %v968
  %v2893 = vpop.f32.mrf.mxu0
  %v2894 = vadd.f32 %v2881, %v2893
  %v2895 = vpop.f32.mrf.mxu0
  %2896 = vdwg.mxu0
  %2897 = vmatpush.bf16.msra.mxu0 %v2186
  %2898 = vmatpush.bf16.msra.mxu0 %v2178
  %2899 = vmatpush.bf16.msra.mxu0 %v2170
  %2900 = vmatpush.bf16.msra.mxu0 %v2162
  %2901 = vmatpush.bf16.msra.mxu0 %v2154
  %2902 = vmatpush.bf16.msra.mxu0 %v2146
  %2903 = vmatpush.bf16.msra.mxu0 %v2138
  %2904 = vmatpush.bf16.msra.mxu0 %v2130
  %2905 = vmatmul.bf16.gmra.mxu0 %v969
  %v2906 = vpop.f32.mrf.mxu0
  %v2907 = vadd.f32 %v2894, %v2906
  %v2908 = vpop.f32.mrf.mxu0
  %2909 = vdwg.mxu0
  %2910 = vmatpush.bf16.msra.mxu0 %v2250
  %2911 = vmatpush.bf16.msra.mxu0 %v2242
  %2912 = vmatpush.bf16.msra.mxu0 %v2234
  %2913 = vmatpush.bf16.msra.mxu0 %v2226
  %2914 = vmatpush.bf16.msra.mxu0 %v2218
  %2915 = vmatpush.bf16.msra.mxu0 %v2210
  %2916 = vmatpush.bf16.msra.mxu0 %v2202
  %2917 = vmatpush.bf16.msra.mxu0 %v2194
  %2918 = vmatmul.bf16.gmra.mxu0 %v970
  %v2919 = vpop.f32.mrf.mxu0
  %v2920 = vadd.f32 %v2907, %v2919
  %v2921 = vpop.f32.mrf.mxu0
  %2922 = vdwg.mxu0
  %v2923 = vrot.slane %v2556, 4
  %v2924 = vadd.f32 %v2556, %v2923
  %v2925 = vrot.slane %v2924, 2
  %v2926 = vadd.f32 %v2924, %v2925
  %v2927 = vrot.slane %v2926, 1
  %v2928 = vadd.f32 %v2926, %v2927
  %v2929 = vrot.slane %v2608, 4
  %v2930 = vadd.f32 %v2608, %v2929
  %v2931 = vrot.slane %v2930, 2
  %v2932 = vadd.f32 %v2930, %v2931
  %v2933 = vrot.slane %v2932, 1
  %v2934 = vadd.f32 %v2932, %v2933
  %v2935 = vrot.slane %v2660, 4
  %v2936 = vadd.f32 %v2660, %v2935
  %v2937 = vrot.slane %v2936, 2
  %v2938 = vadd.f32 %v2936, %v2937
  %v2939 = vrot.slane %v2938, 1
  %v2940 = vadd.f32 %v2938, %v2939
  %v2941 = vrot.slane %v2712, 4
  %v2942 = vadd.f32 %v2712, %v2941
  %v2943 = vrot.slane %v2942, 2
  %v2944 = vadd.f32 %v2942, %v2943
  %v2945 = vrot.slane %v2944, 1
  %v2946 = vadd.f32 %v2944, %v2945
  %v2947 = vrot.slane %v2764, 4
  %v2948 = vadd.f32 %v2764, %v2947
  %v2949 = vrot.slane %v2948, 2
  %v2950 = vadd.f32 %v2948, %v2949
  %v2951 = vrot.slane %v2950, 1
  %v2952 = vadd.f32 %v2950, %v2951
  %v2953 = vrot.slane %v2816, 4
  %v2954 = vadd.f32 %v2816, %v2953
  %v2955 = vrot.slane %v2954, 2
  %v2956 = vadd.f32 %v2954, %v2955
  %v2957 = vrot.slane %v2956, 1
  %v2958 = vadd.f32 %v2956, %v2957
  %v2959 = vrot.slane %v2868, 4
  %v2960 = vadd.f32 %v2868, %v2959
  %v2961 = vrot.slane %v2960, 2
  %v2962 = vadd.f32 %v2960, %v2961
  %v2963 = vrot.slane %v2962, 1
  %v2964 = vadd.f32 %v2962, %v2963
  %v2965 = vrot.slane %v2920, 4
  %v2966 = vadd.f32 %v2920, %v2965
  %v2967 = vrot.slane %v2966, 2
  %v2968 = vadd.f32 %v2966, %v2967
  %v2969 = vrot.slane %v2968, 1
  %v2970 = vadd.f32 %v2968, %v2969
  %v2971 = vmul.f32 %v2928, %v262
  %v2972 = vmul.f32 %v2934, %v262
  %v2973 = vmul.f32 %v2940, %v262
  %v2974 = vmul.f32 %v2946, %v262
  %v2975 = vmul.f32 %v2952, %v262
  %v2976 = vmul.f32 %v2958, %v262
  %v2977 = vmul.f32 %v2964, %v262
  %v2978 = vmul.f32 %v2970, %v262
  %v2979 = vsub.f32 %v2556, %v2971
  %v2980 = vsub.f32 %v2608, %v2972
  %v2981 = vsub.f32 %v2660, %v2973
  %v2982 = vsub.f32 %v2712, %v2974
  %v2983 = vsub.f32 %v2764, %v2975
  %v2984 = vsub.f32 %v2816, %v2976
  %v2985 = vsub.f32 %v2868, %v2977
  %v2986 = vsub.f32 %v2920, %v2978
  %v2987 = vmul.f32 %v2979, %v2979
  %v2988 = vmul.f32 %v2980, %v2980
  %v2989 = vmul.f32 %v2981, %v2981
  %v2990 = vmul.f32 %v2982, %v2982
  %v2991 = vmul.f32 %v2983, %v2983
  %v2992 = vmul.f32 %v2984, %v2984
  %v2993 = vmul.f32 %v2985, %v2985
  %v2994 = vmul.f32 %v2986, %v2986
  %v2995 = vrot.slane %v2987, 4
  %v2996 = vadd.f32 %v2987, %v2995
  %v2997 = vrot.slane %v2996, 2
  %v2998 = vadd.f32 %v2996, %v2997
  %v2999 = vrot.slane %v2998, 1
  %v3000 = vadd.f32 %v2998, %v2999
  %v3001 = vrot.slane %v2988, 4
  %v3002 = vadd.f32 %v2988, %v3001
  %v3003 = vrot.slane %v3002, 2
  %v3004 = vadd.f32 %v3002, %v3003
  %v3005 = vrot.slane %v3004, 1
  %v3006 = vadd.f32 %v3004, %v3005
  %v3007 = vrot.slane %v2989, 4
  %v3008 = vadd.f32 %v2989, %v3007
  %v3009 = vrot.slane %v3008, 2
  %v3010 = vadd.f32 %v3008, %v3009
  %v3011 = vrot.slane %v3010, 1
  %v3012 = vadd.f32 %v3010, %v3011
  %v3013 = vrot.slane %v2990, 4
  %v3014 = vadd.f32 %v2990, %v3013
  %v3015 = vrot.slane %v3014, 2
  %v3016 = vadd.f32 %v3014, %v3015
  %v3017 = vrot.slane %v3016, 1
  %v3018 = vadd.f32 %v3016, %v3017
  %v3019 = vrot.slane %v2991, 4
  %v3020 = vadd.f32 %v2991, %v3019
  %v3021 = vrot.slane %v3020, 2
  %v3022 = vadd.f32 %v3020, %v3021
  %v3023 = vrot.slane %v3022, 1
  %v3024 = vadd.f32 %v3022, %v3023
  %v3025 = vrot.slane %v2992, 4
  %v3026 = vadd.f32 %v2992, %v3025
  %v3027 = vrot.slane %v3026, 2
  %v3028 = vadd.f32 %v3026, %v3027
  %v3029 = vrot.slane %v3028, 1
  %v3030 = vadd.f32 %v3028, %v3029
  %v3031 = vrot.slane %v2993, 4
  %v3032 = vadd.f32 %v2993, %v3031
  %v3033 = vrot.slane %v3032, 2
  %v3034 = vadd.f32 %v3032, %v3033
  %v3035 = vrot.slane %v3034, 1
  %v3036 = vadd.f32 %v3034, %v3035
  %v3037 = vrot.slane %v2994, 4
  %v3038 = vadd.f32 %v2994, %v3037
  %v3039 = vrot.slane %v3038, 2
  %v3040 = vadd.f32 %v3038, %v3039
  %v3041 = vrot.slane %v3040, 1
  %v3042 = vadd.f32 %v3040, %v3041
  %v3043 = vmul.f32 %v3000, %v262
  %v3044 = vmul.f32 %v3006, %v262
  %v3045 = vmul.f32 %v3012, %v262
  %v3046 = vmul.f32 %v3018, %v262
  %v3047 = vmul.f32 %v3024, %v262
  %v3048 = vmul.f32 %v3030, %v262
  %v3049 = vmul.f32 %v3036, %v262
  %v3050 = vmul.f32 %v3042, %v262
  %v3052 = vperm.slane %v48, 0
  %v3053 = vperm.slane %v48, 1
  %v3054 = vperm.slane %v48, 2
  %v3055 = vperm.slane %v48, 3
  %v3056 = vperm.slane %v48, 4
  %v3057 = vperm.slane %v48, 5
  %v3058 = vperm.slane %v48, 6
  %v3059 = vperm.slane %v48, 7
  %v3068 = vmul.f32 %v3052, %v2979
  %v3069 = vmul.f32 %v3053, %v2980
  %v3070 = vmul.f32 %v3054, %v2981
  %v3071 = vmul.f32 %v3055, %v2982
  %v3072 = vmul.f32 %v3056, %v2983
  %v3073 = vmul.f32 %v3057, %v2984
  %v3074 = vmul.f32 %v3058, %v2985
  %v3075 = vmul.f32 %v3059, %v2986
  %v3076 = vadd.f32 %v3043, 1e-05
  %v3077 = vadd.f32 %v3044, 1e-05
  %v3078 = vadd.f32 %v3045, 1e-05
  %v3079 = vadd.f32 %v3046, 1e-05
  %v3080 = vadd.f32 %v3047, 1e-05
  %v3081 = vadd.f32 %v3048, 1e-05
  %v3082 = vadd.f32 %v3049, 1e-05
  %v3083 = vadd.f32 %v3050, 1e-05
  %v3084 = vrsqrt.pop %v3076
  %v3085 = vmul.f32 %v3084, %v3076
  %v3086 = vmul.f32 %v3085, %v3084
  %v3087 = vmul.f32 0.5, %v3086
  %v3088 = vsub.f32 1.5, %v3087
  %v3089 = vmul.f32 %v3084, %v3088
  %vm3090 = vweird.f32 %v3076
  %vm3091 = vweird.f32 %v3084
  %vm3092 = vmor %vm3090, %vm3091
  %v3093 = vsel %vm3092, %v3084, %v3089
  %v3094 = vrsqrt.pop %v3077
  %v3095 = vmul.f32 %v3094, %v3077
  %v3096 = vmul.f32 %v3095, %v3094
  %v3097 = vmul.f32 0.5, %v3096
  %v3098 = vsub.f32 1.5, %v3097
  %v3099 = vmul.f32 %v3094, %v3098
  %vm3100 = vweird.f32 %v3077
  %vm3101 = vweird.f32 %v3094
  %vm3102 = vmor %vm3100, %vm3101
  %v3103 = vsel %vm3102, %v3094, %v3099
  %v3104 = vrsqrt.pop %v3078
  %v3105 = vmul.f32 %v3104, %v3078
  %v3106 = vmul.f32 %v3105, %v3104
  %v3107 = vmul.f32 0.5, %v3106
  %v3108 = vsub.f32 1.5, %v3107
  %v3109 = vmul.f32 %v3104, %v3108
  %vm3110 = vweird.f32 %v3078
  %vm3111 = vweird.f32 %v3104
  %vm3112 = vmor %vm3110, %vm3111
  %v3113 = vsel %vm3112, %v3104, %v3109
  %v3114 = vrsqrt.pop %v3079
  %v3115 = vmul.f32 %v3114, %v3079
  %v3116 = vmul.f32 %v3115, %v3114
  %v3117 = vmul.f32 0.5, %v3116
  %v3118 = vsub.f32 1.5, %v3117
  %v3119 = vmul.f32 %v3114, %v3118
  %vm3120 = vweird.f32 %v3079
  %vm3121 = vweird.f32 %v3114
  %vm3122 = vmor %vm3120, %vm3121
  %v3123 = vsel %vm3122, %v3114, %v3119
  %v3124 = vrsqrt.pop %v3080
  %v3125 = vmul.f32 %v3124, %v3080
  %v3126 = vmul.f32 %v3125, %v3124
  %v3127 = vmul.f32 0.5, %v3126
  %v3128 = vsub.f32 1.5, %v3127
  %v3129 = vmul.f32 %v3124, %v3128
  %vm3130 = vweird.f32 %v3080
  %vm3131 = vweird.f32 %v3124
  %vm3132 = vmor %vm3130, %vm3131
  %v3133 = vsel %vm3132, %v3124, %v3129
  %v3134 = vrsqrt.pop %v3081
  %v3135 = vmul.f32 %v3134, %v3081
  %v3136 = vmul.f32 %v3135, %v3134
  %v3137 = vmul.f32 0.5, %v3136
  %v3138 = vsub.f32 1.5, %v3137
  %v3139 = vmul.f32 %v3134, %v3138
  %vm3140 = vweird.f32 %v3081
  %vm3141 = vweird.f32 %v3134
  %vm3142 = vmor %vm3140, %vm3141
  %v3143 = vsel %vm3142, %v3134, %v3139
  %v3144 = vrsqrt.pop %v3082
  %v3145 = vmul.f32 %v3144, %v3082
  %v3146 = vmul.f32 %v3145, %v3144
  %v3147 = vmul.f32 0.5, %v3146
  %v3148 = vsub.f32 1.5, %v3147
  %v3149 = vmul.f32 %v3144, %v3148
  %vm3150 = vweird.f32 %v3082
  %vm3151 = vweird.f32 %v3144
  %vm3152 = vmor %vm3150, %vm3151
  %v3153 = vsel %vm3152, %v3144, %v3149
  %v3154 = vrsqrt.pop %v3083
  %v3155 = vmul.f32 %v3154, %v3083
  %v3156 = vmul.f32 %v3155, %v3154
  %v3157 = vmul.f32 0.5, %v3156
  %v3158 = vsub.f32 1.5, %v3157
  %v3159 = vmul.f32 %v3154, %v3158
  %vm3160 = vweird.f32 %v3083
  %vm3161 = vweird.f32 %v3154
  %vm3162 = vmor %vm3160, %vm3161
  %v3163 = vsel %vm3162, %v3154, %v3159
  %v3164 = vmul.f32 %v3068, %v3093
  %v3165 = vmul.f32 %v3069, %v3103
  %v3166 = vmul.f32 %v3070, %v3113
  %v3167 = vmul.f32 %v3071, %v3123
  %v3168 = vmul.f32 %v3072, %v3133
  %v3169 = vmul.f32 %v3073, %v3143
  %v3170 = vmul.f32 %v3074, %v3153
  %v3171 = vmul.f32 %v3075, %v3163
  %v3173 = vperm.slane %v49, 0
  %v3174 = vperm.slane %v49, 1
  %v3175 = vperm.slane %v49, 2
  %v3176 = vperm.slane %v49, 3
  %v3177 = vperm.slane %v49, 4
  %v3178 = vperm.slane %v49, 5
  %v3179 = vperm.slane %v49, 6
  %v3180 = vperm.slane %v49, 7
  %v3189 = vadd.f32 %v3164, %v3173
  %v3190 = vadd.f32 %v3165, %v3174
  %v3191 = vadd.f32 %v3166, %v3175
  %v3192 = vadd.f32 %v3167, %v3176
  %v3193 = vadd.f32 %v3168, %v3177
  %v3194 = vadd.f32 %v3169, %v3178
  %v3195 = vadd.f32 %v3170, %v3179
  %v3196 = vadd.f32 %v3171, %v3180
  %vm3197 = vcmp.ge.f32.partialorder %v3189, 0.0
  %vm3198 = vcmp.ge.f32.partialorder %v3190, 0.0
  %vm3199 = vcmp.ge.f32.partialorder %v3191, 0.0
  %vm3200 = vcmp.ge.f32.partialorder %v3192, 0.0
  %vm3201 = vcmp.ge.f32.partialorder %v3193, 0.0
  %vm3202 = vcmp.ge.f32.partialorder %v3194, 0.0
  %vm3203 = vcmp.ge.f32.partialorder %v3195, 0.0
  %vm3204 = vcmp.ge.f32.partialorder %v3196, 0.0
  %v3205 = vmul.f32 %v3189, 0.2
  %v3206 = vmul.f32 %v3190, 0.2
  %v3207 = vmul.f32 %v3191, 0.2
  %v3208 = vmul.f32 %v3192, 0.2
  %v3209 = vmul.f32 %v3193, 0.2
  %v3210 = vmul.f32 %v3194, 0.2
  %v3211 = vmul.f32 %v3195, 0.2
  %v3212 = vmul.f32 %v3196, 0.2
  %v3213 = vsel %vm3197, %v3189, %v3205
  %v3214 = vsel %vm3198, %v3190, %v3206
  %v3215 = vsel %vm3199, %v3191, %v3207
  %v3216 = vsel %vm3200, %v3192, %v3208
  %v3217 = vsel %vm3201, %v3193, %v3209
  %v3218 = vsel %vm3202, %v3194, %v3210
  %v3219 = vsel %vm3203, %v3195, %v3211
  %v3220 = vsel %vm3204, %v3196, %v3212
  %v3221 = vpack.c.bf16 %v3213, %v3213
  %v3222 = vpack.c.bf16 %v3214, %v3214
  %v3223 = vpack.c.bf16 %v3215, %v3215
  %v3224 = vpack.c.bf16 %v3216, %v3216
  %v3225 = vpack.c.bf16 %v3217, %v3217
  %v3226 = vpack.c.bf16 %v3218, %v3218
  %v3227 = vpack.c.bf16 %v3219, %v3219
  %v3228 = vpack.c.bf16 %v3220, %v3220
  %v3229 = vld [vmem:[%s7] sm:$0xff]
  %v3230 = vld [vmem:[%s7 + $0x8] sm:$0xff]
  %v3231 = vld [vmem:[%s7 + $0x10] sm:$0xff]
  %v3232 = vld [vmem:[%s7 + $0x18] sm:$0xf]
  %v3233 = vld [vmem:[%s7 + $0x1c] sm:$0xff]
  %v3234 = vld [vmem:[%s7 + $0x24] sm:$0xff]
  %v3235 = vld [vmem:[%s7 + $0x2c] sm:$0xff]
  %v3236 = vld [vmem:[%s7 + $0x34] sm:$0xf]
  %v3237 = vld [vmem:[%s7 + $0x38] sm:$0xff]
  %v3238 = vld [vmem:[%s7 + $0x40] sm:$0xff]
  %v3239 = vld [vmem:[%s7 + $0x48] sm:$0xff]
  %v3240 = vld [vmem:[%s7 + $0x50] sm:$0xf]
  %v3241 = vld [vmem:[%s7 + $0x54] sm:$0xff]
  %v3242 = vld [vmem:[%s7 + $0x5c] sm:$0xff]
  %v3243 = vld [vmem:[%s7 + $0x64] sm:$0xff]
  %v3244 = vld [vmem:[%s7 + $0x6c] sm:$0xf]
  %v3245 = vld [vmem:[%s7 + $0x70] sm:$0xff]
  %v3246 = vld [vmem:[%s7 + $0x78] sm:$0xff]
  %v3247 = vld [vmem:[%s7 + $0x80] sm:$0xff]
  %v3248 = vld [vmem:[%s7 + $0x88] sm:$0xf]
  %v3249 = vld [vmem:[%s7 + $0x8c] sm:$0xff]
  %v3250 = vld [vmem:[%s7 + $0x94] sm:$0xff]
  %v3251 = vld [vmem:[%s7 + $0x9c] sm:$0xff]
  %v3252 = vld [vmem:[%s7 + $0xa4] sm:$0xf]
  %v3253 = vld [vmem:[%s7 + $0xa8] sm:$0xff]
  %v3254 = vld [vmem:[%s7 + $0xb0] sm:$0xff]
  %v3255 = vld [vmem:[%s7 + $0xb8] sm:$0xff]
  %v3256 = vld [vmem:[%s7 + $0xc0] sm:$0xf]
  %v3257 = vld [vmem:[%s7 + $0xc4] sm:$0xff]
  %v3258 = vld [vmem:[%s7 + $0xcc] sm:$0xff]
  %v3259 = vld [vmem:[%s7 + $0xd4] sm:$0xff]
  %v3260 = vld [vmem:[%s7 + $0xdc] sm:$0xf]
  %v3261 = vld [vmem:[%s7 + $0xe0] sm:$0xff]
  %v3262 = vld [vmem:[%s7 + $0xe8] sm:$0xff]
  %v3263 = vld [vmem:[%s7 + $0xf0] sm:$0xff]
  %v3264 = vld [vmem:[%s7 + $0xf8] sm:$0xf]
  %v3265 = vld [vmem:[%s7 + $0xfc] sm:$0xff]
  %v3266 = vld [vmem:[%s7 + $0x104] sm:$0xff]
  %v3267 = vld [vmem:[%s7 + $0x10c] sm:$0xff]
  %v3268 = vld [vmem:[%s7 + $0x114] sm:$0xf]
  %v3269 = vld [vmem:[%s7 + $0x118] sm:$0xff]
  %v3270 = vld [vmem:[%s7 + $0x120] sm:$0xff]
  %v3271 = vld [vmem:[%s7 + $0x128] sm:$0xff]
  %v3272 = vld [vmem:[%s7 + $0x130] sm:$0xf]
  %v3273 = vld [vmem:[%s7 + $0x134] sm:$0xff]
  %v3274 = vld [vmem:[%s7 + $0x13c] sm:$0xff]
  %v3275 = vld [vmem:[%s7 + $0x144] sm:$0xff]
  %v3276 = vld [vmem:[%s7 + $0x14c] sm:$0xf]
  %v3277 = vld [vmem:[%s7 + $0x150] sm:$0xff]
  %v3278 = vld [vmem:[%s7 + $0x158] sm:$0xff]
  %v3279 = vld [vmem:[%s7 + $0x160] sm:$0xff]
  %v3280 = vld [vmem:[%s7 + $0x168] sm:$0xf]
  %v3281 = vld [vmem:[%s7 + $0x16c] sm:$0xff]
  %v3282 = vld [vmem:[%s7 + $0x174] sm:$0xff]
  %v3283 = vld [vmem:[%s7 + $0x17c] sm:$0xff]
  %v3284 = vld [vmem:[%s7 + $0x184] sm:$0xf]
  %v3285 = vld [vmem:[%s7 + $0x188] sm:$0xff]
  %v3286 = vld [vmem:[%s7 + $0x190] sm:$0xff]
  %v3287 = vld [vmem:[%s7 + $0x198] sm:$0xff]
  %v3288 = vld [vmem:[%s7 + $0x1a0] sm:$0xf]
  %v3289 = vld [vmem:[%s7 + $0x1a4] sm:$0xff]
  %v3290 = vld [vmem:[%s7 + $0x1ac] sm:$0xff]
  %v3291 = vld [vmem:[%s7 + $0x1b4] sm:$0xff]
  %v3292 = vld [vmem:[%s7 + $0x1bc] sm:$0xf]
  %v3293 = vld [vmem:[%s7 + $0x1c0] sm:$0xff]
  %v3294 = vld [vmem:[%s7 + $0x1c8] sm:$0xff]
  %v3295 = vld [vmem:[%s7 + $0x1d0] sm:$0xff]
  %v3296 = vld [vmem:[%s7 + $0x1d8] sm:$0xf]
  %v3297 = vld [vmem:[%s7 + $0x1dc] sm:$0xff]
  %v3298 = vld [vmem:[%s7 + $0x1e4] sm:$0xff]
  %v3299 = vld [vmem:[%s7 + $0x1ec] sm:$0xff]
  %v3300 = vld [vmem:[%s7 + $0x1f4] sm:$0xf]
  %v3301 = vld [vmem:[%s7 + $0x1f8] sm:$0xff]
  %v3302 = vld [vmem:[%s7 + $0x200] sm:$0xff]
  %v3303 = vld [vmem:[%s7 + $0x208] sm:$0xff]
  %v3304 = vld [vmem:[%s7 + $0x210] sm:$0xf]
  %v3305 = vld [vmem:[%s7 + $0x214] sm:$0xff]
  %v3306 = vld [vmem:[%s7 + $0x21c] sm:$0xff]
  %v3307 = vld [vmem:[%s7 + $0x224] sm:$0xff]
  %v3308 = vld [vmem:[%s7 + $0x22c] sm:$0xf]
  %v3309 = vld [vmem:[%s7 + $0x230] sm:$0xff]
  %v3310 = vld [vmem:[%s7 + $0x238] sm:$0xff]
  %v3311 = vld [vmem:[%s7 + $0x240] sm:$0xff]
  %v3312 = vld [vmem:[%s7 + $0x248] sm:$0xf]
  %v3313 = vld [vmem:[%s7 + $0x24c] sm:$0xff]
  %v3314 = vld [vmem:[%s7 + $0x254] sm:$0xff]
  %v3315 = vld [vmem:[%s7 + $0x25c] sm:$0xff]
  %v3316 = vld [vmem:[%s7 + $0x264] sm:$0xf]
  %v3317 = vld [vmem:[%s7 + $0x268] sm:$0xff]
  %v3318 = vld [vmem:[%s7 + $0x270] sm:$0xff]
  %v3319 = vld [vmem:[%s7 + $0x278] sm:$0xff]
  %v3320 = vld [vmem:[%s7 + $0x280] sm:$0xf]
  %v3321 = vld [vmem:[%s7 + $0x284] sm:$0xff]
  %v3322 = vld [vmem:[%s7 + $0x28c] sm:$0xff]
  %v3323 = vld [vmem:[%s7 + $0x294] sm:$0xff]
  %v3324 = vld [vmem:[%s7 + $0x29c] sm:$0xf]
  %v3325 = vld [vmem:[%s7 + $0x2a0] sm:$0xff]
  %v3326 = vld [vmem:[%s7 + $0x2a8] sm:$0xff]
  %v3327 = vld [vmem:[%s7 + $0x2b0] sm:$0xff]
  %v3328 = vld [vmem:[%s7 + $0x2b8] sm:$0xf]
  %v3329 = vld [vmem:[%s7 + $0x2bc] sm:$0xff]
  %v3330 = vld [vmem:[%s7 + $0x2c4] sm:$0xff]
  %v3331 = vld [vmem:[%s7 + $0x2cc] sm:$0xff]
  %v3332 = vld [vmem:[%s7 + $0x2d4] sm:$0xf]
  %v3333 = vld [vmem:[%s7 + $0x2d8] sm:$0xff]
  %v3334 = vld [vmem:[%s7 + $0x2e0] sm:$0xff]
  %v3335 = vld [vmem:[%s7 + $0x2e8] sm:$0xff]
  %v3336 = vld [vmem:[%s7 + $0x2f0] sm:$0xf]
  %v3337 = vld [vmem:[%s7 + $0x2f4] sm:$0xff]
  %v3338 = vld [vmem:[%s7 + $0x2fc] sm:$0xff]
  %v3339 = vld [vmem:[%s7 + $0x304] sm:$0xff]
  %v3340 = vld [vmem:[%s7 + $0x30c] sm:$0xf]
  %v3341 = vld [vmem:[%s7 + $0x310] sm:$0xff]
  %v3342 = vld [vmem:[%s7 + $0x318] sm:$0xff]
  %v3343 = vld [vmem:[%s7 + $0x320] sm:$0xff]
  %v3344 = vld [vmem:[%s7 + $0x328] sm:$0xf]
  %v3345 = vld [vmem:[%s7 + $0x32c] sm:$0xff]
  %v3346 = vld [vmem:[%s7 + $0x334] sm:$0xff]
  %v3347 = vld [vmem:[%s7 + $0x33c] sm:$0xff]
  %v3348 = vld [vmem:[%s7 + $0x344] sm:$0xf]
  %v3349 = vld [vmem:[%s7 + $0x348] sm:$0xff]
  %v3350 = vld [vmem:[%s7 + $0x350] sm:$0xff]
  %v3351 = vld [vmem:[%s7 + $0x358] sm:$0xff]
  %v3352 = vld [vmem:[%s7 + $0x360] sm:$0xf]
  %v3353 = vld [vmem:[%s7 + $0x364] sm:$0xff]
  %v3354 = vld [vmem:[%s7 + $0x36c] sm:$0xff]
  %v3355 = vld [vmem:[%s7 + $0x374] sm:$0xff]
  %v3356 = vld [vmem:[%s7 + $0x37c] sm:$0xf]
  %v3357 = vld [vmem:[%s7 + $0x380] sm:$0xff]
  %v3358 = vld [vmem:[%s7 + $0x388] sm:$0xff]
  %v3359 = vld [vmem:[%s7 + $0x390] sm:$0xff]
  %v3360 = vld [vmem:[%s7 + $0x398] sm:$0xf]
  %v3361 = vld [vmem:[%s7 + $0x39c] sm:$0xff]
  %v3362 = vld [vmem:[%s7 + $0x3a4] sm:$0xff]
  %v3363 = vld [vmem:[%s7 + $0x3ac] sm:$0xff]
  %v3364 = vld [vmem:[%s7 + $0x3b4] sm:$0xf]
  %v3365 = vld [vmem:[%s7 + $0x3b8] sm:$0xff]
  %v3366 = vld [vmem:[%s7 + $0x3c0] sm:$0xff]
  %v3367 = vld [vmem:[%s7 + $0x3c8] sm:$0xff]
  %v3368 = vld [vmem:[%s7 + $0x3d0] sm:$0xf]
  %v3369 = vld [vmem:[%s7 + $0x3d4] sm:$0xff]
  %v3370 = vld [vmem:[%s7 + $0x3dc] sm:$0xff]
  %v3371 = vld [vmem:[%s7 + $0x3e4] sm:$0xff]
  %v3372 = vld [vmem:[%s7 + $0x3ec] sm:$0xf]
  %v3373 = vld [vmem:[%s7 + $0x3f0] sm:$0xff]
  %v3374 = vld [vmem:[%s7 + $0x3f8] sm:$0xff]
  %v3375 = vld [vmem:[%s7 + $0x400] sm:$0xff]
  %v3376 = vld [vmem:[%s7 + $0x408] sm:$0xf]
  %v3377 = vld [vmem:[%s7 + $0x40c] sm:$0xff]
  %v3378 = vld [vmem:[%s7 + $0x414] sm:$0xff]
  %v3379 = vld [vmem:[%s7 + $0x41c] sm:$0xff]
  %v3380 = vld [vmem:[%s7 + $0x424] sm:$0xf]
  %v3381 = vld [vmem:[%s7 + $0x428] sm:$0xff]
  %v3382 = vld [vmem:[%s7 + $0x430] sm:$0xff]
  %v3383 = vld [vmem:[%s7 + $0x438] sm:$0xff]
  %v3384 = vld [vmem:[%s7 + $0x440] sm:$0xf]
  %v3385 = vld [vmem:[%s7 + $0x444] sm:$0xff]
  %v3386 = vld [vmem:[%s7 + $0x44c] sm:$0xff]
  %v3387 = vld [vmem:[%s7 + $0x454] sm:$0xff]
  %v3388 = vld [vmem:[%s7 + $0x45c] sm:$0xf]
  %v3389 = vld [vmem:[%s7 + $0x460] sm:$0xff]
  %v3390 = vld [vmem:[%s7 + $0x468] sm:$0xff]
  %v3391 = vld [vmem:[%s7 + $0x470] sm:$0xff]
  %v3392 = vld [vmem:[%s7 + $0x478] sm:$0xf]
  %v3393 = vld [vmem:[%s7 + $0x47c] sm:$0xff]
  %v3394 = vld [vmem:[%s7 + $0x484] sm:$0xff]
  %v3395 = vld [vmem:[%s7 + $0x48c] sm:$0xff]
  %v3396 = vld [vmem:[%s7 + $0x494] sm:$0xf]
  %v3397 = vld [vmem:[%s7 + $0x498] sm:$0xff]
  %v3398 = vld [vmem:[%s7 + $0x4a0] sm:$0xff]
  %v3399 = vld [vmem:[%s7 + $0x4a8] sm:$0xff]
  %v3400 = vld [vmem:[%s7 + $0x4b0] sm:$0xf]
  %v3401 = vld [vmem:[%s7 + $0x4b4] sm:$0xff]
  %v3402 = vld [vmem:[%s7 + $0x4bc] sm:$0xff]
  %v3403 = vld [vmem:[%s7 + $0x4c4] sm:$0xff]
  %v3404 = vld [vmem:[%s7 + $0x4cc] sm:$0xf]
  %v3405 = vld [vmem:[%s7 + $0x4d0] sm:$0xff]
  %v3406 = vld [vmem:[%s7 + $0x4d8] sm:$0xff]
  %v3407 = vld [vmem:[%s7 + $0x4e0] sm:$0xff]
  %v3408 = vld [vmem:[%s7 + $0x4e8] sm:$0xf]
  %v3409 = vld [vmem:[%s7 + $0x4ec] sm:$0xff]
  %v3410 = vld [vmem:[%s7 + $0x4f4] sm:$0xff]
  %v3411 = vld [vmem:[%s7 + $0x4fc] sm:$0xff]
  %v3412 = vld [vmem:[%s7 + $0x504] sm:$0xf]
  %v3413 = vld [vmem:[%s7 + $0x508] sm:$0xff]
  %v3414 = vld [vmem:[%s7 + $0x510] sm:$0xff]
  %v3415 = vld [vmem:[%s7 + $0x518] sm:$0xff]
  %v3416 = vld [vmem:[%s7 + $0x520] sm:$0xf]
  %v3417 = vld [vmem:[%s7 + $0x524] sm:$0xff]
  %v3418 = vld [vmem:[%s7 + $0x52c] sm:$0xff]
  %v3419 = vld [vmem:[%s7 + $0x534] sm:$0xff]
  %v3420 = vld [vmem:[%s7 + $0x53c] sm:$0xf]
  %v3421 = vld [vmem:[%s7 + $0x540] sm:$0xff]
  %v3422 = vld [vmem:[%s7 + $0x548] sm:$0xff]
  %v3423 = vld [vmem:[%s7 + $0x550] sm:$0xff]
  %v3424 = vld [vmem:[%s7 + $0x558] sm:$0xf]
  %v3425 = vld [vmem:[%s7 + $0x55c] sm:$0xff]
  %v3426 = vld [vmem:[%s7 + $0x564] sm:$0xff]
  %v3427 = vld [vmem:[%s7 + $0x56c] sm:$0xff]
  %v3428 = vld [vmem:[%s7 + $0x574] sm:$0xf]
  %v3429 = vld [vmem:[%s7 + $0x578] sm:$0xff]
  %v3430 = vld [vmem:[%s7 + $0x580] sm:$0xff]
  %v3431 = vld [vmem:[%s7 + $0x588] sm:$0xff]
  %v3432 = vld [vmem:[%s7 + $0x590] sm:$0xf]
  %v3433 = vld [vmem:[%s7 + $0x594] sm:$0xff]
  %v3434 = vld [vmem:[%s7 + $0x59c] sm:$0xff]
  %v3435 = vld [vmem:[%s7 + $0x5a4] sm:$0xff]
  %v3436 = vld [vmem:[%s7 + $0x5ac] sm:$0xf]
  %v3437 = vld [vmem:[%s7 + $0x5b0] sm:$0xff]
  %v3438 = vld [vmem:[%s7 + $0x5b8] sm:$0xff]
  %v3439 = vld [vmem:[%s7 + $0x5c0] sm:$0xff]
  %v3440 = vld [vmem:[%s7 + $0x5c8] sm:$0xf]
  %v3441 = vld [vmem:[%s7 + $0x5cc] sm:$0xff]
  %v3442 = vld [vmem:[%s7 + $0x5d4] sm:$0xff]
  %v3443 = vld [vmem:[%s7 + $0x5dc] sm:$0xff]
  %v3444 = vld [vmem:[%s7 + $0x5e4] sm:$0xf]
  %v3445 = vld [vmem:[%s7 + $0x5e8] sm:$0xff]
  %v3446 = vld [vmem:[%s7 + $0x5f0] sm:$0xff]
  %v3447 = vld [vmem:[%s7 + $0x5f8] sm:$0xff]
  %v3448 = vld [vmem:[%s7 + $0x600] sm:$0xf]
  %v3449 = vld [vmem:[%s7 + $0x604] sm:$0xff]
  %v3450 = vld [vmem:[%s7 + $0x60c] sm:$0xff]
  %v3451 = vld [vmem:[%s7 + $0x614] sm:$0xff]
  %v3452 = vld [vmem:[%s7 + $0x61c] sm:$0xf]
  %v3453 = vld [vmem:[%s7 + $0x620] sm:$0xff]
  %v3454 = vld [vmem:[%s7 + $0x628] sm:$0xff]
  %v3455 = vld [vmem:[%s7 + $0x630] sm:$0xff]
  %v3456 = vld [vmem:[%s7 + $0x638] sm:$0xf]
  %v3457 = vld [vmem:[%s7 + $0x63c] sm:$0xff]
  %v3458 = vld [vmem:[%s7 + $0x644] sm:$0xff]
  %v3459 = vld [vmem:[%s7 + $0x64c] sm:$0xff]
  %v3460 = vld [vmem:[%s7 + $0x654] sm:$0xf]
  %v3461 = vld [vmem:[%s7 + $0x658] sm:$0xff]
  %v3462 = vld [vmem:[%s7 + $0x660] sm:$0xff]
  %v3463 = vld [vmem:[%s7 + $0x668] sm:$0xff]
  %v3464 = vld [vmem:[%s7 + $0x670] sm:$0xf]
  %v3465 = vld [vmem:[%s7 + $0x674] sm:$0xff]
  %v3466 = vld [vmem:[%s7 + $0x67c] sm:$0xff]
  %v3467 = vld [vmem:[%s7 + $0x684] sm:$0xff]
  %v3468 = vld [vmem:[%s7 + $0x68c] sm:$0xf]
  %v3469 = vld [vmem:[%s7 + $0x690] sm:$0xff]
  %v3470 = vld [vmem:[%s7 + $0x698] sm:$0xff]
  %v3471 = vld [vmem:[%s7 + $0x6a0] sm:$0xff]
  %v3472 = vld [vmem:[%s7 + $0x6a8] sm:$0xf]
  %v3473 = vld [vmem:[%s7 + $0x6ac] sm:$0xff]
  %v3474 = vld [vmem:[%s7 + $0x6b4] sm:$0xff]
  %v3475 = vld [vmem:[%s7 + $0x6bc] sm:$0xff]
  %v3476 = vld [vmem:[%s7 + $0x6c4] sm:$0xf]
  %v3477 = vld [vmem:[%s7 + $0x6c8] sm:$0xff]
  %v3478 = vld [vmem:[%s7 + $0x6d0] sm:$0xff]
  %v3479 = vld [vmem:[%s7 + $0x6d8] sm:$0xff]
  %v3480 = vld [vmem:[%s7 + $0x6e0] sm:$0xf]
  %v3481 = vld [vmem:[%s7 + $0x6e4] sm:$0xff]
  %v3482 = vld [vmem:[%s7 + $0x6ec] sm:$0xff]
  %v3483 = vld [vmem:[%s7 + $0x6f4] sm:$0xff]
  %v3484 = vld [vmem:[%s7 + $0x6fc] sm:$0xf]
  %v3485 = vld [vmem:[%s7 + $0x700] sm:$0xff]
  %v3486 = vld [vmem:[%s7 + $0x708] sm:$0xff]
  %v3487 = vld [vmem:[%s7 + $0x710] sm:$0xff]
  %v3488 = vld [vmem:[%s7 + $0x718] sm:$0xf]
  %v3489 = vld [vmem:[%s7 + $0x71c] sm:$0xff]
  %v3490 = vld [vmem:[%s7 + $0x724] sm:$0xff]
  %v3491 = vld [vmem:[%s7 + $0x72c] sm:$0xff]
  %v3492 = vld [vmem:[%s7 + $0x734] sm:$0xf]
  %v3493 = vld [vmem:[%s7 + $0x738] sm:$0xff]
  %v3494 = vld [vmem:[%s7 + $0x740] sm:$0xff]
  %v3495 = vld [vmem:[%s7 + $0x748] sm:$0xff]
  %v3496 = vld [vmem:[%s7 + $0x750] sm:$0xf]
  %v3497 = vld [vmem:[%s7 + $0x754] sm:$0xff]
  %v3498 = vld [vmem:[%s7 + $0x75c] sm:$0xff]
  %v3499 = vld [vmem:[%s7 + $0x764] sm:$0xff]
  %v3500 = vld [vmem:[%s7 + $0x76c] sm:$0xf]
  %v3501 = vld [vmem:[%s7 + $0x770] sm:$0xff]
  %v3502 = vld [vmem:[%s7 + $0x778] sm:$0xff]
  %v3503 = vld [vmem:[%s7 + $0x780] sm:$0xff]
  %v3504 = vld [vmem:[%s7 + $0x788] sm:$0xf]
  %v3505 = vld [vmem:[%s7 + $0x78c] sm:$0xff]
  %v3506 = vld [vmem:[%s7 + $0x794] sm:$0xff]
  %v3507 = vld [vmem:[%s7 + $0x79c] sm:$0xff]
  %v3508 = vld [vmem:[%s7 + $0x7a4] sm:$0xf]
  %v3509 = vld [vmem:[%s7 + $0x7a8] sm:$0xff]
  %v3510 = vld [vmem:[%s7 + $0x7b0] sm:$0xff]
  %v3511 = vld [vmem:[%s7 + $0x7b8] sm:$0xff]
  %v3512 = vld [vmem:[%s7 + $0x7c0] sm:$0xf]
  %v3513 = vld [vmem:[%s7 + $0x7c4] sm:$0xff]
  %v3514 = vld [vmem:[%s7 + $0x7cc] sm:$0xff]
  %v3515 = vld [vmem:[%s7 + $0x7d4] sm:$0xff]
  %v3516 = vld [vmem:[%s7 + $0x7dc] sm:$0xf]
  %v3517 = vld [vmem:[%s7 + $0x7e0] sm:$0xff]
  %v3518 = vld [vmem:[%s7 + $0x7e8] sm:$0xff]
  %v3519 = vld [vmem:[%s7 + $0x7f0] sm:$0xff]
  %v3520 = vld [vmem:[%s7 + $0x7f8] sm:$0xf]
  %v3521 = vld [vmem:[%s7 + $0x7fc] sm:$0xff]
  %v3522 = vld [vmem:[%s7 + $0x804] sm:$0xff]
  %v3523 = vld [vmem:[%s7 + $0x80c] sm:$0xff]
  %v3524 = vld [vmem:[%s7 + $0x814] sm:$0xf]
  %v3525 = vld [vmem:[%s7 + $0x818] sm:$0xff]
  %v3526 = vld [vmem:[%s7 + $0x820] sm:$0xff]
  %v3527 = vld [vmem:[%s7 + $0x828] sm:$0xff]
  %v3528 = vld [vmem:[%s7 + $0x830] sm:$0xf]
  %v3529 = vld [vmem:[%s7 + $0x834] sm:$0xff]
  %v3530 = vld [vmem:[%s7 + $0x83c] sm:$0xff]
  %v3531 = vld [vmem:[%s7 + $0x844] sm:$0xff]
  %v3532 = vld [vmem:[%s7 + $0x84c] sm:$0xf]
  %v3533 = vld [vmem:[%s7 + $0x850] sm:$0xff]
  %v3534 = vld [vmem:[%s7 + $0x858] sm:$0xff]
  %v3535 = vld [vmem:[%s7 + $0x860] sm:$0xff]
  %v3536 = vld [vmem:[%s7 + $0x868] sm:$0xf]
  %v3537 = vld [vmem:[%s7 + $0x86c] sm:$0xff]
  %v3538 = vld [vmem:[%s7 + $0x874] sm:$0xff]
  %v3539 = vld [vmem:[%s7 + $0x87c] sm:$0xff]
  %v3540 = vld [vmem:[%s7 + $0x884] sm:$0xf]
  %v3541 = vld [vmem:[%s7 + $0x888] sm:$0xff]
  %v3542 = vld [vmem:[%s7 + $0x890] sm:$0xff]
  %v3543 = vld [vmem:[%s7 + $0x898] sm:$0xff]
  %v3544 = vld [vmem:[%s7 + $0x8a0] sm:$0xf]
  %v3545 = vld [vmem:[%s7 + $0x8a4] sm:$0xff]
  %v3546 = vld [vmem:[%s7 + $0x8ac] sm:$0xff]
  %v3547 = vld [vmem:[%s7 + $0x8b4] sm:$0xff]
  %v3548 = vld [vmem:[%s7 + $0x8bc] sm:$0xf]
  %v3549 = vld [vmem:[%s7 + $0x8c0] sm:$0xff]
  %v3550 = vld [vmem:[%s7 + $0x8c8] sm:$0xff]
  %v3551 = vld [vmem:[%s7 + $0x8d0] sm:$0xff]
  %v3552 = vld [vmem:[%s7 + $0x8d8] sm:$0xf]
  %v3553 = vld [vmem:[%s7 + $0x8dc] sm:$0xff]
  %v3554 = vld [vmem:[%s7 + $0x8e4] sm:$0xff]
  %v3555 = vld [vmem:[%s7 + $0x8ec] sm:$0xff]
  %v3556 = vld [vmem:[%s7 + $0x8f4] sm:$0xf]
  %v3557 = vld [vmem:[%s7 + $0x8f8] sm:$0xff]
  %v3558 = vld [vmem:[%s7 + $0x900] sm:$0xff]
  %v3559 = vld [vmem:[%s7 + $0x908] sm:$0xff]
  %v3560 = vld [vmem:[%s7 + $0x910] sm:$0xf]
  %v3561 = vld [vmem:[%s7 + $0x914] sm:$0xff]
  %v3562 = vld [vmem:[%s7 + $0x91c] sm:$0xff]
  %v3563 = vld [vmem:[%s7 + $0x924] sm:$0xff]
  %v3564 = vld [vmem:[%s7 + $0x92c] sm:$0xf]
  %v3565 = vld [vmem:[%s7 + $0x930] sm:$0xff]
  %v3566 = vld [vmem:[%s7 + $0x938] sm:$0xff]
  %v3567 = vld [vmem:[%s7 + $0x940] sm:$0xff]
  %v3568 = vld [vmem:[%s7 + $0x948] sm:$0xf]
  %v3569 = vld [vmem:[%s7 + $0x94c] sm:$0xff]
  %v3570 = vld [vmem:[%s7 + $0x954] sm:$0xff]
  %v3571 = vld [vmem:[%s7 + $0x95c] sm:$0xff]
  %v3572 = vld [vmem:[%s7 + $0x964] sm:$0xf]
  %v3573 = vld [vmem:[%s7 + $0x968] sm:$0xff]
  %v3574 = vld [vmem:[%s7 + $0x970] sm:$0xff]
  %v3575 = vld [vmem:[%s7 + $0x978] sm:$0xff]
  %v3576 = vld [vmem:[%s7 + $0x980] sm:$0xf]
  %v3577 = vld [vmem:[%s7 + $0x984] sm:$0xff]
  %v3578 = vld [vmem:[%s7 + $0x98c] sm:$0xff]
  %v3579 = vld [vmem:[%s7 + $0x994] sm:$0xff]
  %v3580 = vld [vmem:[%s7 + $0x99c] sm:$0xf]
  %v3581 = vld [vmem:[%s7 + $0x9a0] sm:$0xff]
  %v3582 = vld [vmem:[%s7 + $0x9a8] sm:$0xff]
  %v3583 = vld [vmem:[%s7 + $0x9b0] sm:$0xff]
  %v3584 = vld [vmem:[%s7 + $0x9b8] sm:$0xf]
  %v3585 = vld [vmem:[%s7 + $0x9bc] sm:$0xff]
  %v3586 = vld [vmem:[%s7 + $0x9c4] sm:$0xff]
  %v3587 = vld [vmem:[%s7 + $0x9cc] sm:$0xff]
  %v3588 = vld [vmem:[%s7 + $0x9d4] sm:$0xf]
  %v3589 = vld [vmem:[%s7 + $0x9d8] sm:$0xff]
  %v3590 = vld [vmem:[%s7 + $0x9e0] sm:$0xff]
  %v3591 = vld [vmem:[%s7 + $0x9e8] sm:$0xff]
  %v3592 = vld [vmem:[%s7 + $0x9f0] sm:$0xf]
  %v3593 = vld [vmem:[%s7 + $0x9f4] sm:$0xff]
  %v3594 = vld [vmem:[%s7 + $0x9fc] sm:$0xff]
  %v3595 = vld [vmem:[%s7 + $0xa04] sm:$0xff]
  %v3596 = vld [vmem:[%s7 + $0xa0c] sm:$0xf]
  %v3597 = vld [vmem:[%s7 + $0xa10] sm:$0xff]
  %v3598 = vld [vmem:[%s7 + $0xa18] sm:$0xff]
  %v3599 = vld [vmem:[%s7 + $0xa20] sm:$0xff]
  %v3600 = vld [vmem:[%s7 + $0xa28] sm:$0xf]
  %v3601 = vld [vmem:[%s7 + $0xa2c] sm:$0xff]
  %v3602 = vld [vmem:[%s7 + $0xa34] sm:$0xff]
  %v3603 = vld [vmem:[%s7 + $0xa3c] sm:$0xff]
  %v3604 = vld [vmem:[%s7 + $0xa44] sm:$0xf]
  %v3605 = vld [vmem:[%s7 + $0xa48] sm:$0xff]
  %v3606 = vld [vmem:[%s7 + $0xa50] sm:$0xff]
  %v3607 = vld [vmem:[%s7 + $0xa58] sm:$0xff]
  %v3608 = vld [vmem:[%s7 + $0xa60] sm:$0xf]
  %v3609 = vld [vmem:[%s7 + $0xa64] sm:$0xff]
  %v3610 = vld [vmem:[%s7 + $0xa6c] sm:$0xff]
  %v3611 = vld [vmem:[%s7 + $0xa74] sm:$0xff]
  %v3612 = vld [vmem:[%s7 + $0xa7c] sm:$0xf]
  %v3613 = vld [vmem:[%s7 + $0xa80] sm:$0xff]
  %v3614 = vld [vmem:[%s7 + $0xa88] sm:$0xff]
  %v3615 = vld [vmem:[%s7 + $0xa90] sm:$0xff]
  %v3616 = vld [vmem:[%s7 + $0xa98] sm:$0xf]
  %v3617 = vld [vmem:[%s7 + $0xa9c] sm:$0xff]
  %v3618 = vld [vmem:[%s7 + $0xaa4] sm:$0xff]
  %v3619 = vld [vmem:[%s7 + $0xaac] sm:$0xff]
  %v3620 = vld [vmem:[%s7 + $0xab4] sm:$0xf]
  %v3621 = vld [vmem:[%s7 + $0xab8] sm:$0xff]
  %v3622 = vld [vmem:[%s7 + $0xac0] sm:$0xff]
  %v3623 = vld [vmem:[%s7 + $0xac8] sm:$0xff]
  %v3624 = vld [vmem:[%s7 + $0xad0] sm:$0xf]
  %v3625 = vld [vmem:[%s7 + $0xad4] sm:$0xff]
  %v3626 = vld [vmem:[%s7 + $0xadc] sm:$0xff]
  %v3627 = vld [vmem:[%s7 + $0xae4] sm:$0xff]
  %v3628 = vld [vmem:[%s7 + $0xaec] sm:$0xf]
  %v3629 = vld [vmem:[%s7 + $0xaf0] sm:$0xff]
  %v3630 = vld [vmem:[%s7 + $0xaf8] sm:$0xff]
  %v3631 = vld [vmem:[%s7 + $0xb00] sm:$0xff]
  %v3632 = vld [vmem:[%s7 + $0xb08] sm:$0xf]
  %v3633 = vld [vmem:[%s7 + $0xb0c] sm:$0xff]
  %v3634 = vld [vmem:[%s7 + $0xb14] sm:$0xff]
  %v3635 = vld [vmem:[%s7 + $0xb1c] sm:$0xff]
  %v3636 = vld [vmem:[%s7 + $0xb24] sm:$0xf]
  %v3637 = vld [vmem:[%s7 + $0xb28] sm:$0xff]
  %v3638 = vld [vmem:[%s7 + $0xb30] sm:$0xff]
  %v3639 = vld [vmem:[%s7 + $0xb38] sm:$0xff]
  %v3640 = vld [vmem:[%s7 + $0xb40] sm:$0xf]
  %v3641 = vld [vmem:[%s7 + $0xb44] sm:$0xff]
  %v3642 = vld [vmem:[%s7 + $0xb4c] sm:$0xff]
  %v3643 = vld [vmem:[%s7 + $0xb54] sm:$0xff]
  %v3644 = vld [vmem:[%s7 + $0xb5c] sm:$0xf]
  %v3645 = vld [vmem:[%s7 + $0xb60] sm:$0xff]
  %v3646 = vld [vmem:[%s7 + $0xb68] sm:$0xff]
  %v3647 = vld [vmem:[%s7 + $0xb70] sm:$0xff]
  %v3648 = vld [vmem:[%s7 + $0xb78] sm:$0xf]
  %v3649 = vld [vmem:[%s7 + $0xb7c] sm:$0xff]
  %v3650 = vld [vmem:[%s7 + $0xb84] sm:$0xff]
  %v3651 = vld [vmem:[%s7 + $0xb8c] sm:$0xff]
  %v3652 = vld [vmem:[%s7 + $0xb94] sm:$0xf]
  %v3653 = vld [vmem:[%s7 + $0xb98] sm:$0xff]
  %v3654 = vld [vmem:[%s7 + $0xba0] sm:$0xff]
  %v3655 = vld [vmem:[%s7 + $0xba8] sm:$0xff]
  %v3656 = vld [vmem:[%s7 + $0xbb0] sm:$0xf]
  %v3657 = vld [vmem:[%s7 + $0xbb4] sm:$0xff]
  %v3658 = vld [vmem:[%s7 + $0xbbc] sm:$0xff]
  %v3659 = vld [vmem:[%s7 + $0xbc4] sm:$0xff]
  %v3660 = vld [vmem:[%s7 + $0xbcc] sm:$0xf]
  %v3661 = vld [vmem:[%s7 + $0xbd0] sm:$0xff]
  %v3662 = vld [vmem:[%s7 + $0xbd8] sm:$0xff]
  %v3663 = vld [vmem:[%s7 + $0xbe0] sm:$0xff]
  %v3664 = vld [vmem:[%s7 + $0xbe8] sm:$0xf]
  %v3665 = vld [vmem:[%s7 + $0xbec] sm:$0xff]
  %v3666 = vld [vmem:[%s7 + $0xbf4] sm:$0xff]
  %v3667 = vld [vmem:[%s7 + $0xbfc] sm:$0xff]
  %v3668 = vld [vmem:[%s7 + $0xc04] sm:$0xf]
  %v3669 = vld [vmem:[%s7 + $0xc08] sm:$0xff]
  %v3670 = vld [vmem:[%s7 + $0xc10] sm:$0xff]
  %v3671 = vld [vmem:[%s7 + $0xc18] sm:$0xff]
  %v3672 = vld [vmem:[%s7 + $0xc20] sm:$0xf]
  %v3673 = vld [vmem:[%s7 + $0xc24] sm:$0xff]
  %v3674 = vld [vmem:[%s7 + $0xc2c] sm:$0xff]
  %v3675 = vld [vmem:[%s7 + $0xc34] sm:$0xff]
  %v3676 = vld [vmem:[%s7 + $0xc3c] sm:$0xf]
  %v3677 = vld [vmem:[%s7 + $0xc40] sm:$0xff]
  %v3678 = vld [vmem:[%s7 + $0xc48] sm:$0xff]
  %v3679 = vld [vmem:[%s7 + $0xc50] sm:$0xff]
  %v3680 = vld [vmem:[%s7 + $0xc58] sm:$0xf]
  %v3681 = vld [vmem:[%s7 + $0xc5c] sm:$0xff]
  %v3682 = vld [vmem:[%s7 + $0xc64] sm:$0xff]
  %v3683 = vld [vmem:[%s7 + $0xc6c] sm:$0xff]
  %v3684 = vld [vmem:[%s7 + $0xc74] sm:$0xf]
  %v3685 = vld [vmem:[%s7 + $0xc78] sm:$0xff]
  %v3686 = vld [vmem:[%s7 + $0xc80] sm:$0xff]
  %v3687 = vld [vmem:[%s7 + $0xc88] sm:$0xff]
  %v3688 = vld [vmem:[%s7 + $0xc90] sm:$0xf]
  %v3689 = vld [vmem:[%s7 + $0xc94] sm:$0xff]
  %v3690 = vld [vmem:[%s7 + $0xc9c] sm:$0xff]
  %v3691 = vld [vmem:[%s7 + $0xca4] sm:$0xff]
  %v3692 = vld [vmem:[%s7 + $0xcac] sm:$0xf]
  %v3693 = vld [vmem:[%s7 + $0xcb0] sm:$0xff]
  %v3694 = vld [vmem:[%s7 + $0xcb8] sm:$0xff]
  %v3695 = vld [vmem:[%s7 + $0xcc0] sm:$0xff]
  %v3696 = vld [vmem:[%s7 + $0xcc8] sm:$0xf]
  %v3697 = vld [vmem:[%s7 + $0xccc] sm:$0xff]
  %v3698 = vld [vmem:[%s7 + $0xcd4] sm:$0xff]
  %v3699 = vld [vmem:[%s7 + $0xcdc] sm:$0xff]
  %v3700 = vld [vmem:[%s7 + $0xce4] sm:$0xf]
  %v3701 = vld [vmem:[%s7 + $0xce8] sm:$0xff]
  %v3702 = vld [vmem:[%s7 + $0xcf0] sm:$0xff]
  %v3703 = vld [vmem:[%s7 + $0xcf8] sm:$0xff]
  %v3704 = vld [vmem:[%s7 + $0xd00] sm:$0xf]
  %v3705 = vld [vmem:[%s7 + $0xd04] sm:$0xff]
  %v3706 = vld [vmem:[%s7 + $0xd0c] sm:$0xff]
  %v3707 = vld [vmem:[%s7 + $0xd14] sm:$0xff]
  %v3708 = vld [vmem:[%s7 + $0xd1c] sm:$0xf]
  %v3709 = vld [vmem:[%s7 + $0xd20] sm:$0xff]
  %v3710 = vld [vmem:[%s7 + $0xd28] sm:$0xff]
  %v3711 = vld [vmem:[%s7 + $0xd30] sm:$0xff]
  %v3712 = vld [vmem:[%s7 + $0xd38] sm:$0xf]
  %v3713 = vld [vmem:[%s7 + $0xd3c] sm:$0xff]
  %v3714 = vld [vmem:[%s7 + $0xd44] sm:$0xff]
  %v3715 = vld [vmem:[%s7 + $0xd4c] sm:$0xff]
  %v3716 = vld [vmem:[%s7 + $0xd54] sm:$0xf]
  %v3717 = vld [vmem:[%s7 + $0xd58] sm:$0xff]
  %v3718 = vld [vmem:[%s7 + $0xd60] sm:$0xff]
  %v3719 = vld [vmem:[%s7 + $0xd68] sm:$0xff]
  %v3720 = vld [vmem:[%s7 + $0xd70] sm:$0xf]
  %v3721 = vld [vmem:[%s7 + $0xd74] sm:$0xff]
  %v3722 = vld [vmem:[%s7 + $0xd7c] sm:$0xff]
  %v3723 = vld [vmem:[%s7 + $0xd84] sm:$0xff]
  %v3724 = vld [vmem:[%s7 + $0xd8c] sm:$0xf]
  %v3725 = vld [vmem:[%s7 + $0xd90] sm:$0xff]
  %v3726 = vld [vmem:[%s7 + $0xd98] sm:$0xff]
  %v3727 = vld [vmem:[%s7 + $0xda0] sm:$0xff]
  %v3728 = vld [vmem:[%s7 + $0xda8] sm:$0xf]
  %v3729 = vld [vmem:[%s7 + $0xdac] sm:$0xff]
  %v3730 = vld [vmem:[%s7 + $0xdb4] sm:$0xff]
  %v3731 = vld [vmem:[%s7 + $0xdbc] sm:$0xff]
  %v3732 = vld [vmem:[%s7 + $0xdc4] sm:$0xf]
  %v3733 = vld [vmem:[%s7 + $0xdc8] sm:$0xff]
  %v3734 = vld [vmem:[%s7 + $0xdd0] sm:$0xff]
  %v3735 = vld [vmem:[%s7 + $0xdd8] sm:$0xff]
  %v3736 = vld [vmem:[%s7 + $0xde0] sm:$0xf]
  %v3737 = vld [vmem:[%s7 + $0xde4] sm:$0xff]
  %v3738 = vld [vmem:[%s7 + $0xdec] sm:$0xff]
  %v3739 = vld [vmem:[%s7 + $0xdf4] sm:$0xff]
  %v3740 = vld [vmem:[%s7 + $0xdfc] sm:$0xf]
  %v3742 = vperm.slane %v50, 0
  %v3743 = vperm.slane %v50, 1
  %v3744 = vperm.slane %v50, 2
  %v3745 = vperm.slane %v50, 3
  %v3746 = vperm.slane %v50, 4
  %v3747 = vperm.slane %v50, 5
  %v3748 = vperm.slane %v50, 6
  %v4268 = vunpack.c.l.b16 %v3229
  %v4269 = vunpack.c.h.b16 %v3229
  %v4270 = vunpack.c.l.b16 %v3230
  %v4271 = vunpack.c.h.b16 %v3230
  %v4272 = vunpack.c.l.b16 %v3231
  %v4273 = vunpack.c.h.b16 %v3231
  %v4274 = vunpack.c.l.b16 %v3232
  %v4275 = vunpack.c.l.b16 %v3233
  %v4276 = vunpack.c.h.b16 %v3233
  %v4277 = vunpack.c.l.b16 %v3234
  %v4278 = vunpack.c.h.b16 %v3234
  %v4279 = vunpack.c.l.b16 %v3235
  %v4280 = vunpack.c.h.b16 %v3235
  %v4281 = vunpack.c.l.b16 %v3236
  %v4282 = vunpack.c.l.b16 %v3237
  %v4283 = vunpack.c.h.b16 %v3237
  %v4284 = vunpack.c.l.b16 %v3238
  %v4285 = vunpack.c.h.b16 %v3238
  %v4286 = vunpack.c.l.b16 %v3239
  %v4287 = vunpack.c.h.b16 %v3239
  %v4288 = vunpack.c.l.b16 %v3240
  %v4289 = vunpack.c.l.b16 %v3241
  %v4290 = vunpack.c.h.b16 %v3241
  %v4291 = vunpack.c.l.b16 %v3242
  %v4292 = vunpack.c.h.b16 %v3242
  %v4293 = vunpack.c.l.b16 %v3243
  %v4294 = vunpack.c.h.b16 %v3243
  %v4295 = vunpack.c.l.b16 %v3244
  %v4296 = vunpack.c.l.b16 %v3245
  %v4297 = vunpack.c.h.b16 %v3245
  %v4298 = vunpack.c.l.b16 %v3246
  %v4299 = vunpack.c.h.b16 %v3246
  %v4300 = vunpack.c.l.b16 %v3247
  %v4301 = vunpack.c.h.b16 %v3247
  %v4302 = vunpack.c.l.b16 %v3248
  %v4303 = vunpack.c.l.b16 %v3249
  %v4304 = vunpack.c.h.b16 %v3249
  %v4305 = vunpack.c.l.b16 %v3250
  %v4306 = vunpack.c.h.b16 %v3250
  %v4307 = vunpack.c.l.b16 %v3251
  %v4308 = vunpack.c.h.b16 %v3251
  %v4309 = vunpack.c.l.b16 %v3252
  %v4310 = vunpack.c.l.b16 %v3253
  %v4311 = vunpack.c.h.b16 %v3253
  %v4312 = vunpack.c.l.b16 %v3254
  %v4313 = vunpack.c.h.b16 %v3254
  %v4314 = vunpack.c.l.b16 %v3255
  %v4315 = vunpack.c.h.b16 %v3255
  %v4316 = vunpack.c.l.b16 %v3256
  %v4317 = vunpack.c.l.b16 %v3257
  %v4318 = vunpack.c.h.b16 %v3257
  %v4319 = vunpack.c.l.b16 %v3258
  %v4320 = vunpack.c.h.b16 %v3258
  %v4321 = vunpack.c.l.b16 %v3259
  %v4322 = vunpack.c.h.b16 %v3259
  %v4323 = vunpack.c.l.b16 %v3260
  %v4324 = vunpack.c.l.b16 %v3261
  %v4325 = vunpack.c.h.b16 %v3261
  %v4326 = vunpack.c.l.b16 %v3262
  %v4327 = vunpack.c.h.b16 %v3262
  %v4328 = vunpack.c.l.b16 %v3263
  %v4329 = vunpack.c.h.b16 %v3263
  %v4330 = vunpack.c.l.b16 %v3264
  %v4331 = vunpack.c.l.b16 %v3265
  %v4332 = vunpack.c.h.b16 %v3265
  %v4333 = vunpack.c.l.b16 %v3266
  %v4334 = vunpack.c.h.b16 %v3266
  %v4335 = vunpack.c.l.b16 %v3267
  %v4336 = vunpack.c.h.b16 %v3267
  %v4337 = vunpack.c.l.b16 %v3268
  %v4338 = vunpack.c.l.b16 %v3269
  %v4339 = vunpack.c.h.b16 %v3269
  %v4340 = vunpack.c.l.b16 %v3270
  %v4341 = vunpack.c.h.b16 %v3270
  %v4342 = vunpack.c.l.b16 %v3271
  %v4343 = vunpack.c.h.b16 %v3271
  %v4344 = vunpack.c.l.b16 %v3272
  %v4345 = vunpack.c.l.b16 %v3273
  %v4346 = vunpack.c.h.b16 %v3273
  %v4347 = vunpack.c.l.b16 %v3274
  %v4348 = vunpack.c.h.b16 %v3274
  %v4349 = vunpack.c.l.b16 %v3275
  %v4350 = vunpack.c.h.b16 %v3275
  %v4351 = vunpack.c.l.b16 %v3276
  %v4352 = vunpack.c.l.b16 %v3277
  %v4353 = vunpack.c.h.b16 %v3277
  %v4354 = vunpack.c.l.b16 %v3278
  %v4355 = vunpack.c.h.b16 %v3278
  %v4356 = vunpack.c.l.b16 %v3279
  %v4357 = vunpack.c.h.b16 %v3279
  %v4358 = vunpack.c.l.b16 %v3280
  %v4359 = vunpack.c.l.b16 %v3281
  %v4360 = vunpack.c.h.b16 %v3281
  %v4361 = vunpack.c.l.b16 %v3282
  %v4362 = vunpack.c.h.b16 %v3282
  %v4363 = vunpack.c.l.b16 %v3283
  %v4364 = vunpack.c.h.b16 %v3283
  %v4365 = vunpack.c.l.b16 %v3284
  %v4366 = vunpack.c.l.b16 %v3285
  %v4367 = vunpack.c.h.b16 %v3285
  %v4368 = vunpack.c.l.b16 %v3286
  %v4369 = vunpack.c.h.b16 %v3286
  %v4370 = vunpack.c.l.b16 %v3287
  %v4371 = vunpack.c.h.b16 %v3287
  %v4372 = vunpack.c.l.b16 %v3288
  %v4373 = vunpack.c.l.b16 %v3289
  %v4374 = vunpack.c.h.b16 %v3289
  %v4375 = vunpack.c.l.b16 %v3290
  %v4376 = vunpack.c.h.b16 %v3290
  %v4377 = vunpack.c.l.b16 %v3291
  %v4378 = vunpack.c.h.b16 %v3291
  %v4379 = vunpack.c.l.b16 %v3292
  %v4380 = vunpack.c.l.b16 %v3293
  %v4381 = vunpack.c.h.b16 %v3293
  %v4382 = vunpack.c.l.b16 %v3294
  %v4383 = vunpack.c.h.b16 %v3294
  %v4384 = vunpack.c.l.b16 %v3295
  %v4385 = vunpack.c.h.b16 %v3295
  %v4386 = vunpack.c.l.b16 %v3296
  %v4387 = vunpack.c.l.b16 %v3297
  %v4388 = vunpack.c.h.b16 %v3297
  %v4389 = vunpack.c.l.b16 %v3298
  %v4390 = vunpack.c.h.b16 %v3298
  %v4391 = vunpack.c.l.b16 %v3299
  %v4392 = vunpack.c.h.b16 %v3299
  %v4393 = vunpack.c.l.b16 %v3300
  %v4394 = vunpack.c.l.b16 %v3301
  %v4395 = vunpack.c.h.b16 %v3301
  %v4396 = vunpack.c.l.b16 %v3302
  %v4397 = vunpack.c.h.b16 %v3302
  %v4398 = vunpack.c.l.b16 %v3303
  %v4399 = vunpack.c.h.b16 %v3303
  %v4400 = vunpack.c.l.b16 %v3304
  %v4401 = vunpack.c.l.b16 %v3305
  %v4402 = vunpack.c.h.b16 %v3305
  %v4403 = vunpack.c.l.b16 %v3306
  %v4404 = vunpack.c.h.b16 %v3306
  %v4405 = vunpack.c.l.b16 %v3307
  %v4406 = vunpack.c.h.b16 %v3307
  %v4407 = vunpack.c.l.b16 %v3308
  %v4408 = vunpack.c.l.b16 %v3309
  %v4409 = vunpack.c.h.b16 %v3309
  %v4410 = vunpack.c.l.b16 %v3310
  %v4411 = vunpack.c.h.b16 %v3310
  %v4412 = vunpack.c.l.b16 %v3311
  %v4413 = vunpack.c.h.b16 %v3311
  %v4414 = vunpack.c.l.b16 %v3312
  %v4415 = vunpack.c.l.b16 %v3313
  %v4416 = vunpack.c.h.b16 %v3313
  %v4417 = vunpack.c.l.b16 %v3314
  %v4418 = vunpack.c.h.b16 %v3314
  %v4419 = vunpack.c.l.b16 %v3315
  %v4420 = vunpack.c.h.b16 %v3315
  %v4421 = vunpack.c.l.b16 %v3316
  %v4422 = vunpack.c.l.b16 %v3317
  %v4423 = vunpack.c.h.b16 %v3317
  %v4424 = vunpack.c.l.b16 %v3318
  %v4425 = vunpack.c.h.b16 %v3318
  %v4426 = vunpack.c.l.b16 %v3319
  %v4427 = vunpack.c.h.b16 %v3319
  %v4428 = vunpack.c.l.b16 %v3320
  %v4429 = vunpack.c.l.b16 %v3321
  %v4430 = vunpack.c.h.b16 %v3321
  %v4431 = vunpack.c.l.b16 %v3322
  %v4432 = vunpack.c.h.b16 %v3322
  %v4433 = vunpack.c.l.b16 %v3323
  %v4434 = vunpack.c.h.b16 %v3323
  %v4435 = vunpack.c.l.b16 %v3324
  %v4436 = vunpack.c.l.b16 %v3325
  %v4437 = vunpack.c.h.b16 %v3325
  %v4438 = vunpack.c.l.b16 %v3326
  %v4439 = vunpack.c.h.b16 %v3326
  %v4440 = vunpack.c.l.b16 %v3327
  %v4441 = vunpack.c.h.b16 %v3327
  %v4442 = vunpack.c.l.b16 %v3328
  %v4443 = vunpack.c.l.b16 %v3329
  %v4444 = vunpack.c.h.b16 %v3329
  %v4445 = vunpack.c.l.b16 %v3330
  %v4446 = vunpack.c.h.b16 %v3330
  %v4447 = vunpack.c.l.b16 %v3331
  %v4448 = vunpack.c.h.b16 %v3331
  %v4449 = vunpack.c.l.b16 %v3332
  %v4450 = vunpack.c.l.b16 %v3333
  %v4451 = vunpack.c.h.b16 %v3333
  %v4452 = vunpack.c.l.b16 %v3334
  %v4453 = vunpack.c.h.b16 %v3334
  %v4454 = vunpack.c.l.b16 %v3335
  %v4455 = vunpack.c.h.b16 %v3335
  %v4456 = vunpack.c.l.b16 %v3336
  %v4457 = vunpack.c.l.b16 %v3337
  %v4458 = vunpack.c.h.b16 %v3337
  %v4459 = vunpack.c.l.b16 %v3338
  %v4460 = vunpack.c.h.b16 %v3338
  %v4461 = vunpack.c.l.b16 %v3339
  %v4462 = vunpack.c.h.b16 %v3339
  %v4463 = vunpack.c.l.b16 %v3340
  %v4464 = vunpack.c.l.b16 %v3341
  %v4465 = vunpack.c.h.b16 %v3341
  %v4466 = vunpack.c.l.b16 %v3342
  %v4467 = vunpack.c.h.b16 %v3342
  %v4468 = vunpack.c.l.b16 %v3343
  %v4469 = vunpack.c.h.b16 %v3343
  %v4470 = vunpack.c.l.b16 %v3344
  %v4471 = vunpack.c.l.b16 %v3345
  %v4472 = vunpack.c.h.b16 %v3345
  %v4473 = vunpack.c.l.b16 %v3346
  %v4474 = vunpack.c.h.b16 %v3346
  %v4475 = vunpack.c.l.b16 %v3347
  %v4476 = vunpack.c.h.b16 %v3347
  %v4477 = vunpack.c.l.b16 %v3348
  %v4478 = vunpack.c.l.b16 %v3349
  %v4479 = vunpack.c.h.b16 %v3349
  %v4480 = vunpack.c.l.b16 %v3350
  %v4481 = vunpack.c.h.b16 %v3350
  %v4482 = vunpack.c.l.b16 %v3351
  %v4483 = vunpack.c.h.b16 %v3351
  %v4484 = vunpack.c.l.b16 %v3352
  %v4485 = vunpack.c.l.b16 %v3353
  %v4486 = vunpack.c.h.b16 %v3353
  %v4487 = vunpack.c.l.b16 %v3354
  %v4488 = vunpack.c.h.b16 %v3354
  %v4489 = vunpack.c.l.b16 %v3355
  %v4490 = vunpack.c.h.b16 %v3355
  %v4491 = vunpack.c.l.b16 %v3356
  %v4492 = vunpack.c.l.b16 %v3357
  %v4493 = vunpack.c.h.b16 %v3357
  %v4494 = vunpack.c.l.b16 %v3358
  %v4495 = vunpack.c.h.b16 %v3358
  %v4496 = vunpack.c.l.b16 %v3359
  %v4497 = vunpack.c.h.b16 %v3359
  %v4498 = vunpack.c.l.b16 %v3360
  %v4499 = vunpack.c.l.b16 %v3361
  %v4500 = vunpack.c.h.b16 %v3361
  %v4501 = vunpack.c.l.b16 %v3362
  %v4502 = vunpack.c.h.b16 %v3362
  %v4503 = vunpack.c.l.b16 %v3363
  %v4504 = vunpack.c.h.b16 %v3363
  %v4505 = vunpack.c.l.b16 %v3364
  %v4506 = vunpack.c.l.b16 %v3365
  %v4507 = vunpack.c.h.b16 %v3365
  %v4508 = vunpack.c.l.b16 %v3366
  %v4509 = vunpack.c.h.b16 %v3366
  %v4510 = vunpack.c.l.b16 %v3367
  %v4511 = vunpack.c.h.b16 %v3367
  %v4512 = vunpack.c.l.b16 %v3368
  %v4513 = vunpack.c.l.b16 %v3369
  %v4514 = vunpack.c.h.b16 %v3369
  %v4515 = vunpack.c.l.b16 %v3370
  %v4516 = vunpack.c.h.b16 %v3370
  %v4517 = vunpack.c.l.b16 %v3371
  %v4518 = vunpack.c.h.b16 %v3371
  %v4519 = vunpack.c.l.b16 %v3372
  %v4520 = vunpack.c.l.b16 %v3373
  %v4521 = vunpack.c.h.b16 %v3373
  %v4522 = vunpack.c.l.b16 %v3374
  %v4523 = vunpack.c.h.b16 %v3374
  %v4524 = vunpack.c.l.b16 %v3375
  %v4525 = vunpack.c.h.b16 %v3375
  %v4526 = vunpack.c.l.b16 %v3376
  %v4527 = vunpack.c.l.b16 %v3377
  %v4528 = vunpack.c.h.b16 %v3377
  %v4529 = vunpack.c.l.b16 %v3378
  %v4530 = vunpack.c.h.b16 %v3378
  %v4531 = vunpack.c.l.b16 %v3379
  %v4532 = vunpack.c.h.b16 %v3379
  %v4533 = vunpack.c.l.b16 %v3380
  %v4534 = vunpack.c.l.b16 %v3381
  %v4535 = vunpack.c.h.b16 %v3381
  %v4536 = vunpack.c.l.b16 %v3382
  %v4537 = vunpack.c.h.b16 %v3382
  %v4538 = vunpack.c.l.b16 %v3383
  %v4539 = vunpack.c.h.b16 %v3383
  %v4540 = vunpack.c.l.b16 %v3384
  %v4541 = vunpack.c.l.b16 %v3385
  %v4542 = vunpack.c.h.b16 %v3385
  %v4543 = vunpack.c.l.b16 %v3386
  %v4544 = vunpack.c.h.b16 %v3386
  %v4545 = vunpack.c.l.b16 %v3387
  %v4546 = vunpack.c.h.b16 %v3387
  %v4547 = vunpack.c.l.b16 %v3388
  %v4548 = vunpack.c.l.b16 %v3389
  %v4549 = vunpack.c.h.b16 %v3389
  %v4550 = vunpack.c.l.b16 %v3390
  %v4551 = vunpack.c.h.b16 %v3390
  %v4552 = vunpack.c.l.b16 %v3391
  %v4553 = vunpack.c.h.b16 %v3391
  %v4554 = vunpack.c.l.b16 %v3392
  %v4555 = vunpack.c.l.b16 %v3393
  %v4556 = vunpack.c.h.b16 %v3393
  %v4557 = vunpack.c.l.b16 %v3394
  %v4558 = vunpack.c.h.b16 %v3394
  %v4559 = vunpack.c.l.b16 %v3395
  %v4560 = vunpack.c.h.b16 %v3395
  %v4561 = vunpack.c.l.b16 %v3396
  %v4562 = vunpack.c.l.b16 %v3397
  %v4563 = vunpack.c.h.b16 %v3397
  %v4564 = vunpack.c.l.b16 %v3398
  %v4565 = vunpack.c.h.b16 %v3398
  %v4566 = vunpack.c.l.b16 %v3399
  %v4567 = vunpack.c.h.b16 %v3399
  %v4568 = vunpack.c.l.b16 %v3400
  %v4569 = vunpack.c.l.b16 %v3401
  %v4570 = vunpack.c.h.b16 %v3401
  %v4571 = vunpack.c.l.b16 %v3402
  %v4572 = vunpack.c.h.b16 %v3402
  %v4573 = vunpack.c.l.b16 %v3403
  %v4574 = vunpack.c.h.b16 %v3403
  %v4575 = vunpack.c.l.b16 %v3404
  %v4576 = vunpack.c.l.b16 %v3405
  %v4577 = vunpack.c.h.b16 %v3405
  %v4578 = vunpack.c.l.b16 %v3406
  %v4579 = vunpack.c.h.b16 %v3406
  %v4580 = vunpack.c.l.b16 %v3407
  %v4581 = vunpack.c.h.b16 %v3407
  %v4582 = vunpack.c.l.b16 %v3408
  %v4583 = vunpack.c.l.b16 %v3409
  %v4584 = vunpack.c.h.b16 %v3409
  %v4585 = vunpack.c.l.b16 %v3410
  %v4586 = vunpack.c.h.b16 %v3410
  %v4587 = vunpack.c.l.b16 %v3411
  %v4588 = vunpack.c.h.b16 %v3411
  %v4589 = vunpack.c.l.b16 %v3412
  %v4590 = vunpack.c.l.b16 %v3413
  %v4591 = vunpack.c.h.b16 %v3413
  %v4592 = vunpack.c.l.b16 %v3414
  %v4593 = vunpack.c.h.b16 %v3414
  %v4594 = vunpack.c.l.b16 %v3415
  %v4595 = vunpack.c.h.b16 %v3415
  %v4596 = vunpack.c.l.b16 %v3416
  %v4597 = vunpack.c.l.b16 %v3417
  %v4598 = vunpack.c.h.b16 %v3417
  %v4599 = vunpack.c.l.b16 %v3418
  %v4600 = vunpack.c.h.b16 %v3418
  %v4601 = vunpack.c.l.b16 %v3419
  %v4602 = vunpack.c.h.b16 %v3419
  %v4603 = vunpack.c.l.b16 %v3420
  %v4604 = vunpack.c.l.b16 %v3421
  %v4605 = vunpack.c.h.b16 %v3421
  %v4606 = vunpack.c.l.b16 %v3422
  %v4607 = vunpack.c.h.b16 %v3422
  %v4608 = vunpack.c.l.b16 %v3423
  %v4609 = vunpack.c.h.b16 %v3423
  %v4610 = vunpack.c.l.b16 %v3424
  %v4611 = vunpack.c.l.b16 %v3425
  %v4612 = vunpack.c.h.b16 %v3425
  %v4613 = vunpack.c.l.b16 %v3426
  %v4614 = vunpack.c.h.b16 %v3426
  %v4615 = vunpack.c.l.b16 %v3427
  %v4616 = vunpack.c.h.b16 %v3427
  %v4617 = vunpack.c.l.b16 %v3428
  %v4618 = vunpack.c.l.b16 %v3429
  %v4619 = vunpack.c.h.b16 %v3429
  %v4620 = vunpack.c.l.b16 %v3430
  %v4621 = vunpack.c.h.b16 %v3430
  %v4622 = vunpack.c.l.b16 %v3431
  %v4623 = vunpack.c.h.b16 %v3431
  %v4624 = vunpack.c.l.b16 %v3432
  %v4625 = vunpack.c.l.b16 %v3433
  %v4626 = vunpack.c.h.b16 %v3433
  %v4627 = vunpack.c.l.b16 %v3434
  %v4628 = vunpack.c.h.b16 %v3434
  %v4629 = vunpack.c.l.b16 %v3435
  %v4630 = vunpack.c.h.b16 %v3435
  %v4631 = vunpack.c.l.b16 %v3436
  %v4632 = vunpack.c.l.b16 %v3437
  %v4633 = vunpack.c.h.b16 %v3437
  %v4634 = vunpack.c.l.b16 %v3438
  %v4635 = vunpack.c.h.b16 %v3438
  %v4636 = vunpack.c.l.b16 %v3439
  %v4637 = vunpack.c.h.b16 %v3439
  %v4638 = vunpack.c.l.b16 %v3440
  %v4639 = vunpack.c.l.b16 %v3441
  %v4640 = vunpack.c.h.b16 %v3441
  %v4641 = vunpack.c.l.b16 %v3442
  %v4642 = vunpack.c.h.b16 %v3442
  %v4643 = vunpack.c.l.b16 %v3443
  %v4644 = vunpack.c.h.b16 %v3443
  %v4645 = vunpack.c.l.b16 %v3444
  %v4646 = vunpack.c.l.b16 %v3445
  %v4647 = vunpack.c.h.b16 %v3445
  %v4648 = vunpack.c.l.b16 %v3446
  %v4649 = vunpack.c.h.b16 %v3446
  %v4650 = vunpack.c.l.b16 %v3447
  %v4651 = vunpack.c.h.b16 %v3447
  %v4652 = vunpack.c.l.b16 %v3448
  %v4653 = vunpack.c.l.b16 %v3449
  %v4654 = vunpack.c.h.b16 %v3449
  %v4655 = vunpack.c.l.b16 %v3450
  %v4656 = vunpack.c.h.b16 %v3450
  %v4657 = vunpack.c.l.b16 %v3451
  %v4658 = vunpack.c.h.b16 %v3451
  %v4659 = vunpack.c.l.b16 %v3452
  %v4660 = vunpack.c.l.b16 %v3453
  %v4661 = vunpack.c.h.b16 %v3453
  %v4662 = vunpack.c.l.b16 %v3454
  %v4663 = vunpack.c.h.b16 %v3454
  %v4664 = vunpack.c.l.b16 %v3455
  %v4665 = vunpack.c.h.b16 %v3455
  %v4666 = vunpack.c.l.b16 %v3456
  %v4667 = vunpack.c.l.b16 %v3457
  %v4668 = vunpack.c.h.b16 %v3457
  %v4669 = vunpack.c.l.b16 %v3458
  %v4670 = vunpack.c.h.b16 %v3458
  %v4671 = vunpack.c.l.b16 %v3459
  %v4672 = vunpack.c.h.b16 %v3459
  %v4673 = vunpack.c.l.b16 %v3460
  %v4674 = vunpack.c.l.b16 %v3461
  %v4675 = vunpack.c.h.b16 %v3461
  %v4676 = vunpack.c.l.b16 %v3462
  %v4677 = vunpack.c.h.b16 %v3462
  %v4678 = vunpack.c.l.b16 %v3463
  %v4679 = vunpack.c.h.b16 %v3463
  %v4680 = vunpack.c.l.b16 %v3464
  %v4681 = vunpack.c.l.b16 %v3465
  %v4682 = vunpack.c.h.b16 %v3465
  %v4683 = vunpack.c.l.b16 %v3466
  %v4684 = vunpack.c.h.b16 %v3466
  %v4685 = vunpack.c.l.b16 %v3467
  %v4686 = vunpack.c.h.b16 %v3467
  %v4687 = vunpack.c.l.b16 %v3468
  %v4688 = vunpack.c.l.b16 %v3469
  %v4689 = vunpack.c.h.b16 %v3469
  %v4690 = vunpack.c.l.b16 %v3470
  %v4691 = vunpack.c.h.b16 %v3470
  %v4692 = vunpack.c.l.b16 %v3471
  %v4693 = vunpack.c.h.b16 %v3471
  %v4694 = vunpack.c.l.b16 %v3472
  %v4695 = vunpack.c.l.b16 %v3473
  %v4696 = vunpack.c.h.b16 %v3473
  %v4697 = vunpack.c.l.b16 %v3474
  %v4698 = vunpack.c.h.b16 %v3474
  %v4699 = vunpack.c.l.b16 %v3475
  %v4700 = vunpack.c.h.b16 %v3475
  %v4701 = vunpack.c.l.b16 %v3476
  %v4702 = vunpack.c.l.b16 %v3477
  %v4703 = vunpack.c.h.b16 %v3477
  %v4704 = vunpack.c.l.b16 %v3478
  %v4705 = vunpack.c.h.b16 %v3478
  %v4706 = vunpack.c.l.b16 %v3479
  %v4707 = vunpack.c.h.b16 %v3479
  %v4708 = vunpack.c.l.b16 %v3480
  %v4709 = vunpack.c.l.b16 %v3481
  %v4710 = vunpack.c.h.b16 %v3481
  %v4711 = vunpack.c.l.b16 %v3482
  %v4712 = vunpack.c.h.b16 %v3482
  %v4713 = vunpack.c.l.b16 %v3483
  %v4714 = vunpack.c.h.b16 %v3483
  %v4715 = vunpack.c.l.b16 %v3484
  %v4716 = vunpack.c.l.b16 %v3485
  %v4717 = vunpack.c.h.b16 %v3485
  %v4718 = vunpack.c.l.b16 %v3486
  %v4719 = vunpack.c.h.b16 %v3486
  %v4720 = vunpack.c.l.b16 %v3487
  %v4721 = vunpack.c.h.b16 %v3487
  %v4722 = vunpack.c.l.b16 %v3488
  %v4723 = vunpack.c.l.b16 %v3489
  %v4724 = vunpack.c.h.b16 %v3489
  %v4725 = vunpack.c.l.b16 %v3490
  %v4726 = vunpack.c.h.b16 %v3490
  %v4727 = vunpack.c.l.b16 %v3491
  %v4728 = vunpack.c.h.b16 %v3491
  %v4729 = vunpack.c.l.b16 %v3492
  %v4730 = vunpack.c.l.b16 %v3493
  %v4731 = vunpack.c.h.b16 %v3493
  %v4732 = vunpack.c.l.b16 %v3494
  %v4733 = vunpack.c.h.b16 %v3494
  %v4734 = vunpack.c.l.b16 %v3495
  %v4735 = vunpack.c.h.b16 %v3495
  %v4736 = vunpack.c.l.b16 %v3496
  %v4737 = vunpack.c.l.b16 %v3497
  %v4738 = vunpack.c.h.b16 %v3497
  %v4739 = vunpack.c.l.b16 %v3498
  %v4740 = vunpack.c.h.b16 %v3498
  %v4741 = vunpack.c.l.b16 %v3499
  %v4742 = vunpack.c.h.b16 %v3499
  %v4743 = vunpack.c.l.b16 %v3500
  %v4744 = vunpack.c.l.b16 %v3501
  %v4745 = vunpack.c.h.b16 %v3501
  %v4746 = vunpack.c.l.b16 %v3502
  %v4747 = vunpack.c.h.b16 %v3502
  %v4748 = vunpack.c.l.b16 %v3503
  %v4749 = vunpack.c.h.b16 %v3503
  %v4750 = vunpack.c.l.b16 %v3504
  %v4751 = vunpack.c.l.b16 %v3505
  %v4752 = vunpack.c.h.b16 %v3505
  %v4753 = vunpack.c.l.b16 %v3506
  %v4754 = vunpack.c.h.b16 %v3506
  %v4755 = vunpack.c.l.b16 %v3507
  %v4756 = vunpack.c.h.b16 %v3507
  %v4757 = vunpack.c.l.b16 %v3508
  %v4758 = vunpack.c.l.b16 %v3509
  %v4759 = vunpack.c.h.b16 %v3509
  %v4760 = vunpack.c.l.b16 %v3510
  %v4761 = vunpack.c.h.b16 %v3510
  %v4762 = vunpack.c.l.b16 %v3511
  %v4763 = vunpack.c.h.b16 %v3511
  %v4764 = vunpack.c.l.b16 %v3512
  %v4765 = vunpack.c.l.b16 %v3513
  %v4766 = vunpack.c.h.b16 %v3513
  %v4767 = vunpack.c.l.b16 %v3514
  %v4768 = vunpack.c.h.b16 %v3514
  %v4769 = vunpack.c.l.b16 %v3515
  %v4770 = vunpack.c.h.b16 %v3515
  %v4771 = vunpack.c.l.b16 %v3516
  %v4772 = vunpack.c.l.b16 %v3517
  %v4773 = vunpack.c.h.b16 %v3517
  %v4774 = vunpack.c.l.b16 %v3518
  %v4775 = vunpack.c.h.b16 %v3518
  %v4776 = vunpack.c.l.b16 %v3519
  %v4777 = vunpack.c.h.b16 %v3519
  %v4778 = vunpack.c.l.b16 %v3520
  %v4779 = vunpack.c.l.b16 %v3521
  %v4780 = vunpack.c.h.b16 %v3521
  %v4781 = vunpack.c.l.b16 %v3522
  %v4782 = vunpack.c.h.b16 %v3522
  %v4783 = vunpack.c.l.b16 %v3523
  %v4784 = vunpack.c.h.b16 %v3523
  %v4785 = vunpack.c.l.b16 %v3524
  %v4786 = vunpack.c.l.b16 %v3525
  %v4787 = vunpack.c.h.b16 %v3525
  %v4788 = vunpack.c.l.b16 %v3526
  %v4789 = vunpack.c.h.b16 %v3526
  %v4790 = vunpack.c.l.b16 %v3527
  %v4791 = vunpack.c.h.b16 %v3527
  %v4792 = vunpack.c.l.b16 %v3528
  %v4793 = vunpack.c.l.b16 %v3529
  %v4794 = vunpack.c.h.b16 %v3529
  %v4795 = vunpack.c.l.b16 %v3530
  %v4796 = vunpack.c.h.b16 %v3530
  %v4797 = vunpack.c.l.b16 %v3531
  %v4798 = vunpack.c.h.b16 %v3531
  %v4799 = vunpack.c.l.b16 %v3532
  %v4800 = vunpack.c.l.b16 %v3533
  %v4801 = vunpack.c.h.b16 %v3533
  %v4802 = vunpack.c.l.b16 %v3534
  %v4803 = vunpack.c.h.b16 %v3534
  %v4804 = vunpack.c.l.b16 %v3535
  %v4805 = vunpack.c.h.b16 %v3535
  %v4806 = vunpack.c.l.b16 %v3536
  %v4807 = vunpack.c.l.b16 %v3537
  %v4808 = vunpack.c.h.b16 %v3537
  %v4809 = vunpack.c.l.b16 %v3538
  %v4810 = vunpack.c.h.b16 %v3538
  %v4811 = vunpack.c.l.b16 %v3539
  %v4812 = vunpack.c.h.b16 %v3539
  %v4813 = vunpack.c.l.b16 %v3540
  %v4814 = vunpack.c.l.b16 %v3541
  %v4815 = vunpack.c.h.b16 %v3541
  %v4816 = vunpack.c.l.b16 %v3542
  %v4817 = vunpack.c.h.b16 %v3542
  %v4818 = vunpack.c.l.b16 %v3543
  %v4819 = vunpack.c.h.b16 %v3543
  %v4820 = vunpack.c.l.b16 %v3544
  %v4821 = vunpack.c.l.b16 %v3545
  %v4822 = vunpack.c.h.b16 %v3545
  %v4823 = vunpack.c.l.b16 %v3546
  %v4824 = vunpack.c.h.b16 %v3546
  %v4825 = vunpack.c.l.b16 %v3547
  %v4826 = vunpack.c.h.b16 %v3547
  %v4827 = vunpack.c.l.b16 %v3548
  %v4828 = vunpack.c.l.b16 %v3549
  %v4829 = vunpack.c.h.b16 %v3549
  %v4830 = vunpack.c.l.b16 %v3550
  %v4831 = vunpack.c.h.b16 %v3550
  %v4832 = vunpack.c.l.b16 %v3551
  %v4833 = vunpack.c.h.b16 %v3551
  %v4834 = vunpack.c.l.b16 %v3552
  %v4835 = vunpack.c.l.b16 %v3553
  %v4836 = vunpack.c.h.b16 %v3553
  %v4837 = vunpack.c.l.b16 %v3554
  %v4838 = vunpack.c.h.b16 %v3554
  %v4839 = vunpack.c.l.b16 %v3555
  %v4840 = vunpack.c.h.b16 %v3555
  %v4841 = vunpack.c.l.b16 %v3556
  %v4842 = vunpack.c.l.b16 %v3557
  %v4843 = vunpack.c.h.b16 %v3557
  %v4844 = vunpack.c.l.b16 %v3558
  %v4845 = vunpack.c.h.b16 %v3558
  %v4846 = vunpack.c.l.b16 %v3559
  %v4847 = vunpack.c.h.b16 %v3559
  %v4848 = vunpack.c.l.b16 %v3560
  %v4849 = vunpack.c.l.b16 %v3561
  %v4850 = vunpack.c.h.b16 %v3561
  %v4851 = vunpack.c.l.b16 %v3562
  %v4852 = vunpack.c.h.b16 %v3562
  %v4853 = vunpack.c.l.b16 %v3563
  %v4854 = vunpack.c.h.b16 %v3563
  %v4855 = vunpack.c.l.b16 %v3564
  %v4856 = vunpack.c.l.b16 %v3565
  %v4857 = vunpack.c.h.b16 %v3565
  %v4858 = vunpack.c.l.b16 %v3566
  %v4859 = vunpack.c.h.b16 %v3566
  %v4860 = vunpack.c.l.b16 %v3567
  %v4861 = vunpack.c.h.b16 %v3567
  %v4862 = vunpack.c.l.b16 %v3568
  %v4863 = vunpack.c.l.b16 %v3569
  %v4864 = vunpack.c.h.b16 %v3569
  %v4865 = vunpack.c.l.b16 %v3570
  %v4866 = vunpack.c.h.b16 %v3570
  %v4867 = vunpack.c.l.b16 %v3571
  %v4868 = vunpack.c.h.b16 %v3571
  %v4869 = vunpack.c.l.b16 %v3572
  %v4870 = vunpack.c.l.b16 %v3573
  %v4871 = vunpack.c.h.b16 %v3573
  %v4872 = vunpack.c.l.b16 %v3574
  %v4873 = vunpack.c.h.b16 %v3574
  %v4874 = vunpack.c.l.b16 %v3575
  %v4875 = vunpack.c.h.b16 %v3575
  %v4876 = vunpack.c.l.b16 %v3576
  %v4877 = vunpack.c.l.b16 %v3577
  %v4878 = vunpack.c.h.b16 %v3577
  %v4879 = vunpack.c.l.b16 %v3578
  %v4880 = vunpack.c.h.b16 %v3578
  %v4881 = vunpack.c.l.b16 %v3579
  %v4882 = vunpack.c.h.b16 %v3579
  %v4883 = vunpack.c.l.b16 %v3580
  %v4884 = vunpack.c.l.b16 %v3581
  %v4885 = vunpack.c.h.b16 %v3581
  %v4886 = vunpack.c.l.b16 %v3582
  %v4887 = vunpack.c.h.b16 %v3582
  %v4888 = vunpack.c.l.b16 %v3583
  %v4889 = vunpack.c.h.b16 %v3583
  %v4890 = vunpack.c.l.b16 %v3584
  %v4891 = vunpack.c.l.b16 %v3585
  %v4892 = vunpack.c.h.b16 %v3585
  %v4893 = vunpack.c.l.b16 %v3586
  %v4894 = vunpack.c.h.b16 %v3586
  %v4895 = vunpack.c.l.b16 %v3587
  %v4896 = vunpack.c.h.b16 %v3587
  %v4897 = vunpack.c.l.b16 %v3588
  %v4898 = vunpack.c.l.b16 %v3589
  %v4899 = vunpack.c.h.b16 %v3589
  %v4900 = vunpack.c.l.b16 %v3590
  %v4901 = vunpack.c.h.b16 %v3590
  %v4902 = vunpack.c.l.b16 %v3591
  %v4903 = vunpack.c.h.b16 %v3591
  %v4904 = vunpack.c.l.b16 %v3592
  %v4905 = vunpack.c.l.b16 %v3593
  %v4906 = vunpack.c.h.b16 %v3593
  %v4907 = vunpack.c.l.b16 %v3594
  %v4908 = vunpack.c.h.b16 %v3594
  %v4909 = vunpack.c.l.b16 %v3595
  %v4910 = vunpack.c.h.b16 %v3595
  %v4911 = vunpack.c.l.b16 %v3596
  %v4912 = vunpack.c.l.b16 %v3597
  %v4913 = vunpack.c.h.b16 %v3597
  %v4914 = vunpack.c.l.b16 %v3598
  %v4915 = vunpack.c.h.b16 %v3598
  %v4916 = vunpack.c.l.b16 %v3599
  %v4917 = vunpack.c.h.b16 %v3599
  %v4918 = vunpack.c.l.b16 %v3600
  %v4919 = vunpack.c.l.b16 %v3601
  %v4920 = vunpack.c.h.b16 %v3601
  %v4921 = vunpack.c.l.b16 %v3602
  %v4922 = vunpack.c.h.b16 %v3602
  %v4923 = vunpack.c.l.b16 %v3603
  %v4924 = vunpack.c.h.b16 %v3603
  %v4925 = vunpack.c.l.b16 %v3604
  %v4926 = vunpack.c.l.b16 %v3605
  %v4927 = vunpack.c.h.b16 %v3605
  %v4928 = vunpack.c.l.b16 %v3606
  %v4929 = vunpack.c.h.b16 %v3606
  %v4930 = vunpack.c.l.b16 %v3607
  %v4931 = vunpack.c.h.b16 %v3607
  %v4932 = vunpack.c.l.b16 %v3608
  %v4933 = vunpack.c.l.b16 %v3609
  %v4934 = vunpack.c.h.b16 %v3609
  %v4935 = vunpack.c.l.b16 %v3610
  %v4936 = vunpack.c.h.b16 %v3610
  %v4937 = vunpack.c.l.b16 %v3611
  %v4938 = vunpack.c.h.b16 %v3611
  %v4939 = vunpack.c.l.b16 %v3612
  %v4940 = vunpack.c.l.b16 %v3613
  %v4941 = vunpack.c.h.b16 %v3613
  %v4942 = vunpack.c.l.b16 %v3614
  %v4943 = vunpack.c.h.b16 %v3614
  %v4944 = vunpack.c.l.b16 %v3615
  %v4945 = vunpack.c.h.b16 %v3615
  %v4946 = vunpack.c.l.b16 %v3616
  %v4947 = vunpack.c.l.b16 %v3617
  %v4948 = vunpack.c.h.b16 %v3617
  %v4949 = vunpack.c.l.b16 %v3618
  %v4950 = vunpack.c.h.b16 %v3618
  %v4951 = vunpack.c.l.b16 %v3619
  %v4952 = vunpack.c.h.b16 %v3619
  %v4953 = vunpack.c.l.b16 %v3620
  %v4954 = vunpack.c.l.b16 %v3621
  %v4955 = vunpack.c.h.b16 %v3621
  %v4956 = vunpack.c.l.b16 %v3622
  %v4957 = vunpack.c.h.b16 %v3622
  %v4958 = vunpack.c.l.b16 %v3623
  %v4959 = vunpack.c.h.b16 %v3623
  %v4960 = vunpack.c.l.b16 %v3624
  %v4961 = vunpack.c.l.b16 %v3625
  %v4962 = vunpack.c.h.b16 %v3625
  %v4963 = vunpack.c.l.b16 %v3626
  %v4964 = vunpack.c.h.b16 %v3626
  %v4965 = vunpack.c.l.b16 %v3627
  %v4966 = vunpack.c.h.b16 %v3627
  %v4967 = vunpack.c.l.b16 %v3628
  %v4968 = vunpack.c.l.b16 %v3629
  %v4969 = vunpack.c.h.b16 %v3629
  %v4970 = vunpack.c.l.b16 %v3630
  %v4971 = vunpack.c.h.b16 %v3630
  %v4972 = vunpack.c.l.b16 %v3631
  %v4973 = vunpack.c.h.b16 %v3631
  %v4974 = vunpack.c.l.b16 %v3632
  %v4975 = vunpack.c.l.b16 %v3633
  %v4976 = vunpack.c.h.b16 %v3633
  %v4977 = vunpack.c.l.b16 %v3634
  %v4978 = vunpack.c.h.b16 %v3634
  %v4979 = vunpack.c.l.b16 %v3635
  %v4980 = vunpack.c.h.b16 %v3635
  %v4981 = vunpack.c.l.b16 %v3636
  %v4982 = vunpack.c.l.b16 %v3637
  %v4983 = vunpack.c.h.b16 %v3637
  %v4984 = vunpack.c.l.b16 %v3638
  %v4985 = vunpack.c.h.b16 %v3638
  %v4986 = vunpack.c.l.b16 %v3639
  %v4987 = vunpack.c.h.b16 %v3639
  %v4988 = vunpack.c.l.b16 %v3640
  %v4989 = vunpack.c.l.b16 %v3641
  %v4990 = vunpack.c.h.b16 %v3641
  %v4991 = vunpack.c.l.b16 %v3642
  %v4992 = vunpack.c.h.b16 %v3642
  %v4993 = vunpack.c.l.b16 %v3643
  %v4994 = vunpack.c.h.b16 %v3643
  %v4995 = vunpack.c.l.b16 %v3644
  %v4996 = vunpack.c.l.b16 %v3645
  %v4997 = vunpack.c.h.b16 %v3645
  %v4998 = vunpack.c.l.b16 %v3646
  %v4999 = vunpack.c.h.b16 %v3646
  %v5000 = vunpack.c.l.b16 %v3647
  %v5001 = vunpack.c.h.b16 %v3647
  %v5002 = vunpack.c.l.b16 %v3648
  %v5003 = vunpack.c.l.b16 %v3649
  %v5004 = vunpack.c.h.b16 %v3649
  %v5005 = vunpack.c.l.b16 %v3650
  %v5006 = vunpack.c.h.b16 %v3650
  %v5007 = vunpack.c.l.b16 %v3651
  %v5008 = vunpack.c.h.b16 %v3651
  %v5009 = vunpack.c.l.b16 %v3652
  %v5010 = vunpack.c.l.b16 %v3653
  %v5011 = vunpack.c.h.b16 %v3653
  %v5012 = vunpack.c.l.b16 %v3654
  %v5013 = vunpack.c.h.b16 %v3654
  %v5014 = vunpack.c.l.b16 %v3655
  %v5015 = vunpack.c.h.b16 %v3655
  %v5016 = vunpack.c.l.b16 %v3656
  %v5017 = vunpack.c.l.b16 %v3657
  %v5018 = vunpack.c.h.b16 %v3657
  %v5019 = vunpack.c.l.b16 %v3658
  %v5020 = vunpack.c.h.b16 %v3658
  %v5021 = vunpack.c.l.b16 %v3659
  %v5022 = vunpack.c.h.b16 %v3659
  %v5023 = vunpack.c.l.b16 %v3660
  %v5024 = vunpack.c.l.b16 %v3661
  %v5025 = vunpack.c.h.b16 %v3661
  %v5026 = vunpack.c.l.b16 %v3662
  %v5027 = vunpack.c.h.b16 %v3662
  %v5028 = vunpack.c.l.b16 %v3663
  %v5029 = vunpack.c.h.b16 %v3663
  %v5030 = vunpack.c.l.b16 %v3664
  %v5031 = vunpack.c.l.b16 %v3665
  %v5032 = vunpack.c.h.b16 %v3665
  %v5033 = vunpack.c.l.b16 %v3666
  %v5034 = vunpack.c.h.b16 %v3666
  %v5035 = vunpack.c.l.b16 %v3667
  %v5036 = vunpack.c.h.b16 %v3667
  %v5037 = vunpack.c.l.b16 %v3668
  %v5038 = vunpack.c.l.b16 %v3669
  %v5039 = vunpack.c.h.b16 %v3669
  %v5040 = vunpack.c.l.b16 %v3670
  %v5041 = vunpack.c.h.b16 %v3670
  %v5042 = vunpack.c.l.b16 %v3671
  %v5043 = vunpack.c.h.b16 %v3671
  %v5044 = vunpack.c.l.b16 %v3672
  %v5045 = vunpack.c.l.b16 %v3673
  %v5046 = vunpack.c.h.b16 %v3673
  %v5047 = vunpack.c.l.b16 %v3674
  %v5048 = vunpack.c.h.b16 %v3674
  %v5049 = vunpack.c.l.b16 %v3675
  %v5050 = vunpack.c.h.b16 %v3675
  %v5051 = vunpack.c.l.b16 %v3676
  %v5052 = vunpack.c.l.b16 %v3677
  %v5053 = vunpack.c.h.b16 %v3677
  %v5054 = vunpack.c.l.b16 %v3678
  %v5055 = vunpack.c.h.b16 %v3678
  %v5056 = vunpack.c.l.b16 %v3679
  %v5057 = vunpack.c.h.b16 %v3679
  %v5058 = vunpack.c.l.b16 %v3680
  %v5059 = vunpack.c.l.b16 %v3681
  %v5060 = vunpack.c.h.b16 %v3681
  %v5061 = vunpack.c.l.b16 %v3682
  %v5062 = vunpack.c.h.b16 %v3682
  %v5063 = vunpack.c.l.b16 %v3683
  %v5064 = vunpack.c.h.b16 %v3683
  %v5065 = vunpack.c.l.b16 %v3684
  %v5066 = vunpack.c.l.b16 %v3685
  %v5067 = vunpack.c.h.b16 %v3685
  %v5068 = vunpack.c.l.b16 %v3686
  %v5069 = vunpack.c.h.b16 %v3686
  %v5070 = vunpack.c.l.b16 %v3687
  %v5071 = vunpack.c.h.b16 %v3687
  %v5072 = vunpack.c.l.b16 %v3688
  %v5073 = vunpack.c.l.b16 %v3689
  %v5074 = vunpack.c.h.b16 %v3689
  %v5075 = vunpack.c.l.b16 %v3690
  %v5076 = vunpack.c.h.b16 %v3690
  %v5077 = vunpack.c.l.b16 %v3691
  %v5078 = vunpack.c.h.b16 %v3691
  %v5079 = vunpack.c.l.b16 %v3692
  %v5080 = vunpack.c.l.b16 %v3693
  %v5081 = vunpack.c.h.b16 %v3693
  %v5082 = vunpack.c.l.b16 %v3694
  %v5083 = vunpack.c.h.b16 %v3694
  %v5084 = vunpack.c.l.b16 %v3695
  %v5085 = vunpack.c.h.b16 %v3695
  %v5086 = vunpack.c.l.b16 %v3696
  %v5087 = vunpack.c.l.b16 %v3697
  %v5088 = vunpack.c.h.b16 %v3697
  %v5089 = vunpack.c.l.b16 %v3698
  %v5090 = vunpack.c.h.b16 %v3698
  %v5091 = vunpack.c.l.b16 %v3699
  %v5092 = vunpack.c.h.b16 %v3699
  %v5093 = vunpack.c.l.b16 %v3700
  %v5094 = vunpack.c.l.b16 %v3701
  %v5095 = vunpack.c.h.b16 %v3701
  %v5096 = vunpack.c.l.b16 %v3702
  %v5097 = vunpack.c.h.b16 %v3702
  %v5098 = vunpack.c.l.b16 %v3703
  %v5099 = vunpack.c.h.b16 %v3703
  %v5100 = vunpack.c.l.b16 %v3704
  %v5101 = vunpack.c.l.b16 %v3705
  %v5102 = vunpack.c.h.b16 %v3705
  %v5103 = vunpack.c.l.b16 %v3706
  %v5104 = vunpack.c.h.b16 %v3706
  %v5105 = vunpack.c.l.b16 %v3707
  %v5106 = vunpack.c.h.b16 %v3707
  %v5107 = vunpack.c.l.b16 %v3708
  %v5108 = vunpack.c.l.b16 %v3709
  %v5109 = vunpack.c.h.b16 %v3709
  %v5110 = vunpack.c.l.b16 %v3710
  %v5111 = vunpack.c.h.b16 %v3710
  %v5112 = vunpack.c.l.b16 %v3711
  %v5113 = vunpack.c.h.b16 %v3711
  %v5114 = vunpack.c.l.b16 %v3712
  %v5115 = vunpack.c.l.b16 %v3713
  %v5116 = vunpack.c.h.b16 %v3713
  %v5117 = vunpack.c.l.b16 %v3714
  %v5118 = vunpack.c.h.b16 %v3714
  %v5119 = vunpack.c.l.b16 %v3715
  %v5120 = vunpack.c.h.b16 %v3715
  %v5121 = vunpack.c.l.b16 %v3716
  %v5122 = vunpack.c.l.b16 %v3717
  %v5123 = vunpack.c.h.b16 %v3717
  %v5124 = vunpack.c.l.b16 %v3718
  %v5125 = vunpack.c.h.b16 %v3718
  %v5126 = vunpack.c.l.b16 %v3719
  %v5127 = vunpack.c.h.b16 %v3719
  %v5128 = vunpack.c.l.b16 %v3720
  %v5129 = vunpack.c.l.b16 %v3721
  %v5130 = vunpack.c.h.b16 %v3721
  %v5131 = vunpack.c.l.b16 %v3722
  %v5132 = vunpack.c.h.b16 %v3722
  %v5133 = vunpack.c.l.b16 %v3723
  %v5134 = vunpack.c.h.b16 %v3723
  %v5135 = vunpack.c.l.b16 %v3724
  %v5136 = vunpack.c.l.b16 %v3725
  %v5137 = vunpack.c.h.b16 %v3725
  %v5138 = vunpack.c.l.b16 %v3726
  %v5139 = vunpack.c.h.b16 %v3726
  %v5140 = vunpack.c.l.b16 %v3727
  %v5141 = vunpack.c.h.b16 %v3727
  %v5142 = vunpack.c.l.b16 %v3728
  %v5143 = vunpack.c.l.b16 %v3729
  %v5144 = vunpack.c.h.b16 %v3729
  %v5145 = vunpack.c.l.b16 %v3730
  %v5146 = vunpack.c.h.b16 %v3730
  %v5147 = vunpack.c.l.b16 %v3731
  %v5148 = vunpack.c.h.b16 %v3731
  %v5149 = vunpack.c.l.b16 %v3732
  %v5150 = vunpack.c.l.b16 %v3733
  %v5151 = vunpack.c.h.b16 %v3733
  %v5152 = vunpack.c.l.b16 %v3734
  %v5153 = vunpack.c.h.b16 %v3734
  %v5154 = vunpack.c.l.b16 %v3735
  %v5155 = vunpack.c.h.b16 %v3735
  %v5156 = vunpack.c.l.b16 %v3736
  %v5157 = vunpack.c.l.b16 %v3737
  %v5158 = vunpack.c.h.b16 %v3737
  %v5159 = vunpack.c.l.b16 %v3738
  %v5160 = vunpack.c.h.b16 %v3738
  %v5161 = vunpack.c.l.b16 %v3739
  %v5162 = vunpack.c.h.b16 %v3739
  %v5163 = vunpack.c.l.b16 %v3740
  %v5164 = vpack.c.b16 %v4275, %v4268
  %v5165 = vpack.c.b16 %v4276, %v4269
  %v5166 = vpack.c.b16 %v4277, %v4270
  %v5167 = vpack.c.b16 %v4278, %v4271
  %v5168 = vpack.c.b16 %v4279, %v4272
  %v5169 = vpack.c.b16 %v4280, %v4273
  %v5170 = vpack.c.b16 %v4281, %v4274
  %v5171 = vpack.c.b16 %v4289, %v4282
  %v5172 = vpack.c.b16 %v4290, %v4283
  %v5173 = vpack.c.b16 %v4291, %v4284
  %v5174 = vpack.c.b16 %v4292, %v4285
  %v5175 = vpack.c.b16 %v4293, %v4286
  %v5176 = vpack.c.b16 %v4294, %v4287
  %v5177 = vpack.c.b16 %v4295, %v4288
  %v5178 = vpack.c.b16 %v4303, %v4296
  %v5179 = vpack.c.b16 %v4304, %v4297
  %v5180 = vpack.c.b16 %v4305, %v4298
  %v5181 = vpack.c.b16 %v4306, %v4299
  %v5182 = vpack.c.b16 %v4307, %v4300
  %v5183 = vpack.c.b16 %v4308, %v4301
  %v5184 = vpack.c.b16 %v4309, %v4302
  %v5185 = vpack.c.b16 %v4317, %v4310
  %v5186 = vpack.c.b16 %v4318, %v4311
  %v5187 = vpack.c.b16 %v4319, %v4312
  %v5188 = vpack.c.b16 %v4320, %v4313
  %v5189 = vpack.c.b16 %v4321, %v4314
  %v5190 = vpack.c.b16 %v4322, %v4315
  %v5191 = vpack.c.b16 %v4323, %v4316
  %v5192 = vpack.c.b16 %v4331, %v4324
  %v5193 = vpack.c.b16 %v4332, %v4325
  %v5194 = vpack.c.b16 %v4333, %v4326
  %v5195 = vpack.c.b16 %v4334, %v4327
  %v5196 = vpack.c.b16 %v4335, %v4328
  %v5197 = vpack.c.b16 %v4336, %v4329
  %v5198 = vpack.c.b16 %v4337, %v4330
  %v5199 = vpack.c.b16 %v4345, %v4338
  %v5200 = vpack.c.b16 %v4346, %v4339
  %v5201 = vpack.c.b16 %v4347, %v4340
  %v5202 = vpack.c.b16 %v4348, %v4341
  %v5203 = vpack.c.b16 %v4349, %v4342
  %v5204 = vpack.c.b16 %v4350, %v4343
  %v5205 = vpack.c.b16 %v4351, %v4344
  %v5206 = vpack.c.b16 %v4359, %v4352
  %v5207 = vpack.c.b16 %v4360, %v4353
  %v5208 = vpack.c.b16 %v4361, %v4354
  %v5209 = vpack.c.b16 %v4362, %v4355
  %v5210 = vpack.c.b16 %v4363, %v4356
  %v5211 = vpack.c.b16 %v4364, %v4357
  %v5212 = vpack.c.b16 %v4365, %v4358
  %v5213 = vpack.c.b16 %v4373, %v4366
  %v5214 = vpack.c.b16 %v4374, %v4367
  %v5215 = vpack.c.b16 %v4375, %v4368
  %v5216 = vpack.c.b16 %v4376, %v4369
  %v5217 = vpack.c.b16 %v4377, %v4370
  %v5218 = vpack.c.b16 %v4378, %v4371
  %v5219 = vpack.c.b16 %v4379, %v4372
  %v5220 = vpack.c.b16 %v4387, %v4380
  %v5221 = vpack.c.b16 %v4388, %v4381
  %v5222 = vpack.c.b16 %v4389, %v4382
  %v5223 = vpack.c.b16 %v4390, %v4383
  %v5224 = vpack.c.b16 %v4391, %v4384
  %v5225 = vpack.c.b16 %v4392, %v4385
  %v5226 = vpack.c.b16 %v4393, %v4386
  %v5227 = vpack.c.b16 %v4401, %v4394
  %v5228 = vpack.c.b16 %v4402, %v4395
  %v5229 = vpack.c.b16 %v4403, %v4396
  %v5230 = vpack.c.b16 %v4404, %v4397
  %v5231 = vpack.c.b16 %v4405, %v4398
  %v5232 = vpack.c.b16 %v4406, %v4399
  %v5233 = vpack.c.b16 %v4407, %v4400
  %v5234 = vpack.c.b16 %v4415, %v4408
  %v5235 = vpack.c.b16 %v4416, %v4409
  %v5236 = vpack.c.b16 %v4417, %v4410
  %v5237 = vpack.c.b16 %v4418, %v4411
  %v5238 = vpack.c.b16 %v4419, %v4412
  %v5239 = vpack.c.b16 %v4420, %v4413
  %v5240 = vpack.c.b16 %v4421, %v4414
  %v5241 = vpack.c.b16 %v4429, %v4422
  %v5242 = vpack.c.b16 %v4430, %v4423
  %v5243 = vpack.c.b16 %v4431, %v4424
  %v5244 = vpack.c.b16 %v4432, %v4425
  %v5245 = vpack.c.b16 %v4433, %v4426
  %v5246 = vpack.c.b16 %v4434, %v4427
  %v5247 = vpack.c.b16 %v4435, %v4428
  %v5248 = vpack.c.b16 %v4443, %v4436
  %v5249 = vpack.c.b16 %v4444, %v4437
  %v5250 = vpack.c.b16 %v4445, %v4438
  %v5251 = vpack.c.b16 %v4446, %v4439
  %v5252 = vpack.c.b16 %v4447, %v4440
  %v5253 = vpack.c.b16 %v4448, %v4441
  %v5254 = vpack.c.b16 %v4449, %v4442
  %v5255 = vpack.c.b16 %v4457, %v4450
  %v5256 = vpack.c.b16 %v4458, %v4451
  %v5257 = vpack.c.b16 %v4459, %v4452
  %v5258 = vpack.c.b16 %v4460, %v4453
  %v5259 = vpack.c.b16 %v4461, %v4454
  %v5260 = vpack.c.b16 %v4462, %v4455
  %v5261 = vpack.c.b16 %v4463, %v4456
  %v5262 = vpack.c.b16 %v4471, %v4464
  %v5263 = vpack.c.b16 %v4472, %v4465
  %v5264 = vpack.c.b16 %v4473, %v4466
  %v5265 = vpack.c.b16 %v4474, %v4467
  %v5266 = vpack.c.b16 %v4475, %v4468
  %v5267 = vpack.c.b16 %v4476, %v4469
  %v5268 = vpack.c.b16 %v4477, %v4470
  %v5269 = vpack.c.b16 %v4485, %v4478
  %v5270 = vpack.c.b16 %v4486, %v4479
  %v5271 = vpack.c.b16 %v4487, %v4480
  %v5272 = vpack.c.b16 %v4488, %v4481
  %v5273 = vpack.c.b16 %v4489, %v4482
  %v5274 = vpack.c.b16 %v4490, %v4483
  %v5275 = vpack.c.b16 %v4491, %v4484
  %v5276 = vpack.c.b16 %v4499, %v4492
  %v5277 = vpack.c.b16 %v4500, %v4493
  %v5278 = vpack.c.b16 %v4501, %v4494
  %v5279 = vpack.c.b16 %v4502, %v4495
  %v5280 = vpack.c.b16 %v4503, %v4496
  %v5281 = vpack.c.b16 %v4504, %v4497
  %v5282 = vpack.c.b16 %v4505, %v4498
  %v5283 = vpack.c.b16 %v4513, %v4506
  %v5284 = vpack.c.b16 %v4514, %v4507
  %v5285 = vpack.c.b16 %v4515, %v4508
  %v5286 = vpack.c.b16 %v4516, %v4509
  %v5287 = vpack.c.b16 %v4517, %v4510
  %v5288 = vpack.c.b16 %v4518, %v4511
  %v5289 = vpack.c.b16 %v4519, %v4512
  %v5290 = vpack.c.b16 %v4527, %v4520
  %v5291 = vpack.c.b16 %v4528, %v4521
  %v5292 = vpack.c.b16 %v4529, %v4522
  %v5293 = vpack.c.b16 %v4530, %v4523
  %v5294 = vpack.c.b16 %v4531, %v4524
  %v5295 = vpack.c.b16 %v4532, %v4525
  %v5296 = vpack.c.b16 %v4533, %v4526
  %v5297 = vpack.c.b16 %v4541, %v4534
  %v5298 = vpack.c.b16 %v4542, %v4535
  %v5299 = vpack.c.b16 %v4543, %v4536
  %v5300 = vpack.c.b16 %v4544, %v4537
  %v5301 = vpack.c.b16 %v4545, %v4538
  %v5302 = vpack.c.b16 %v4546, %v4539
  %v5303 = vpack.c.b16 %v4547, %v4540
  %v5304 = vpack.c.b16 %v4555, %v4548
  %v5305 = vpack.c.b16 %v4556, %v4549
  %v5306 = vpack.c.b16 %v4557, %v4550
  %v5307 = vpack.c.b16 %v4558, %v4551
  %v5308 = vpack.c.b16 %v4559, %v4552
  %v5309 = vpack.c.b16 %v4560, %v4553
  %v5310 = vpack.c.b16 %v4561, %v4554
  %v5311 = vpack.c.b16 %v4569, %v4562
  %v5312 = vpack.c.b16 %v4570, %v4563
  %v5313 = vpack.c.b16 %v4571, %v4564
  %v5314 = vpack.c.b16 %v4572, %v4565
  %v5315 = vpack.c.b16 %v4573, %v4566
  %v5316 = vpack.c.b16 %v4574, %v4567
  %v5317 = vpack.c.b16 %v4575, %v4568
  %v5318 = vpack.c.b16 %v4583, %v4576
  %v5319 = vpack.c.b16 %v4584, %v4577
  %v5320 = vpack.c.b16 %v4585, %v4578
  %v5321 = vpack.c.b16 %v4586, %v4579
  %v5322 = vpack.c.b16 %v4587, %v4580
  %v5323 = vpack.c.b16 %v4588, %v4581
  %v5324 = vpack.c.b16 %v4589, %v4582
  %v5325 = vpack.c.b16 %v4597, %v4590
  %v5326 = vpack.c.b16 %v4598, %v4591
  %v5327 = vpack.c.b16 %v4599, %v4592
  %v5328 = vpack.c.b16 %v4600, %v4593
  %v5329 = vpack.c.b16 %v4601, %v4594
  %v5330 = vpack.c.b16 %v4602, %v4595
  %v5331 = vpack.c.b16 %v4603, %v4596
  %v5332 = vpack.c.b16 %v4611, %v4604
  %v5333 = vpack.c.b16 %v4612, %v4605
  %v5334 = vpack.c.b16 %v4613, %v4606
  %v5335 = vpack.c.b16 %v4614, %v4607
  %v5336 = vpack.c.b16 %v4615, %v4608
  %v5337 = vpack.c.b16 %v4616, %v4609
  %v5338 = vpack.c.b16 %v4617, %v4610
  %v5339 = vpack.c.b16 %v4625, %v4618
  %v5340 = vpack.c.b16 %v4626, %v4619
  %v5341 = vpack.c.b16 %v4627, %v4620
  %v5342 = vpack.c.b16 %v4628, %v4621
  %v5343 = vpack.c.b16 %v4629, %v4622
  %v5344 = vpack.c.b16 %v4630, %v4623
  %v5345 = vpack.c.b16 %v4631, %v4624
  %v5346 = vpack.c.b16 %v4639, %v4632
  %v5347 = vpack.c.b16 %v4640, %v4633
  %v5348 = vpack.c.b16 %v4641, %v4634
  %v5349 = vpack.c.b16 %v4642, %v4635
  %v5350 = vpack.c.b16 %v4643, %v4636
  %v5351 = vpack.c.b16 %v4644, %v4637
  %v5352 = vpack.c.b16 %v4645, %v4638
  %v5353 = vpack.c.b16 %v4653, %v4646
  %v5354 = vpack.c.b16 %v4654, %v4647
  %v5355 = vpack.c.b16 %v4655, %v4648
  %v5356 = vpack.c.b16 %v4656, %v4649
  %v5357 = vpack.c.b16 %v4657, %v4650
  %v5358 = vpack.c.b16 %v4658, %v4651
  %v5359 = vpack.c.b16 %v4659, %v4652
  %v5360 = vpack.c.b16 %v4667, %v4660
  %v5361 = vpack.c.b16 %v4668, %v4661
  %v5362 = vpack.c.b16 %v4669, %v4662
  %v5363 = vpack.c.b16 %v4670, %v4663
  %v5364 = vpack.c.b16 %v4671, %v4664
  %v5365 = vpack.c.b16 %v4672, %v4665
  %v5366 = vpack.c.b16 %v4673, %v4666
  %v5367 = vpack.c.b16 %v4681, %v4674
  %v5368 = vpack.c.b16 %v4682, %v4675
  %v5369 = vpack.c.b16 %v4683, %v4676
  %v5370 = vpack.c.b16 %v4684, %v4677
  %v5371 = vpack.c.b16 %v4685, %v4678
  %v5372 = vpack.c.b16 %v4686, %v4679
  %v5373 = vpack.c.b16 %v4687, %v4680
  %v5374 = vpack.c.b16 %v4695, %v4688
  %v5375 = vpack.c.b16 %v4696, %v4689
  %v5376 = vpack.c.b16 %v4697, %v4690
  %v5377 = vpack.c.b16 %v4698, %v4691
  %v5378 = vpack.c.b16 %v4699, %v4692
  %v5379 = vpack.c.b16 %v4700, %v4693
  %v5380 = vpack.c.b16 %v4701, %v4694
  %v5381 = vpack.c.b16 %v4709, %v4702
  %v5382 = vpack.c.b16 %v4710, %v4703
  %v5383 = vpack.c.b16 %v4711, %v4704
  %v5384 = vpack.c.b16 %v4712, %v4705
  %v5385 = vpack.c.b16 %v4713, %v4706
  %v5386 = vpack.c.b16 %v4714, %v4707
  %v5387 = vpack.c.b16 %v4715, %v4708
  %v5388 = vpack.c.b16 %v4723, %v4716
  %v5389 = vpack.c.b16 %v4724, %v4717
  %v5390 = vpack.c.b16 %v4725, %v4718
  %v5391 = vpack.c.b16 %v4726, %v4719
  %v5392 = vpack.c.b16 %v4727, %v4720
  %v5393 = vpack.c.b16 %v4728, %v4721
  %v5394 = vpack.c.b16 %v4729, %v4722
  %v5395 = vpack.c.b16 %v4737, %v4730
  %v5396 = vpack.c.b16 %v4738, %v4731
  %v5397 = vpack.c.b16 %v4739, %v4732
  %v5398 = vpack.c.b16 %v4740, %v4733
  %v5399 = vpack.c.b16 %v4741, %v4734
  %v5400 = vpack.c.b16 %v4742, %v4735
  %v5401 = vpack.c.b16 %v4743, %v4736
  %v5402 = vpack.c.b16 %v4751, %v4744
  %v5403 = vpack.c.b16 %v4752, %v4745
  %v5404 = vpack.c.b16 %v4753, %v4746
  %v5405 = vpack.c.b16 %v4754, %v4747
  %v5406 = vpack.c.b16 %v4755, %v4748
  %v5407 = vpack.c.b16 %v4756, %v4749
  %v5408 = vpack.c.b16 %v4757, %v4750
  %v5409 = vpack.c.b16 %v4765, %v4758
  %v5410 = vpack.c.b16 %v4766, %v4759
  %v5411 = vpack.c.b16 %v4767, %v4760
  %v5412 = vpack.c.b16 %v4768, %v4761
  %v5413 = vpack.c.b16 %v4769, %v4762
  %v5414 = vpack.c.b16 %v4770, %v4763
  %v5415 = vpack.c.b16 %v4771, %v4764
  %v5416 = vpack.c.b16 %v4779, %v4772
  %v5417 = vpack.c.b16 %v4780, %v4773
  %v5418 = vpack.c.b16 %v4781, %v4774
  %v5419 = vpack.c.b16 %v4782, %v4775
  %v5420 = vpack.c.b16 %v4783, %v4776
  %v5421 = vpack.c.b16 %v4784, %v4777
  %v5422 = vpack.c.b16 %v4785, %v4778
  %v5423 = vpack.c.b16 %v4793, %v4786
  %v5424 = vpack.c.b16 %v4794, %v4787
  %v5425 = vpack.c.b16 %v4795, %v4788
  %v5426 = vpack.c.b16 %v4796, %v4789
  %v5427 = vpack.c.b16 %v4797, %v4790
  %v5428 = vpack.c.b16 %v4798, %v4791
  %v5429 = vpack.c.b16 %v4799, %v4792
  %v5430 = vpack.c.b16 %v4807, %v4800
  %v5431 = vpack.c.b16 %v4808, %v4801
  %v5432 = vpack.c.b16 %v4809, %v4802
  %v5433 = vpack.c.b16 %v4810, %v4803
  %v5434 = vpack.c.b16 %v4811, %v4804
  %v5435 = vpack.c.b16 %v4812, %v4805
  %v5436 = vpack.c.b16 %v4813, %v4806
  %v5437 = vpack.c.b16 %v4821, %v4814
  %v5438 = vpack.c.b16 %v4822, %v4815
  %v5439 = vpack.c.b16 %v4823, %v4816
  %v5440 = vpack.c.b16 %v4824, %v4817
  %v5441 = vpack.c.b16 %v4825, %v4818
  %v5442 = vpack.c.b16 %v4826, %v4819
  %v5443 = vpack.c.b16 %v4827, %v4820
  %v5444 = vpack.c.b16 %v4835, %v4828
  %v5445 = vpack.c.b16 %v4836, %v4829
  %v5446 = vpack.c.b16 %v4837, %v4830
  %v5447 = vpack.c.b16 %v4838, %v4831
  %v5448 = vpack.c.b16 %v4839, %v4832
  %v5449 = vpack.c.b16 %v4840, %v4833
  %v5450 = vpack.c.b16 %v4841, %v4834
  %v5451 = vpack.c.b16 %v4849, %v4842
  %v5452 = vpack.c.b16 %v4850, %v4843
  %v5453 = vpack.c.b16 %v4851, %v4844
  %v5454 = vpack.c.b16 %v4852, %v4845
  %v5455 = vpack.c.b16 %v4853, %v4846
  %v5456 = vpack.c.b16 %v4854, %v4847
  %v5457 = vpack.c.b16 %v4855, %v4848
  %v5458 = vpack.c.b16 %v4863, %v4856
  %v5459 = vpack.c.b16 %v4864, %v4857
  %v5460 = vpack.c.b16 %v4865, %v4858
  %v5461 = vpack.c.b16 %v4866, %v4859
  %v5462 = vpack.c.b16 %v4867, %v4860
  %v5463 = vpack.c.b16 %v4868, %v4861
  %v5464 = vpack.c.b16 %v4869, %v4862
  %v5465 = vpack.c.b16 %v4877, %v4870
  %v5466 = vpack.c.b16 %v4878, %v4871
  %v5467 = vpack.c.b16 %v4879, %v4872
  %v5468 = vpack.c.b16 %v4880, %v4873
  %v5469 = vpack.c.b16 %v4881, %v4874
  %v5470 = vpack.c.b16 %v4882, %v4875
  %v5471 = vpack.c.b16 %v4883, %v4876
  %v5472 = vpack.c.b16 %v4891, %v4884
  %v5473 = vpack.c.b16 %v4892, %v4885
  %v5474 = vpack.c.b16 %v4893, %v4886
  %v5475 = vpack.c.b16 %v4894, %v4887
  %v5476 = vpack.c.b16 %v4895, %v4888
  %v5477 = vpack.c.b16 %v4896, %v4889
  %v5478 = vpack.c.b16 %v4897, %v4890
  %v5479 = vpack.c.b16 %v4905, %v4898
  %v5480 = vpack.c.b16 %v4906, %v4899
  %v5481 = vpack.c.b16 %v4907, %v4900
  %v5482 = vpack.c.b16 %v4908, %v4901
  %v5483 = vpack.c.b16 %v4909, %v4902
  %v5484 = vpack.c.b16 %v4910, %v4903
  %v5485 = vpack.c.b16 %v4911, %v4904
  %v5486 = vpack.c.b16 %v4919, %v4912
  %v5487 = vpack.c.b16 %v4920, %v4913
  %v5488 = vpack.c.b16 %v4921, %v4914
  %v5489 = vpack.c.b16 %v4922, %v4915
  %v5490 = vpack.c.b16 %v4923, %v4916
  %v5491 = vpack.c.b16 %v4924, %v4917
  %v5492 = vpack.c.b16 %v4925, %v4918
  %v5493 = vpack.c.b16 %v4933, %v4926
  %v5494 = vpack.c.b16 %v4934, %v4927
  %v5495 = vpack.c.b16 %v4935, %v4928
  %v5496 = vpack.c.b16 %v4936, %v4929
  %v5497 = vpack.c.b16 %v4937, %v4930
  %v5498 = vpack.c.b16 %v4938, %v4931
  %v5499 = vpack.c.b16 %v4939, %v4932
  %v5500 = vpack.c.b16 %v4947, %v4940
  %v5501 = vpack.c.b16 %v4948, %v4941
  %v5502 = vpack.c.b16 %v4949, %v4942
  %v5503 = vpack.c.b16 %v4950, %v4943
  %v5504 = vpack.c.b16 %v4951, %v4944
  %v5505 = vpack.c.b16 %v4952, %v4945
  %v5506 = vpack.c.b16 %v4953, %v4946
  %v5507 = vpack.c.b16 %v4961, %v4954
  %v5508 = vpack.c.b16 %v4962, %v4955
  %v5509 = vpack.c.b16 %v4963, %v4956
  %v5510 = vpack.c.b16 %v4964, %v4957
  %v5511 = vpack.c.b16 %v4965, %v4958
  %v5512 = vpack.c.b16 %v4966, %v4959
  %v5513 = vpack.c.b16 %v4967, %v4960
  %v5514 = vpack.c.b16 %v4975, %v4968
  %v5515 = vpack.c.b16 %v4976, %v4969
  %v5516 = vpack.c.b16 %v4977, %v4970
  %v5517 = vpack.c.b16 %v4978, %v4971
  %v5518 = vpack.c.b16 %v4979, %v4972
  %v5519 = vpack.c.b16 %v4980, %v4973
  %v5520 = vpack.c.b16 %v4981, %v4974
  %v5521 = vpack.c.b16 %v4989, %v4982
  %v5522 = vpack.c.b16 %v4990, %v4983
  %v5523 = vpack.c.b16 %v4991, %v4984
  %v5524 = vpack.c.b16 %v4992, %v4985
  %v5525 = vpack.c.b16 %v4993, %v4986
  %v5526 = vpack.c.b16 %v4994, %v4987
  %v5527 = vpack.c.b16 %v4995, %v4988
  %v5528 = vpack.c.b16 %v5003, %v4996
  %v5529 = vpack.c.b16 %v5004, %v4997
  %v5530 = vpack.c.b16 %v5005, %v4998
  %v5531 = vpack.c.b16 %v5006, %v4999
  %v5532 = vpack.c.b16 %v5007, %v5000
  %v5533 = vpack.c.b16 %v5008, %v5001
  %v5534 = vpack.c.b16 %v5009, %v5002
  %v5535 = vpack.c.b16 %v5017, %v5010
  %v5536 = vpack.c.b16 %v5018, %v5011
  %v5537 = vpack.c.b16 %v5019, %v5012
  %v5538 = vpack.c.b16 %v5020, %v5013
  %v5539 = vpack.c.b16 %v5021, %v5014
  %v5540 = vpack.c.b16 %v5022, %v5015
  %v5541 = vpack.c.b16 %v5023, %v5016
  %v5542 = vpack.c.b16 %v5031, %v5024
  %v5543 = vpack.c.b16 %v5032, %v5025
  %v5544 = vpack.c.b16 %v5033, %v5026
  %v5545 = vpack.c.b16 %v5034, %v5027
  %v5546 = vpack.c.b16 %v5035, %v5028
  %v5547 = vpack.c.b16 %v5036, %v5029
  %v5548 = vpack.c.b16 %v5037, %v5030
  %v5549 = vpack.c.b16 %v5045, %v5038
  %v5550 = vpack.c.b16 %v5046, %v5039
  %v5551 = vpack.c.b16 %v5047, %v5040
  %v5552 = vpack.c.b16 %v5048, %v5041
  %v5553 = vpack.c.b16 %v5049, %v5042
  %v5554 = vpack.c.b16 %v5050, %v5043
  %v5555 = vpack.c.b16 %v5051, %v5044
  %v5556 = vpack.c.b16 %v5059, %v5052
  %v5557 = vpack.c.b16 %v5060, %v5053
  %v5558 = vpack.c.b16 %v5061, %v5054
  %v5559 = vpack.c.b16 %v5062, %v5055
  %v5560 = vpack.c.b16 %v5063, %v5056
  %v5561 = vpack.c.b16 %v5064, %v5057
  %v5562 = vpack.c.b16 %v5065, %v5058
  %v5563 = vpack.c.b16 %v5073, %v5066
  %v5564 = vpack.c.b16 %v5074, %v5067
  %v5565 = vpack.c.b16 %v5075, %v5068
  %v5566 = vpack.c.b16 %v5076, %v5069
  %v5567 = vpack.c.b16 %v5077, %v5070
  %v5568 = vpack.c.b16 %v5078, %v5071
  %v5569 = vpack.c.b16 %v5079, %v5072
  %v5570 = vpack.c.b16 %v5087, %v5080
  %v5571 = vpack.c.b16 %v5088, %v5081
  %v5572 = vpack.c.b16 %v5089, %v5082
  %v5573 = vpack.c.b16 %v5090, %v5083
  %v5574 = vpack.c.b16 %v5091, %v5084
  %v5575 = vpack.c.b16 %v5092, %v5085
  %v5576 = vpack.c.b16 %v5093, %v5086
  %v5577 = vpack.c.b16 %v5101, %v5094
  %v5578 = vpack.c.b16 %v5102, %v5095
  %v5579 = vpack.c.b16 %v5103, %v5096
  %v5580 = vpack.c.b16 %v5104, %v5097
  %v5581 = vpack.c.b16 %v5105, %v5098
  %v5582 = vpack.c.b16 %v5106, %v5099
  %v5583 = vpack.c.b16 %v5107, %v5100
  %v5584 = vpack.c.b16 %v5115, %v5108
  %v5585 = vpack.c.b16 %v5116, %v5109
  %v5586 = vpack.c.b16 %v5117, %v5110
  %v5587 = vpack.c.b16 %v5118, %v5111
  %v5588 = vpack.c.b16 %v5119, %v5112
  %v5589 = vpack.c.b16 %v5120, %v5113
  %v5590 = vpack.c.b16 %v5121, %v5114
  %v5591 = vpack.c.b16 %v5129, %v5122
  %v5592 = vpack.c.b16 %v5130, %v5123
  %v5593 = vpack.c.b16 %v5131, %v5124
  %v5594 = vpack.c.b16 %v5132, %v5125
  %v5595 = vpack.c.b16 %v5133, %v5126
  %v5596 = vpack.c.b16 %v5134, %v5127
  %v5597 = vpack.c.b16 %v5135, %v5128
  %v5598 = vpack.c.b16 %v5143, %v5136
  %v5599 = vpack.c.b16 %v5144, %v5137
  %v5600 = vpack.c.b16 %v5145, %v5138
  %v5601 = vpack.c.b16 %v5146, %v5139
  %v5602 = vpack.c.b16 %v5147, %v5140
  %v5603 = vpack.c.b16 %v5148, %v5141
  %v5604 = vpack.c.b16 %v5149, %v5142
  %v5605 = vpack.c.b16 %v5157, %v5150
  %v5606 = vpack.c.b16 %v5158, %v5151
  %v5607 = vpack.c.b16 %v5159, %v5152
  %v5608 = vpack.c.b16 %v5160, %v5153
  %v5609 = vpack.c.b16 %v5161, %v5154
  %v5610 = vpack.c.b16 %v5162, %v5155
  %v5611 = vpack.c.b16 %v5163, %v5156
  %6060 = vmatpush.bf16.msra.mxu0 %v5213
  %6061 = vmatpush.bf16.msra.mxu0 %v5206
  %6062 = vmatpush.bf16.msra.mxu0 %v5199
  %6063 = vmatpush.bf16.msra.mxu0 %v5192
  %6064 = vmatpush.bf16.msra.mxu0 %v5185
  %6065 = vmatpush.bf16.msra.mxu0 %v5178
  %6066 = vmatpush.bf16.msra.mxu0 %v5171
  %6067 = vmatpush.bf16.msra.mxu0 %v5164
  %6068 = vmatmul.bf16.gmra.mxu0 %v3221
  %v6069 = vpop.f32.mrf.mxu0
  %v6070 = vadd.f32 %v3742, %v6069
  %v6071 = vpop.f32.mrf.mxu0
  %6072 = vdwg.mxu0
  %6073 = vmatpush.bf16.msra.mxu0 %v5269
  %6074 = vmatpush.bf16.msra.mxu0 %v5262
  %6075 = vmatpush.bf16.msra.mxu0 %v5255
  %6076 = vmatpush.bf16.msra.mxu0 %v5248
  %6077 = vmatpush.bf16.msra.mxu0 %v5241
  %6078 = vmatpush.bf16.msra.mxu0 %v5234
  %6079 = vmatpush.bf16.msra.mxu0 %v5227
  %6080 = vmatpush.bf16.msra.mxu0 %v5220
  %6081 = vmatmul.bf16.gmra.mxu0 %v3222
  %v6082 = vpop.f32.mrf.mxu0
  %v6083 = vadd.f32 %v6070, %v6082
  %v6084 = vpop.f32.mrf.mxu0
  %6085 = vdwg.mxu0
  %6086 = vmatpush.bf16.msra.mxu0 %v5325
  %6087 = vmatpush.bf16.msra.mxu0 %v5318
  %6088 = vmatpush.bf16.msra.mxu0 %v5311
  %6089 = vmatpush.bf16.msra.mxu0 %v5304
  %6090 = vmatpush.bf16.msra.mxu0 %v5297
  %6091 = vmatpush.bf16.msra.mxu0 %v5290
  %6092 = vmatpush.bf16.msra.mxu0 %v5283
  %6093 = vmatpush.bf16.msra.mxu0 %v5276
  %6094 = vmatmul.bf16.gmra.mxu0 %v3223
  %v6095 = vpop.f32.mrf.mxu0
  %v6096 = vadd.f32 %v6083, %v6095
  %v6097 = vpop.f32.mrf.mxu0
  %6098 = vdwg.mxu0
  %6099 = vmatpush.bf16.msra.mxu0 %v5381
  %6100 = vmatpush.bf16.msra.mxu0 %v5374
  %6101 = vmatpush.bf16.msra.mxu0 %v5367
  %6102 = vmatpush.bf16.msra.mxu0 %v5360
  %6103 = vmatpush.bf16.msra.mxu0 %v5353
  %6104 = vmatpush.bf16.msra.mxu0 %v5346
  %6105 = vmatpush.bf16.msra.mxu0 %v5339
  %6106 = vmatpush.bf16.msra.mxu0 %v5332
  %6107 = vmatmul.bf16.gmra.mxu0 %v3224
  %v6108 = vpop.f32.mrf.mxu0
  %v6109 = vadd.f32 %v6096, %v6108
  %v6110 = vpop.f32.mrf.mxu0
  %6111 = vdwg.mxu0
  %6112 = vmatpush.bf16.msra.mxu0 %v5437
  %6113 = vmatpush.bf16.msra.mxu0 %v5430
  %6114 = vmatpush.bf16.msra.mxu0 %v5423
  %6115 = vmatpush.bf16.msra.mxu0 %v5416
  %6116 = vmatpush.bf16.msra.mxu0 %v5409
  %6117 = vmatpush.bf16.msra.mxu0 %v5402
  %6118 = vmatpush.bf16.msra.mxu0 %v5395
  %6119 = vmatpush.bf16.msra.mxu0 %v5388
  %6120 = vmatmul.bf16.gmra.mxu0 %v3225
  %v6121 = vpop.f32.mrf.mxu0
  %v6122 = vadd.f32 %v6109, %v6121
  %v6123 = vpop.f32.mrf.mxu0
  %6124 = vdwg.mxu0
  %6125 = vmatpush.bf16.msra.mxu0 %v5493
  %6126 = vmatpush.bf16.msra.mxu0 %v5486
  %6127 = vmatpush.bf16.msra.mxu0 %v5479
  %6128 = vmatpush.bf16.msra.mxu0 %v5472
  %6129 = vmatpush.bf16.msra.mxu0 %v5465
  %6130 = vmatpush.bf16.msra.mxu0 %v5458
  %6131 = vmatpush.bf16.msra.mxu0 %v5451
  %6132 = vmatpush.bf16.msra.mxu0 %v5444
  %6133 = vmatmul.bf16.gmra.mxu0 %v3226
  %v6134 = vpop.f32.mrf.mxu0
  %v6135 = vadd.f32 %v6122, %v6134
  %v6136 = vpop.f32.mrf.mxu0
  %6137 = vdwg.mxu0
  %6138 = vmatpush.bf16.msra.mxu0 %v5549
  %6139 = vmatpush.bf16.msra.mxu0 %v5542
  %6140 = vmatpush.bf16.msra.mxu0 %v5535
  %6141 = vmatpush.bf16.msra.mxu0 %v5528
  %6142 = vmatpush.bf16.msra.mxu0 %v5521
  %6143 = vmatpush.bf16.msra.mxu0 %v5514
  %6144 = vmatpush.bf16.msra.mxu0 %v5507
  %6145 = vmatpush.bf16.msra.mxu0 %v5500
  %6146 = vmatmul.bf16.gmra.mxu0 %v3227
  %v6147 = vpop.f32.mrf.mxu0
  %v6148 = vadd.f32 %v6135, %v6147
  %v6149 = vpop.f32.mrf.mxu0
  %6150 = vdwg.mxu0
  %6151 = vmatpush.bf16.msra.mxu0 %v5605
  %6152 = vmatpush.bf16.msra.mxu0 %v5598
  %6153 = vmatpush.bf16.msra.mxu0 %v5591
  %6154 = vmatpush.bf16.msra.mxu0 %v5584
  %6155 = vmatpush.bf16.msra.mxu0 %v5577
  %6156 = vmatpush.bf16.msra.mxu0 %v5570
  %6157 = vmatpush.bf16.msra.mxu0 %v5563
  %6158 = vmatpush.bf16.msra.mxu0 %v5556
  %6159 = vmatmul.bf16.gmra.mxu0 %v3228
  %v6160 = vpop.f32.mrf.mxu0
  %v6161 = vadd.f32 %v6148, %v6160
  %v6162 = vpop.f32.mrf.mxu0
  %6163 = vdwg.mxu0
  %6164 = vmatpush.bf16.msra.mxu0 %v5214
  %6165 = vmatpush.bf16.msra.mxu0 %v5207
  %6166 = vmatpush.bf16.msra.mxu0 %v5200
  %6167 = vmatpush.bf16.msra.mxu0 %v5193
  %6168 = vmatpush.bf16.msra.mxu0 %v5186
  %6169 = vmatpush.bf16.msra.mxu0 %v5179
  %6170 = vmatpush.bf16.msra.mxu0 %v5172
  %6171 = vmatpush.bf16.msra.mxu0 %v5165
  %6172 = vmatmul.bf16.gmra.mxu0 %v3221
  %v6173 = vpop.f32.mrf.mxu0
  %v6174 = vadd.f32 %v3743, %v6173
  %v6175 = vpop.f32.mrf.mxu0
  %6176 = vdwg.mxu0
  %6177 = vmatpush.bf16.msra.mxu0 %v5270
  %6178 = vmatpush.bf16.msra.mxu0 %v5263
  %6179 = vmatpush.bf16.msra.mxu0 %v5256
  %6180 = vmatpush.bf16.msra.mxu0 %v5249
  %6181 = vmatpush.bf16.msra.mxu0 %v5242
  %6182 = vmatpush.bf16.msra.mxu0 %v5235
  %6183 = vmatpush.bf16.msra.mxu0 %v5228
  %6184 = vmatpush.bf16.msra.mxu0 %v5221
  %6185 = vmatmul.bf16.gmra.mxu0 %v3222
  %v6186 = vpop.f32.mrf.mxu0
  %v6187 = vadd.f32 %v6174, %v6186
  %v6188 = vpop.f32.mrf.mxu0
  %6189 = vdwg.mxu0
  %6190 = vmatpush.bf16.msra.mxu0 %v5326
  %6191 = vmatpush.bf16.msra.mxu0 %v5319
  %6192 = vmatpush.bf16.msra.mxu0 %v5312
  %6193 = vmatpush.bf16.msra.mxu0 %v5305
  %6194 = vmatpush.bf16.msra.mxu0 %v5298
  %6195 = vmatpush.bf16.msra.mxu0 %v5291
  %6196 = vmatpush.bf16.msra.mxu0 %v5284
  %6197 = vmatpush.bf16.msra.mxu0 %v5277
  %6198 = vmatmul.bf16.gmra.mxu0 %v3223
  %v6199 = vpop.f32.mrf.mxu0
  %v6200 = vadd.f32 %v6187, %v6199
  %v6201 = vpop.f32.mrf.mxu0
  %6202 = vdwg.mxu0
  %6203 = vmatpush.bf16.msra.mxu0 %v5382
  %6204 = vmatpush.bf16.msra.mxu0 %v5375
  %6205 = vmatpush.bf16.msra.mxu0 %v5368
  %6206 = vmatpush.bf16.msra.mxu0 %v5361
  %6207 = vmatpush.bf16.msra.mxu0 %v5354
  %6208 = vmatpush.bf16.msra.mxu0 %v5347
  %6209 = vmatpush.bf16.msra.mxu0 %v5340
  %6210 = vmatpush.bf16.msra.mxu0 %v5333
  %6211 = vmatmul.bf16.gmra.mxu0 %v3224
  %v6212 = vpop.f32.mrf.mxu0
  %v6213 = vadd.f32 %v6200, %v6212
  %v6214 = vpop.f32.mrf.mxu0
  %6215 = vdwg.mxu0
  %6216 = vmatpush.bf16.msra.mxu0 %v5438
  %6217 = vmatpush.bf16.msra.mxu0 %v5431
  %6218 = vmatpush.bf16.msra.mxu0 %v5424
  %6219 = vmatpush.bf16.msra.mxu0 %v5417
  %6220 = vmatpush.bf16.msra.mxu0 %v5410
  %6221 = vmatpush.bf16.msra.mxu0 %v5403
  %6222 = vmatpush.bf16.msra.mxu0 %v5396
  %6223 = vmatpush.bf16.msra.mxu0 %v5389
  %6224 = vmatmul.bf16.gmra.mxu0 %v3225
  %v6225 = vpop.f32.mrf.mxu0
  %v6226 = vadd.f32 %v6213, %v6225
  %v6227 = vpop.f32.mrf.mxu0
  %6228 = vdwg.mxu0
  %6229 = vmatpush.bf16.msra.mxu0 %v5494
  %6230 = vmatpush.bf16.msra.mxu0 %v5487
  %6231 = vmatpush.bf16.msra.mxu0 %v5480
  %6232 = vmatpush.bf16.msra.mxu0 %v5473
  %6233 = vmatpush.bf16.msra.mxu0 %v5466
  %6234 = vmatpush.bf16.msra.mxu0 %v5459
  %6235 = vmatpush.bf16.msra.mxu0 %v5452
  %6236 = vmatpush.bf16.msra.mxu0 %v5445
  %6237 = vmatmul.bf16.gmra.mxu0 %v3226
  %v6238 = vpop.f32.mrf.mxu0
  %v6239 = vadd.f32 %v6226, %v6238
  %v6240 = vpop.f32.mrf.mxu0
  %6241 = vdwg.mxu0
  %6242 = vmatpush.bf16.msra.mxu0 %v5550
  %6243 = vmatpush.bf16.msra.mxu0 %v5543
  %6244 = vmatpush.bf16.msra.mxu0 %v5536
  %6245 = vmatpush.bf16.msra.mxu0 %v5529
  %6246 = vmatpush.bf16.msra.mxu0 %v5522
  %6247 = vmatpush.bf16.msra.mxu0 %v5515
  %6248 = vmatpush.bf16.msra.mxu0 %v5508
  %6249 = vmatpush.bf16.msra.mxu0 %v5501
  %6250 = vmatmul.bf16.gmra.mxu0 %v3227
  %v6251 = vpop.f32.mrf.mxu0
  %v6252 = vadd.f32 %v6239, %v6251
  %v6253 = vpop.f32.mrf.mxu0
  %6254 = vdwg.mxu0
  %6255 = vmatpush.bf16.msra.mxu0 %v5606
  %6256 = vmatpush.bf16.msra.mxu0 %v5599
  %6257 = vmatpush.bf16.msra.mxu0 %v5592
  %6258 = vmatpush.bf16.msra.mxu0 %v5585
  %6259 = vmatpush.bf16.msra.mxu0 %v5578
  %6260 = vmatpush.bf16.msra.mxu0 %v5571
  %6261 = vmatpush.bf16.msra.mxu0 %v5564
  %6262 = vmatpush.bf16.msra.mxu0 %v5557
  %6263 = vmatmul.bf16.gmra.mxu0 %v3228
  %v6264 = vpop.f32.mrf.mxu0
  %v6265 = vadd.f32 %v6252, %v6264
  %v6266 = vpop.f32.mrf.mxu0
  %6267 = vdwg.mxu0
  %6268 = vmatpush.bf16.msra.mxu0 %v5215
  %6269 = vmatpush.bf16.msra.mxu0 %v5208
  %6270 = vmatpush.bf16.msra.mxu0 %v5201
  %6271 = vmatpush.bf16.msra.mxu0 %v5194
  %6272 = vmatpush.bf16.msra.mxu0 %v5187
  %6273 = vmatpush.bf16.msra.mxu0 %v5180
  %6274 = vmatpush.bf16.msra.mxu0 %v5173
  %6275 = vmatpush.bf16.msra.mxu0 %v5166
  %6276 = vmatmul.bf16.gmra.mxu0 %v3221
  %v6277 = vpop.f32.mrf.mxu0
  %v6278 = vadd.f32 %v3744, %v6277
  %v6279 = vpop.f32.mrf.mxu0
  %6280 = vdwg.mxu0
  %6281 = vmatpush.bf16.msra.mxu0 %v5271
  %6282 = vmatpush.bf16.msra.mxu0 %v5264
  %6283 = vmatpush.bf16.msra.mxu0 %v5257
  %6284 = vmatpush.bf16.msra.mxu0 %v5250
  %6285 = vmatpush.bf16.msra.mxu0 %v5243
  %6286 = vmatpush.bf16.msra.mxu0 %v5236
  %6287 = vmatpush.bf16.msra.mxu0 %v5229
  %6288 = vmatpush.bf16.msra.mxu0 %v5222
  %6289 = vmatmul.bf16.gmra.mxu0 %v3222
  %v6290 = vpop.f32.mrf.mxu0
  %v6291 = vadd.f32 %v6278, %v6290
  %v6292 = vpop.f32.mrf.mxu0
  %6293 = vdwg.mxu0
  %6294 = vmatpush.bf16.msra.mxu0 %v5327
  %6295 = vmatpush.bf16.msra.mxu0 %v5320
  %6296 = vmatpush.bf16.msra.mxu0 %v5313
  %6297 = vmatpush.bf16.msra.mxu0 %v5306
  %6298 = vmatpush.bf16.msra.mxu0 %v5299
  %6299 = vmatpush.bf16.msra.mxu0 %v5292
  %6300 = vmatpush.bf16.msra.mxu0 %v5285
  %6301 = vmatpush.bf16.msra.mxu0 %v5278
  %6302 = vmatmul.bf16.gmra.mxu0 %v3223
  %v6303 = vpop.f32.mrf.mxu0
  %v6304 = vadd.f32 %v6291, %v6303
  %v6305 = vpop.f32.mrf.mxu0
  %6306 = vdwg.mxu0
  %6307 = vmatpush.bf16.msra.mxu0 %v5383
  %6308 = vmatpush.bf16.msra.mxu0 %v5376
  %6309 = vmatpush.bf16.msra.mxu0 %v5369
  %6310 = vmatpush.bf16.msra.mxu0 %v5362
  %6311 = vmatpush.bf16.msra.mxu0 %v5355
  %6312 = vmatpush.bf16.msra.mxu0 %v5348
  %6313 = vmatpush.bf16.msra.mxu0 %v5341
  %6314 = vmatpush.bf16.msra.mxu0 %v5334
  %6315 = vmatmul.bf16.gmra.mxu0 %v3224
  %v6316 = vpop.f32.mrf.mxu0
  %v6317 = vadd.f32 %v6304, %v6316
  %v6318 = vpop.f32.mrf.mxu0
  %6319 = vdwg.mxu0
  %6320 = vmatpush.bf16.msra.mxu0 %v5439
  %6321 = vmatpush.bf16.msra.mxu0 %v5432
  %6322 = vmatpush.bf16.msra.mxu0 %v5425
  %6323 = vmatpush.bf16.msra.mxu0 %v5418
  %6324 = vmatpush.bf16.msra.mxu0 %v5411
  %6325 = vmatpush.bf16.msra.mxu0 %v5404
  %6326 = vmatpush.bf16.msra.mxu0 %v5397
  %6327 = vmatpush.bf16.msra.mxu0 %v5390
  %6328 = vmatmul.bf16.gmra.mxu0 %v3225
  %v6329 = vpop.f32.mrf.mxu0
  %v6330 = vadd.f32 %v6317, %v6329
  %v6331 = vpop.f32.mrf.mxu0
  %6332 = vdwg.mxu0
  %6333 = vmatpush.bf16.msra.mxu0 %v5495
  %6334 = vmatpush.bf16.msra.mxu0 %v5488
  %6335 = vmatpush.bf16.msra.mxu0 %v5481
  %6336 = vmatpush.bf16.msra.mxu0 %v5474
  %6337 = vmatpush.bf16.msra.mxu0 %v5467
  %6338 = vmatpush.bf16.msra.mxu0 %v5460
  %6339 = vmatpush.bf16.msra.mxu0 %v5453
  %6340 = vmatpush.bf16.msra.mxu0 %v5446
  %6341 = vmatmul.bf16.gmra.mxu0 %v3226
  %v6342 = vpop.f32.mrf.mxu0
  %v6343 = vadd.f32 %v6330, %v6342
  %v6344 = vpop.f32.mrf.mxu0
  %6345 = vdwg.mxu0
  %6346 = vmatpush.bf16.msra.mxu0 %v5551
  %6347 = vmatpush.bf16.msra.mxu0 %v5544
  %6348 = vmatpush.bf16.msra.mxu0 %v5537
  %6349 = vmatpush.bf16.msra.mxu0 %v5530
  %6350 = vmatpush.bf16.msra.mxu0 %v5523
  %6351 = vmatpush.bf16.msra.mxu0 %v5516
  %6352 = vmatpush.bf16.msra.mxu0 %v5509
  %6353 = vmatpush.bf16.msra.mxu0 %v5502
  %6354 = vmatmul.bf16.gmra.mxu0 %v3227
  %v6355 = vpop.f32.mrf.mxu0
  %v6356 = vadd.f32 %v6343, %v6355
  %v6357 = vpop.f32.mrf.mxu0
  %6358 = vdwg.mxu0
  %6359 = vmatpush.bf16.msra.mxu0 %v5607
  %6360 = vmatpush.bf16.msra.mxu0 %v5600
  %6361 = vmatpush.bf16.msra.mxu0 %v5593
  %6362 = vmatpush.bf16.msra.mxu0 %v5586
  %6363 = vmatpush.bf16.msra.mxu0 %v5579
  %6364 = vmatpush.bf16.msra.mxu0 %v5572
  %6365 = vmatpush.bf16.msra.mxu0 %v5565
  %6366 = vmatpush.bf16.msra.mxu0 %v5558
  %6367 = vmatmul.bf16.gmra.mxu0 %v3228
  %v6368 = vpop.f32.mrf.mxu0
  %v6369 = vadd.f32 %v6356, %v6368
  %v6370 = vpop.f32.mrf.mxu0
  %6371 = vdwg.mxu0
  %6372 = vmatpush.bf16.msra.mxu0 %v5216
  %6373 = vmatpush.bf16.msra.mxu0 %v5209
  %6374 = vmatpush.bf16.msra.mxu0 %v5202
  %6375 = vmatpush.bf16.msra.mxu0 %v5195
  %6376 = vmatpush.bf16.msra.mxu0 %v5188
  %6377 = vmatpush.bf16.msra.mxu0 %v5181
  %6378 = vmatpush.bf16.msra.mxu0 %v5174
  %6379 = vmatpush.bf16.msra.mxu0 %v5167
  %6380 = vmatmul.bf16.gmra.mxu0 %v3221
  %v6381 = vpop.f32.mrf.mxu0
  %v6382 = vadd.f32 %v3745, %v6381
  %v6383 = vpop.f32.mrf.mxu0
  %6384 = vdwg.mxu0
  %6385 = vmatpush.bf16.msra.mxu0 %v5272
  %6386 = vmatpush.bf16.msra.mxu0 %v5265
  %6387 = vmatpush.bf16.msra.mxu0 %v5258
  %6388 = vmatpush.bf16.msra.mxu0 %v5251
  %6389 = vmatpush.bf16.msra.mxu0 %v5244
  %6390 = vmatpush.bf16.msra.mxu0 %v5237
  %6391 = vmatpush.bf16.msra.mxu0 %v5230
  %6392 = vmatpush.bf16.msra.mxu0 %v5223
  %6393 = vmatmul.bf16.gmra.mxu0 %v3222
  %v6394 = vpop.f32.mrf.mxu0
  %v6395 = vadd.f32 %v6382, %v6394
  %v6396 = vpop.f32.mrf.mxu0
  %6397 = vdwg.mxu0
  %6398 = vmatpush.bf16.msra.mxu0 %v5328
  %6399 = vmatpush.bf16.msra.mxu0 %v5321
  %6400 = vmatpush.bf16.msra.mxu0 %v5314
  %6401 = vmatpush.bf16.msra.mxu0 %v5307
  %6402 = vmatpush.bf16.msra.mxu0 %v5300
  %6403 = vmatpush.bf16.msra.mxu0 %v5293
  %6404 = vmatpush.bf16.msra.mxu0 %v5286
  %6405 = vmatpush.bf16.msra.mxu0 %v5279
  %6406 = vmatmul.bf16.gmra.mxu0 %v3223
  %v6407 = vpop.f32.mrf.mxu0
  %v6408 = vadd.f32 %v6395, %v6407
  %v6409 = vpop.f32.mrf.mxu0
  %6410 = vdwg.mxu0
  %6411 = vmatpush.bf16.msra.mxu0 %v5384
  %6412 = vmatpush.bf16.msra.mxu0 %v5377
  %6413 = vmatpush.bf16.msra.mxu0 %v5370
  %6414 = vmatpush.bf16.msra.mxu0 %v5363
  %6415 = vmatpush.bf16.msra.mxu0 %v5356
  %6416 = vmatpush.bf16.msra.mxu0 %v5349
  %6417 = vmatpush.bf16.msra.mxu0 %v5342
  %6418 = vmatpush.bf16.msra.mxu0 %v5335
  %6419 = vmatmul.bf16.gmra.mxu0 %v3224
  %v6420 = vpop.f32.mrf.mxu0
  %v6421 = vadd.f32 %v6408, %v6420
  %v6422 = vpop.f32.mrf.mxu0
  %6423 = vdwg.mxu0
  %6424 = vmatpush.bf16.msra.mxu0 %v5440
  %6425 = vmatpush.bf16.msra.mxu0 %v5433
  %6426 = vmatpush.bf16.msra.mxu0 %v5426
  %6427 = vmatpush.bf16.msra.mxu0 %v5419
  %6428 = vmatpush.bf16.msra.mxu0 %v5412
  %6429 = vmatpush.bf16.msra.mxu0 %v5405
  %6430 = vmatpush.bf16.msra.mxu0 %v5398
  %6431 = vmatpush.bf16.msra.mxu0 %v5391
  %6432 = vmatmul.bf16.gmra.mxu0 %v3225
  %v6433 = vpop.f32.mrf.mxu0
  %v6434 = vadd.f32 %v6421, %v6433
  %v6435 = vpop.f32.mrf.mxu0
  %6436 = vdwg.mxu0
  %6437 = vmatpush.bf16.msra.mxu0 %v5496
  %6438 = vmatpush.bf16.msra.mxu0 %v5489
  %6439 = vmatpush.bf16.msra.mxu0 %v5482
  %6440 = vmatpush.bf16.msra.mxu0 %v5475
  %6441 = vmatpush.bf16.msra.mxu0 %v5468
  %6442 = vmatpush.bf16.msra.mxu0 %v5461
  %6443 = vmatpush.bf16.msra.mxu0 %v5454
  %6444 = vmatpush.bf16.msra.mxu0 %v5447
  %6445 = vmatmul.bf16.gmra.mxu0 %v3226
  %v6446 = vpop.f32.mrf.mxu0
  %v6447 = vadd.f32 %v6434, %v6446
  %v6448 = vpop.f32.mrf.mxu0
  %6449 = vdwg.mxu0
  %6450 = vmatpush.bf16.msra.mxu0 %v5552
  %6451 = vmatpush.bf16.msra.mxu0 %v5545
  %6452 = vmatpush.bf16.msra.mxu0 %v5538
  %6453 = vmatpush.bf16.msra.mxu0 %v5531
  %6454 = vmatpush.bf16.msra.mxu0 %v5524
  %6455 = vmatpush.bf16.msra.mxu0 %v5517
  %6456 = vmatpush.bf16.msra.mxu0 %v5510
  %6457 = vmatpush.bf16.msra.mxu0 %v5503
  %6458 = vmatmul.bf16.gmra.mxu0 %v3227
  %v6459 = vpop.f32.mrf.mxu0
  %v6460 = vadd.f32 %v6447, %v6459
  %v6461 = vpop.f32.mrf.mxu0
  %6462 = vdwg.mxu0
  %6463 = vmatpush.bf16.msra.mxu0 %v5608
  %6464 = vmatpush.bf16.msra.mxu0 %v5601
  %6465 = vmatpush.bf16.msra.mxu0 %v5594
  %6466 = vmatpush.bf16.msra.mxu0 %v5587
  %6467 = vmatpush.bf16.msra.mxu0 %v5580
  %6468 = vmatpush.bf16.msra.mxu0 %v5573
  %6469 = vmatpush.bf16.msra.mxu0 %v5566
  %6470 = vmatpush.bf16.msra.mxu0 %v5559
  %6471 = vmatmul.bf16.gmra.mxu0 %v3228
  %v6472 = vpop.f32.mrf.mxu0
  %v6473 = vadd.f32 %v6460, %v6472
  %v6474 = vpop.f32.mrf.mxu0
  %6475 = vdwg.mxu0
  %6476 = vmatpush.bf16.msra.mxu0 %v5217
  %6477 = vmatpush.bf16.msra.mxu0 %v5210
  %6478 = vmatpush.bf16.msra.mxu0 %v5203
  %6479 = vmatpush.bf16.msra.mxu0 %v5196
  %6480 = vmatpush.bf16.msra.mxu0 %v5189
  %6481 = vmatpush.bf16.msra.mxu0 %v5182
  %6482 = vmatpush.bf16.msra.mxu0 %v5175
  %6483 = vmatpush.bf16.msra.mxu0 %v5168
  %6484 = vmatmul.bf16.gmra.mxu0 %v3221
  %v6485 = vpop.f32.mrf.mxu0
  %v6486 = vadd.f32 %v3746, %v6485
  %v6487 = vpop.f32.mrf.mxu0
  %6488 = vdwg.mxu0
  %6489 = vmatpush.bf16.msra.mxu0 %v5273
  %6490 = vmatpush.bf16.msra.mxu0 %v5266
  %6491 = vmatpush.bf16.msra.mxu0 %v5259
  %6492 = vmatpush.bf16.msra.mxu0 %v5252
  %6493 = vmatpush.bf16.msra.mxu0 %v5245
  %6494 = vmatpush.bf16.msra.mxu0 %v5238
  %6495 = vmatpush.bf16.msra.mxu0 %v5231
  %6496 = vmatpush.bf16.msra.mxu0 %v5224
  %6497 = vmatmul.bf16.gmra.mxu0 %v3222
  %v6498 = vpop.f32.mrf.mxu0
  %v6499 = vadd.f32 %v6486, %v6498
  %v6500 = vpop.f32.mrf.mxu0
  %6501 = vdwg.mxu0
  %6502 = vmatpush.bf16.msra.mxu0 %v5329
  %6503 = vmatpush.bf16.msra.mxu0 %v5322
  %6504 = vmatpush.bf16.msra.mxu0 %v5315
  %6505 = vmatpush.bf16.msra.mxu0 %v5308
  %6506 = vmatpush.bf16.msra.mxu0 %v5301
  %6507 = vmatpush.bf16.msra.mxu0 %v5294
  %6508 = vmatpush.bf16.msra.mxu0 %v5287
  %6509 = vmatpush.bf16.msra.mxu0 %v5280
  %6510 = vmatmul.bf16.gmra.mxu0 %v3223
  %v6511 = vpop.f32.mrf.mxu0
  %v6512 = vadd.f32 %v6499, %v6511
  %v6513 = vpop.f32.mrf.mxu0
  %6514 = vdwg.mxu0
  %6515 = vmatpush.bf16.msra.mxu0 %v5385
  %6516 = vmatpush.bf16.msra.mxu0 %v5378
  %6517 = vmatpush.bf16.msra.mxu0 %v5371
  %6518 = vmatpush.bf16.msra.mxu0 %v5364
  %6519 = vmatpush.bf16.msra.mxu0 %v5357
  %6520 = vmatpush.bf16.msra.mxu0 %v5350
  %6521 = vmatpush.bf16.msra.mxu0 %v5343
  %6522 = vmatpush.bf16.msra.mxu0 %v5336
  %6523 = vmatmul.bf16.gmra.mxu0 %v3224
  %v6524 = vpop.f32.mrf.mxu0
  %v6525 = vadd.f32 %v6512, %v6524
  %v6526 = vpop.f32.mrf.mxu0
  %6527 = vdwg.mxu0
  %6528 = vmatpush.bf16.msra.mxu0 %v5441
  %6529 = vmatpush.bf16.msra.mxu0 %v5434
  %6530 = vmatpush.bf16.msra.mxu0 %v5427
  %6531 = vmatpush.bf16.msra.mxu0 %v5420
  %6532 = vmatpush.bf16.msra.mxu0 %v5413
  %6533 = vmatpush.bf16.msra.mxu0 %v5406
  %6534 = vmatpush.bf16.msra.mxu0 %v5399
  %6535 = vmatpush.bf16.msra.mxu0 %v5392
  %6536 = vmatmul.bf16.gmra.mxu0 %v3225
  %v6537 = vpop.f32.mrf.mxu0
  %v6538 = vadd.f32 %v6525, %v6537
  %v6539 = vpop.f32.mrf.mxu0
  %6540 = vdwg.mxu0
  %6541 = vmatpush.bf16.msra.mxu0 %v5497
  %6542 = vmatpush.bf16.msra.mxu0 %v5490
  %6543 = vmatpush.bf16.msra.mxu0 %v5483
  %6544 = vmatpush.bf16.msra.mxu0 %v5476
  %6545 = vmatpush.bf16.msra.mxu0 %v5469
  %6546 = vmatpush.bf16.msra.mxu0 %v5462
  %6547 = vmatpush.bf16.msra.mxu0 %v5455
  %6548 = vmatpush.bf16.msra.mxu0 %v5448
  %6549 = vmatmul.bf16.gmra.mxu0 %v3226
  %v6550 = vpop.f32.mrf.mxu0
  %v6551 = vadd.f32 %v6538, %v6550
  %v6552 = vpop.f32.mrf.mxu0
  %6553 = vdwg.mxu0
  %6554 = vmatpush.bf16.msra.mxu0 %v5553
  %6555 = vmatpush.bf16.msra.mxu0 %v5546
  %6556 = vmatpush.bf16.msra.mxu0 %v5539
  %6557 = vmatpush.bf16.msra.mxu0 %v5532
  %6558 = vmatpush.bf16.msra.mxu0 %v5525
  %6559 = vmatpush.bf16.msra.mxu0 %v5518
  %6560 = vmatpush.bf16.msra.mxu0 %v5511
  %6561 = vmatpush.bf16.msra.mxu0 %v5504
  %6562 = vmatmul.bf16.gmra.mxu0 %v3227
  %v6563 = vpop.f32.mrf.mxu0
  %v6564 = vadd.f32 %v6551, %v6563
  %v6565 = vpop.f32.mrf.mxu0
  %6566 = vdwg.mxu0
  %6567 = vmatpush.bf16.msra.mxu0 %v5609
  %6568 = vmatpush.bf16.msra.mxu0 %v5602
  %6569 = vmatpush.bf16.msra.mxu0 %v5595
  %6570 = vmatpush.bf16.msra.mxu0 %v5588
  %6571 = vmatpush.bf16.msra.mxu0 %v5581
  %6572 = vmatpush.bf16.msra.mxu0 %v5574
  %6573 = vmatpush.bf16.msra.mxu0 %v5567
  %6574 = vmatpush.bf16.msra.mxu0 %v5560
  %6575 = vmatmul.bf16.gmra.mxu0 %v3228
  %v6576 = vpop.f32.mrf.mxu0
  %v6577 = vadd.f32 %v6564, %v6576
  %v6578 = vpop.f32.mrf.mxu0
  %6579 = vdwg.mxu0
  %6580 = vmatpush.bf16.msra.mxu0 %v5218
  %6581 = vmatpush.bf16.msra.mxu0 %v5211
  %6582 = vmatpush.bf16.msra.mxu0 %v5204
  %6583 = vmatpush.bf16.msra.mxu0 %v5197
  %6584 = vmatpush.bf16.msra.mxu0 %v5190
  %6585 = vmatpush.bf16.msra.mxu0 %v5183
  %6586 = vmatpush.bf16.msra.mxu0 %v5176
  %6587 = vmatpush.bf16.msra.mxu0 %v5169
  %6588 = vmatmul.bf16.gmra.mxu0 %v3221
  %v6589 = vpop.f32.mrf.mxu0
  %v6590 = vadd.f32 %v3747, %v6589
  %v6591 = vpop.f32.mrf.mxu0
  %6592 = vdwg.mxu0
  %6593 = vmatpush.bf16.msra.mxu0 %v5274
  %6594 = vmatpush.bf16.msra.mxu0 %v5267
  %6595 = vmatpush.bf16.msra.mxu0 %v5260
  %6596 = vmatpush.bf16.msra.mxu0 %v5253
  %6597 = vmatpush.bf16.msra.mxu0 %v5246
  %6598 = vmatpush.bf16.msra.mxu0 %v5239
  %6599 = vmatpush.bf16.msra.mxu0 %v5232
  %6600 = vmatpush.bf16.msra.mxu0 %v5225
  %6601 = vmatmul.bf16.gmra.mxu0 %v3222
  %v6602 = vpop.f32.mrf.mxu0
  %v6603 = vadd.f32 %v6590, %v6602
  %v6604 = vpop.f32.mrf.mxu0
  %6605 = vdwg.mxu0
  %6606 = vmatpush.bf16.msra.mxu0 %v5330
  %6607 = vmatpush.bf16.msra.mxu0 %v5323
  %6608 = vmatpush.bf16.msra.mxu0 %v5316
  %6609 = vmatpush.bf16.msra.mxu0 %v5309
  %6610 = vmatpush.bf16.msra.mxu0 %v5302
  %6611 = vmatpush.bf16.msra.mxu0 %v5295
  %6612 = vmatpush.bf16.msra.mxu0 %v5288
  %6613 = vmatpush.bf16.msra.mxu0 %v5281
  %6614 = vmatmul.bf16.gmra.mxu0 %v3223
  %v6615 = vpop.f32.mrf.mxu0
  %v6616 = vadd.f32 %v6603, %v6615
  %v6617 = vpop.f32.mrf.mxu0
  %6618 = vdwg.mxu0
  %6619 = vmatpush.bf16.msra.mxu0 %v5386
  %6620 = vmatpush.bf16.msra.mxu0 %v5379
  %6621 = vmatpush.bf16.msra.mxu0 %v5372
  %6622 = vmatpush.bf16.msra.mxu0 %v5365
  %6623 = vmatpush.bf16.msra.mxu0 %v5358
  %6624 = vmatpush.bf16.msra.mxu0 %v5351
  %6625 = vmatpush.bf16.msra.mxu0 %v5344
  %6626 = vmatpush.bf16.msra.mxu0 %v5337
  %6627 = vmatmul.bf16.gmra.mxu0 %v3224
  %v6628 = vpop.f32.mrf.mxu0
  %v6629 = vadd.f32 %v6616, %v6628
  %v6630 = vpop.f32.mrf.mxu0
  %6631 = vdwg.mxu0
  %6632 = vmatpush.bf16.msra.mxu0 %v5442
  %6633 = vmatpush.bf16.msra.mxu0 %v5435
  %6634 = vmatpush.bf16.msra.mxu0 %v5428
  %6635 = vmatpush.bf16.msra.mxu0 %v5421
  %6636 = vmatpush.bf16.msra.mxu0 %v5414
  %6637 = vmatpush.bf16.msra.mxu0 %v5407
  %6638 = vmatpush.bf16.msra.mxu0 %v5400
  %6639 = vmatpush.bf16.msra.mxu0 %v5393
  %6640 = vmatmul.bf16.gmra.mxu0 %v3225
  %v6641 = vpop.f32.mrf.mxu0
  %v6642 = vadd.f32 %v6629, %v6641
  %v6643 = vpop.f32.mrf.mxu0
  %6644 = vdwg.mxu0
  %6645 = vmatpush.bf16.msra.mxu0 %v5498
  %6646 = vmatpush.bf16.msra.mxu0 %v5491
  %6647 = vmatpush.bf16.msra.mxu0 %v5484
  %6648 = vmatpush.bf16.msra.mxu0 %v5477
  %6649 = vmatpush.bf16.msra.mxu0 %v5470
  %6650 = vmatpush.bf16.msra.mxu0 %v5463
  %6651 = vmatpush.bf16.msra.mxu0 %v5456
  %6652 = vmatpush.bf16.msra.mxu0 %v5449
  %6653 = vmatmul.bf16.gmra.mxu0 %v3226
  %v6654 = vpop.f32.mrf.mxu0
  %v6655 = vadd.f32 %v6642, %v6654
  %v6656 = vpop.f32.mrf.mxu0
  %6657 = vdwg.mxu0
  %6658 = vmatpush.bf16.msra.mxu0 %v5554
  %6659 = vmatpush.bf16.msra.mxu0 %v5547
  %6660 = vmatpush.bf16.msra.mxu0 %v5540
  %6661 = vmatpush.bf16.msra.mxu0 %v5533
  %6662 = vmatpush.bf16.msra.mxu0 %v5526
  %6663 = vmatpush.bf16.msra.mxu0 %v5519
  %6664 = vmatpush.bf16.msra.mxu0 %v5512
  %6665 = vmatpush.bf16.msra.mxu0 %v5505
  %6666 = vmatmul.bf16.gmra.mxu0 %v3227
  %v6667 = vpop.f32.mrf.mxu0
  %v6668 = vadd.f32 %v6655, %v6667
  %v6669 = vpop.f32.mrf.mxu0
  %6670 = vdwg.mxu0
  %6671 = vmatpush.bf16.msra.mxu0 %v5610
  %6672 = vmatpush.bf16.msra.mxu0 %v5603
  %6673 = vmatpush.bf16.msra.mxu0 %v5596
  %6674 = vmatpush.bf16.msra.mxu0 %v5589
  %6675 = vmatpush.bf16.msra.mxu0 %v5582
  %6676 = vmatpush.bf16.msra.mxu0 %v5575
  %6677 = vmatpush.bf16.msra.mxu0 %v5568
  %6678 = vmatpush.bf16.msra.mxu0 %v5561
  %6679 = vmatmul.bf16.gmra.mxu0 %v3228
  %v6680 = vpop.f32.mrf.mxu0
  %v6681 = vadd.f32 %v6668, %v6680
  %v6682 = vpop.f32.mrf.mxu0
  %6683 = vdwg.mxu0
  %6684 = vmatpush.bf16.msra.mxu0 %v5219
  %6685 = vmatpush.bf16.msra.mxu0 %v5212
  %6686 = vmatpush.bf16.msra.mxu0 %v5205
  %6687 = vmatpush.bf16.msra.mxu0 %v5198
  %6688 = vmatpush.bf16.msra.mxu0 %v5191
  %6689 = vmatpush.bf16.msra.mxu0 %v5184
  %6690 = vmatpush.bf16.msra.mxu0 %v5177
  %6691 = vmatpush.bf16.msra.mxu0 %v5170
  %6692 = vmatmul.bf16.gmra.mxu0 %v3221
  %v6693 = vpop.f32.mrf.mxu0
  %v6694 = vadd.f32 %v3748, %v6693
  %v6695 = vpop.f32.mrf.mxu0
  %6696 = vdwg.mxu0
  %6697 = vmatpush.bf16.msra.mxu0 %v5275
  %6698 = vmatpush.bf16.msra.mxu0 %v5268
  %6699 = vmatpush.bf16.msra.mxu0 %v5261
  %6700 = vmatpush.bf16.msra.mxu0 %v5254
  %6701 = vmatpush.bf16.msra.mxu0 %v5247
  %6702 = vmatpush.bf16.msra.mxu0 %v5240
  %6703 = vmatpush.bf16.msra.mxu0 %v5233
  %6704 = vmatpush.bf16.msra.mxu0 %v5226
  %6705 = vmatmul.bf16.gmra.mxu0 %v3222
  %v6706 = vpop.f32.mrf.mxu0
  %v6707 = vadd.f32 %v6694, %v6706
  %v6708 = vpop.f32.mrf.mxu0
  %6709 = vdwg.mxu0
  %6710 = vmatpush.bf16.msra.mxu0 %v5331
  %6711 = vmatpush.bf16.msra.mxu0 %v5324
  %6712 = vmatpush.bf16.msra.mxu0 %v5317
  %6713 = vmatpush.bf16.msra.mxu0 %v5310
  %6714 = vmatpush.bf16.msra.mxu0 %v5303
  %6715 = vmatpush.bf16.msra.mxu0 %v5296
  %6716 = vmatpush.bf16.msra.mxu0 %v5289
  %6717 = vmatpush.bf16.msra.mxu0 %v5282
  %6718 = vmatmul.bf16.gmra.mxu0 %v3223
  %v6719 = vpop.f32.mrf.mxu0
  %v6720 = vadd.f32 %v6707, %v6719
  %v6721 = vpop.f32.mrf.mxu0
  %6722 = vdwg.mxu0
  %6723 = vmatpush.bf16.msra.mxu0 %v5387
  %6724 = vmatpush.bf16.msra.mxu0 %v5380
  %6725 = vmatpush.bf16.msra.mxu0 %v5373
  %6726 = vmatpush.bf16.msra.mxu0 %v5366
  %6727 = vmatpush.bf16.msra.mxu0 %v5359
  %6728 = vmatpush.bf16.msra.mxu0 %v5352
  %6729 = vmatpush.bf16.msra.mxu0 %v5345
  %6730 = vmatpush.bf16.msra.mxu0 %v5338
  %6731 = vmatmul.bf16.gmra.mxu0 %v3224
  %v6732 = vpop.f32.mrf.mxu0
  %v6733 = vadd.f32 %v6720, %v6732
  %v6734 = vpop.f32.mrf.mxu0
  %6735 = vdwg.mxu0
  %6736 = vmatpush.bf16.msra.mxu0 %v5443
  %6737 = vmatpush.bf16.msra.mxu0 %v5436
  %6738 = vmatpush.bf16.msra.mxu0 %v5429
  %6739 = vmatpush.bf16.msra.mxu0 %v5422
  %6740 = vmatpush.bf16.msra.mxu0 %v5415
  %6741 = vmatpush.bf16.msra.mxu0 %v5408
  %6742 = vmatpush.bf16.msra.mxu0 %v5401
  %6743 = vmatpush.bf16.msra.mxu0 %v5394
  %6744 = vmatmul.bf16.gmra.mxu0 %v3225
  %v6745 = vpop.f32.mrf.mxu0
  %v6746 = vadd.f32 %v6733, %v6745
  %v6747 = vpop.f32.mrf.mxu0
  %6748 = vdwg.mxu0
  %6749 = vmatpush.bf16.msra.mxu0 %v5499
  %6750 = vmatpush.bf16.msra.mxu0 %v5492
  %6751 = vmatpush.bf16.msra.mxu0 %v5485
  %6752 = vmatpush.bf16.msra.mxu0 %v5478
  %6753 = vmatpush.bf16.msra.mxu0 %v5471
  %6754 = vmatpush.bf16.msra.mxu0 %v5464
  %6755 = vmatpush.bf16.msra.mxu0 %v5457
  %6756 = vmatpush.bf16.msra.mxu0 %v5450
  %6757 = vmatmul.bf16.gmra.mxu0 %v3226
  %v6758 = vpop.f32.mrf.mxu0
  %v6759 = vadd.f32 %v6746, %v6758
  %v6760 = vpop.f32.mrf.mxu0
  %6761 = vdwg.mxu0
  %6762 = vmatpush.bf16.msra.mxu0 %v5555
  %6763 = vmatpush.bf16.msra.mxu0 %v5548
  %6764 = vmatpush.bf16.msra.mxu0 %v5541
  %6765 = vmatpush.bf16.msra.mxu0 %v5534
  %6766 = vmatpush.bf16.msra.mxu0 %v5527
  %6767 = vmatpush.bf16.msra.mxu0 %v5520
  %6768 = vmatpush.bf16.msra.mxu0 %v5513
  %6769 = vmatpush.bf16.msra.mxu0 %v5506
  %6770 = vmatmul.bf16.gmra.mxu0 %v3227
  %v6771 = vpop.f32.mrf.mxu0
  %v6772 = vadd.f32 %v6759, %v6771
  %v6773 = vpop.f32.mrf.mxu0
  %6774 = vdwg.mxu0
  %6775 = vmatpush.bf16.msra.mxu0 %v5611
  %6776 = vmatpush.bf16.msra.mxu0 %v5604
  %6777 = vmatpush.bf16.msra.mxu0 %v5597
  %6778 = vmatpush.bf16.msra.mxu0 %v5590
  %6779 = vmatpush.bf16.msra.mxu0 %v5583
  %6780 = vmatpush.bf16.msra.mxu0 %v5576
  %6781 = vmatpush.bf16.msra.mxu0 %v5569
  %6782 = vmatpush.bf16.msra.mxu0 %v5562
  %6783 = vmatmul.bf16.gmra.mxu0 %v3228
  %v6784 = vpop.f32.mrf.mxu0
  %v6785 = vadd.f32 %v6772, %v6784
  %v6786 = vpop.f32.mrf.mxu0
  %6787 = vdwg.mxu0
  %v6788 = vtanh.pop %v6161
  %v6789 = vtanh.pop %v6265
  %v6790 = vtanh.pop %v6369
  %v6791 = vtanh.pop %v6473
  %v6792 = vtanh.pop %v6577
  %v6793 = vtanh.pop %v6681
  %v6794 = vtanh.pop %v6785
  %6795 = vst [vmem:[%s9] sm:$0xff] %v6788
  %6796 = vst [vmem:[%s9 + $0x8] sm:$0xff] %v6789
  %6797 = vst [vmem:[%s9 + $0x10] sm:$0xff] %v6790
  %6798 = vst [vmem:[%s9 + $0x18] sm:$0xff] %v6791
  %6799 = vst [vmem:[%s9 + $0x20] sm:$0xff] %v6792
  %6800 = vst [vmem:[%s9 + $0x28] sm:$0xff] %v6793
  %vm6801 = vcmask 130048
  %6802 = vst.msk [vmem:[%s9 + $0x30] sm:$0xff] %vm6801, %v6794
  // Predicated region
  $region38: #{generator_forward.1} parent=0 // pred_check
    _
  $region39: #{generator_forward.1} parent=0 // pred_check_branch
    %6804 = sbr.rel (0) target = $region41
  $region40: #{generator_forward.1} parent=0 // pred_region
    _
  $region41: #{generator_forward.1} parent=0 // pred_fallthru
    _
  // Predicated region
  $region42: #{generator_forward.1} parent=0 // pred_check
    _
  $region43: #{generator_forward.1} parent=0 // pred_check_branch
    %6806 = sbr.rel (0) target = $region45
  $region44: #{generator_forward.1} parent=0 // pred_region
    _
  $region45: #{generator_forward.1} parent=0 // pred_fallthru
    _

</llo_original>
